<compile_context>
chip_gen: v6e
topology: v6e:2x2x1
jax: 0.10.0
libtpu: 0.0.40
codegen_flags: <defaults>
</compile_context>

<pallas_src>
import math
import numpy as np
import jax
import jax.numpy as jnp
from jax import lax
from jax.experimental import pallas as pl
from jax.experimental.pallas import tpu as pltpu

# ---- small, module-consistent shapes -------------------------------------
B = 2                       # batch
T = 16                      # sequence length
BT = B * T                  # fused slab rows
D = 32                      # encoder_dim
NUM_HEADS = 4               # num_attention_heads
HEAD_DIM = D // NUM_HEADS
FF_MULT = 4                 # feed_forward_expansion_factor
H4 = D * FF_MULT
K = 5                       # convolution_kernel_size
PAD = K // 2                # 'same' padding
BN_EPS = 1e-3               # batch_norm_epsilon
LN_EPS = 1e-6
R_SOFTPLUS_0 = 1.442695041
NEG_INF = -1e30             # finite additive mask (avoids -inf -> NaN hazard)

# rows inside the packed (N_VEC, D) vector stack
V_FF1_LN_S, V_FF1_LN_B, V_FF1_B2 = 0, 1, 2
V_AT_LN_S, V_AT_LN_B, V_BO = 3, 4, 5
V_CV_LN_S, V_CV_LN_B = 6, 7
V_BN_S, V_BN_B, V_CV_B3 = 8, 9, 10
V_FF2_LN_S, V_FF2_LN_B, V_FF2_B2 = 11, 12, 13
V_FIN_LN_S, V_FIN_LN_B = 14, 15
V_DW0 = 16                                  # rows 16..20: depthwise taps
N_VEC = V_DW0 + K                           # 21

# rows inside the packed (4, H4) wide-bias stack
W_FF1_B1, W_FF2_B1, W_BQKV, W_BGLU = 0, 1, 2, 3

# segments inside the packed (6, D, 128) weight stack (out-dim padded to 128)
S_FF1_W1, S_WQKV, S_WO, S_GLU, S_CW3, S_FF2_W1 = 0, 1, 2, 3, 4, 5


# ---------------------------------------------------------------------------
# Trace-time constants: 0/1 shift matrices for the depthwise conv.
# shift_m[row, col] = 1  iff  col == row + off  and both rows are in the same
# batch element (encodes the per-batch 'same' zero padding, no pad/concat).
# ---------------------------------------------------------------------------
def _build_shift_matrices():
  row_i = np.arange(BT)[:, None]
  col_i = np.arange(BT)[None, :]
  same_b = (row_i // T) == (col_i // T)
  mats = []
  for kk in range(K):
    off = kk - PAD
    if off == 0:
      continue
    mats.append(((col_i == row_i + off) & same_b).astype(np.float32))
  return np.stack(mats, axis=0)                       # (K-1, BT, BT)

_SHIFT_MATS = _build_shift_matrices()


# ---------------------------------------------------------------------------
# Pallas kernel: whole ConformerBlock, whole batch, one grid step
# ---------------------------------------------------------------------------
def conformer_kernel(x_ref, mask_ref, amask_ref, shift_ref, vec_ref, wide_ref,
                     wd_ref, wh_ref, o_ref):
  x = x_ref[...]                     # (BT, D)  f32
  mask = mask_ref[...]               # (BT, 1)  f32, 1.0 == valid frame
  amask = amask_ref[...]             # (BT, BT) f32 additive attention mask
  vec = vec_ref[...]                 # (N_VEC, D) f32
  wide = wide_ref[...]               # (4, H4) f32

  def vrow(i):                       # (1, D)
    return vec[i:i + 1, :]

  def wrow(i):                       # (1, H4)
    return wide[i:i + 1, :]

  def layer_norm(y, si, bi):
    mu = jnp.mean(y, axis=-1, keepdims=True)
    var = jnp.mean(jnp.square(y - mu), axis=-1, keepdims=True)
    return (y - mu) * lax.rsqrt(var + LN_EPS) * (1.0 + vrow(si)) + vrow(bi)

  def silu(y):
    return y * jax.nn.sigmoid(y)

  def bdot(a, b):                    # bf16 MXU operands, f32 accumulation
    return jnp.dot(a.astype(jnp.bfloat16), b.astype(jnp.bfloat16),
                   preferred_element_type=jnp.float32)

  def feed_forward(y, ln_si, ln_bi, w1_seg, b1_row, w2_idx, b2_row):
    h = layer_norm(y, ln_si, ln_bi)
    h = bdot(h, wd_ref[w1_seg]) + wrow(b1_row)          # (BT, H4)
    h = silu(h) * mask
    h = bdot(h, wh_ref[w2_idx]) + vrow(b2_row)          # (BT, D)
    return h * mask

  # ---- FeedForward 1 (half-step residual) ---------------------------------
  x = x + 0.5 * feed_forward(x, V_FF1_LN_S, V_FF1_LN_B,
                             S_FF1_W1, W_FF1_B1, 0, V_FF1_B2)

  # ---- MHSA (QueryScaler already folded into the q projection) ------------
  xa = layer_norm(x, V_AT_LN_S, V_AT_LN_B)
  qkv = bdot(xa, wd_ref[S_WQKV]) + wrow(W_BQKV)         # (BT, 128), 96 valid
  wo = wd_ref[S_WO].astype(jnp.float32)                 # (D, 128), D valid
  inv_sqrt_hd = 1.0 / math.sqrt(HEAD_DIM)
  att = jnp.zeros((BT, 128), jnp.float32)
  for hh in range(NUM_HEADS):
    lo = hh * HEAD_DIM
    q_h = qkv[:, lo:lo + HEAD_DIM]
    k_h = qkv[:, D + lo:D + lo + HEAD_DIM]
    v_h = qkv[:, 2 * D + lo:2 * D + lo + HEAD_DIM]
    s = lax.dot_general(q_h.astype(jnp.bfloat16), k_h.astype(jnp.bfloat16),
                        (((1,), (1,)), ((), ())),
                        preferred_element_type=jnp.float32)
    # additive mask: block-diagonal over batch + key padding
    s = s * inv_sqrt_hd + amask
    m = jnp.max(s, axis=-1, keepdims=True)
    e = jnp.exp(s - m)
    probs = e * pl.reciprocal(jnp.sum(e, axis=-1, keepdims=True), approx=True)
    o_h = bdot(probs, v_h)                              # (BT, HEAD_DIM)
    # distribute the output projection over heads (no lane concat)
    att = att + bdot(o_h, wo[lo:lo + HEAD_DIM, :])
  x = x + att[:, :D] + vrow(V_BO)

  # ---- ConvolutionBlock ----------------------------------------------------
  xc = layer_norm(x, V_CV_LN_S, V_CV_LN_B)
  ab = bdot(xc, wd_ref[S_GLU]) + wrow(W_BGLU)           # (BT, 128), 64 valid
  g = ab[:, :D] * jax.nn.sigmoid(ab[:, D:2 * D])        # GLU
  g = g * mask
  # depthwise Conv1d (K taps, 'same' zero padding per batch element).
  # Shifted reads are tiny constant 0/1 shift-matrix matmuls on the idle MXU;
  # the matrices also encode batch boundaries -> no pad/concat VMEM copies.
  conv = g * vrow(V_DW0 + PAD)                          # centre tap (off = 0)
  sidx = 0
  for kk in range(K):
    off = kk - PAD
    if off == 0:
      continue
    shifted = jnp.dot(shift_ref[sidx], g, preferred_element_type=jnp.float32)
    conv = conv + shifted * vrow(V_DW0 + kk)
    sidx += 1
  # BatchNorm (eval) folded into a single scale/shift in the wrapper
  bn = (conv * vrow(V_BN_S) + vrow(V_BN_B)) * mask
  bn = silu(bn)
  x = x + bdot(bn, wd_ref[S_CW3])[:, :D] + vrow(V_CV_B3)

  # ---- FeedForward 2 + final LayerNorm -------------------------------------
  x = x + 0.5 * feed_forward(x, V_FF2_LN_S, V_FF2_LN_B,
                             S_FF2_W1, W_FF2_B1, 1, V_FF2_B2)
  x = layer_norm(x, V_FIN_LN_S, V_FIN_LN_B)
  o_ref[...] = x.astype(o_ref.dtype)


# ---------------------------------------------------------------------------
# Parameter folding + packing (done once, in XLA, outside the kernel)
# ---------------------------------------------------------------------------
def pack_params(p):
  f32 = jnp.float32

  def row(v):
    return jnp.reshape(v, (1, -1)).astype(f32)

  # Fold QueryScaler into the q projection (scales wq output columns / bq).
  q_scale = R_SOFTPLUS_0 * jax.nn.softplus(jnp.reshape(p["qs"], (1, D)))
  wq_s = p["wq"].astype(f32) * q_scale
  bq_s = row(p["bq"]) * q_scale
  # Fold eval-mode BatchNorm (running stats) into a single scale/shift.
  bn_s = (1.0 + row(p["bn_scale"])) * lax.rsqrt(row(p["bn_var"]) + BN_EPS)
  bn_b = row(p["bn_bias"]) - row(p["bn_mean"]) * bn_s

  vecs = jnp.concatenate([
      row(p["ff1_ln_s"]), row(p["ff1_ln_b"]), row(p["ff1_b2"]),
      row(p["at_ln_s"]), row(p["at_ln_b"]), row(p["bo"]),
      row(p["cv_ln_s"]), row(p["cv_ln_b"]),
      bn_s, bn_b, row(p["cv_b3"]),
      row(p["ff2_ln_s"]), row(p["ff2_ln_b"]), row(p["ff2_b2"]),
      row(p["fin_ln_s"]), row(p["fin_ln_b"]),
      p["dw_w"].astype(f32),
  ], axis=0)                                            # (N_VEC, D)

  def wide_row(v):
    v = jnp.reshape(v, (1, -1)).astype(f32)
    return jnp.pad(v, ((0, 0), (0, H4 - v.shape[1])))

  wide = jnp.concatenate([
      wide_row(p["ff1_b1"]),
      wide_row(p["ff2_b1"]),
      wide_row(jnp.concatenate([bq_s, row(p["bk"]), row(p["bv"])], axis=1)),
      wide_row(jnp.concatenate([row(p["cv_b1"]), row(p["cv_b2"])], axis=1)),
  ], axis=0)                                            # (4, H4)

  def seg(w):
    w = w.astype(f32)
    return jnp.pad(w, ((0, 0), (0, 128 - w.shape[1])))[None]

  w_d = jnp.concatenate([
      seg(p["ff1_w1"]),
      seg(jnp.concatenate([wq_s, p["wk"], p["wv"]], axis=1)),   # fused QKV
      seg(p["wo"]),
      seg(jnp.concatenate([p["cv_w1"], p["cv_w2"]], axis=1)),   # fused GLU
      seg(p["cv_w3"]),
      seg(p["ff2_w1"]),
  ], axis=0).astype(jnp.bfloat16)                       # (6, D, 128)

  w_h = jnp.stack([p["ff1_w2"], p["ff2_w2"]],
                  axis=0).astype(jnp.bfloat16)          # (2, H4, D)
  return vecs, wide, w_d, w_h


# ---------------------------------------------------------------------------
# Wrapper
# ---------------------------------------------------------------------------
def _full_spec(shape):
  nd = len(shape)
  return pl.BlockSpec(shape, lambda i, _nd=nd: (0,) * _nd)


def conformer_block_pallas(x, paddings, params):
  vecs, wide, w_d, w_h = pack_params(params)

  x2 = jnp.reshape(x, (BT, D)).astype(jnp.float32)
  pad_flat = jnp.reshape(paddings, (BT,)).astype(jnp.float32)
  mask_col = (1.0 - pad_flat)[:, None]                          # (BT, 1)
  batch_id = jnp.arange(BT, dtype=jnp.int32) // T
  ok = (batch_id[:, None] == batch_id[None, :]) & (pad_flat[None, :] < 0.5)
  amask = jnp.where(ok, 0.0, NEG_INF).astype(jnp.float32)       # (BT, BT)
  shifts = jnp.asarray(_SHIFT_MATS, jnp.float32)                # (K-1, BT, BT)

  inputs = (x2, mask_col, amask, shifts, vecs, wide, w_d, w_h)
  out = pl.pallas_call(
      conformer_kernel,
      out_shape=jax.ShapeDtypeStruct((BT, D), jnp.float32),
      grid=(1,),
      in_specs=[_full_spec(a.shape) for a in inputs],
      out_specs=_full_spec((BT, D)),
      compiler_params=pltpu.CompilerParams(
          dimension_semantics=("arbitrary",)),
  )(*inputs)
  return jnp.reshape(out, (B, T, D))


# ---------------------------------------------------------------------------
# Pure-JAX reference (same math as the PyTorch module in eval mode)
# ---------------------------------------------------------------------------
def conformer_block_reference(x, paddings, p):
  mask = 1.0 - paddings[:, :, None]

  def ln(y, s, b):
    mu = jnp.mean(y, -1, keepdims=True)
    var = jnp.mean(jnp.square(y - mu), -1, keepdims=True)
    return (y - mu) * lax.rsqrt(var + LN_EPS) * (1.0 + s) + b

  silu = lambda y: y * jax.nn.sigmoid(y)

  def ff(y, ln_s, ln_b, w1, b1, w2, b2):
    h = ln(y, ln_s, ln_b)
    h = silu(h @ w1 + b1) * mask
    return (h @ w2 + b2) * mask

  x = x + 0.5 * ff(x, p["ff1_ln_s"], p["ff1_ln_b"], p["ff1_w1"], p["ff1_b1"],
                   p["ff1_w2"], p["ff1_b2"])

  xa = ln(x, p["at_ln_s"], p["at_ln_b"])
  q = (xa @ p["wq"] + p["bq"]) * (R_SOFTPLUS_0 * jax.nn.softplus(p["qs"]))
  k = xa @ p["wk"] + p["bk"]
  v = xa @ p["wv"] + p["bv"]
  kmask = jnp.where(paddings[:, None, :] > 0.5, NEG_INF, 0.0)
  heads = []
  for h in range(NUM_HEADS):
    sl = slice(h * HEAD_DIM, (h + 1) * HEAD_DIM)
    sc = jnp.einsum("btd,bsd->bts", q[..., sl], k[..., sl]) / math.sqrt(HEAD_DIM)
    sc = sc + kmask
    m = jnp.max(sc, -1, keepdims=True)
    e = jnp.exp(sc - m)
    pr = e / jnp.sum(e, -1, keepdims=True)
    heads.append(jnp.einsum("bts,bsd->btd", pr, v[..., sl]))
  x = x + (jnp.concatenate(heads, -1) @ p["wo"] + p["bo"])

  xc = ln(x, p["cv_ln_s"], p["cv_ln_b"])
  g = (xc @ p["cv_w1"] + p["cv_b1"]) * jax.nn.sigmoid(xc @ p["cv_w2"] + p["cv_b2"])
  g = g * mask
  gp = jnp.pad(g, ((0, 0), (PAD, PAD), (0, 0)))
  conv = jnp.zeros_like(g)
  for kk in range(K):
    conv = conv + gp[:, kk:kk + T, :] * p["dw_w"][kk][None, None, :]
  vscale = (1.0 + p["bn_scale"]) * lax.rsqrt(p["bn_var"] + BN_EPS)
  bn = ((conv - p["bn_mean"]) * vscale + p["bn_bias"]) * mask
  x = x + (silu(bn) @ p["cv_w3"] + p["cv_b3"])

  x = x + 0.5 * ff(x, p["ff2_ln_s"], p["ff2_ln_b"], p["ff2_w1"], p["ff2_b1"],
                   p["ff2_w2"], p["ff2_b2"])
  return ln(x, p["fin_ln_s"], p["fin_ln_b"])


# ---------------------------------------------------------------------------
# Deterministic parameter construction
# ---------------------------------------------------------------------------
def make_params(key):
  keys = iter(jax.random.split(key, 64))
  rnd = lambda shape, s=0.1: jax.random.normal(next(keys), shape, jnp.float32) * s
  p = {}
  # ff1
  p["ff1_ln_s"], p["ff1_ln_b"] = rnd((1, D)), rnd((1, D))
  p["ff1_w1"], p["ff1_b1"] = rnd((D, H4), 0.05), rnd((1, H4))
  p["ff1_w2"], p["ff1_b2"] = rnd((H4, D), 0.05), rnd((1, D))
  # attention
  p["at_ln_s"], p["at_ln_b"] = rnd((1, D)), rnd((1, D))
  p["wq"], p["bq"] = rnd((D, D), 0.05), rnd((1, D))
  p["wk"], p["bk"] = rnd((D, D), 0.05), rnd((1, D))
  p["wv"], p["bv"] = rnd((D, D), 0.05), rnd((1, D))
  p["qs"] = jnp.tile(rnd((1, HEAD_DIM)), (1, NUM_HEADS))   # raw per-head scale
  p["wo"], p["bo"] = rnd((D, D), 0.05), rnd((1, D))
  # conv block
  p["cv_ln_s"], p["cv_ln_b"] = rnd((1, D)), rnd((1, D))
  p["cv_w1"], p["cv_b1"] = rnd((D, D), 0.05), rnd((1, D))
  p["cv_w2"], p["cv_b2"] = rnd((D, D), 0.05), rnd((1, D))
  p["dw_w"] = rnd((K, D), 0.2)
  p["bn_mean"] = rnd((1, D), 0.1)
  p["bn_var"] = 1.0 + jnp.abs(rnd((1, D), 0.1))
  p["bn_scale"], p["bn_bias"] = rnd((1, D)), rnd((1, D))
  p["cv_w3"], p["cv_b3"] = rnd((D, D), 0.05), rnd((1, D))
  # ff2
  p["ff2_ln_s"], p["ff2_ln_b"] = rnd((1, D)), rnd((1, D))
  p["ff2_w1"], p["ff2_b1"] = rnd((D, H4), 0.05), rnd((1, H4))
  p["ff2_w2"], p["ff2_b2"] = rnd((H4, D), 0.05), rnd((1, D))
  # final ln
  p["fin_ln_s"], p["fin_ln_b"] = rnd((1, D)), rnd((1, D))
  return p


if __name__ == "__main__":
  root = jax.random.PRNGKey(0)
  k_x, k_p = jax.random.split(root)
  x = jax.random.normal(k_x, (B, T, D), jnp.float32)
  paddings = jnp.zeros((B, T), jnp.float32)
  paddings = paddings.at[0, 12:].set(1.0)
  paddings = paddings.at[1, 10:].set(1.0)
  params = make_params(k_p)

  fn = jax.jit(conformer_block_pallas)
  out = jax.block_until_ready(fn(x, paddings, params))

  ref = jax.block_until_ready(conformer_block_reference(x, paddings, params))
  np.testing.assert_allclose(np.asarray(out), np.asarray(ref),
                             rtol=5e-2, atol=5e-2)
  assert out.shape == (B, T, D)
  assert bool(jnp.all(jnp.isfinite(out)))
  print("KERNEL_OK")
</pallas_src>

<mosaic_0001>
module attributes {stable_mosaic.version = 11 : i64} {
  func.func @conformer_kernel(%arg0: i32, %arg1: memref<32x32xf32, #tpu.memory_space<vmem>>, %arg2: memref<32x1xf32, #tpu.memory_space<vmem>>, %arg3: memref<32x32xf32, #tpu.memory_space<vmem>>, %arg4: memref<4x32x32xf32, #tpu.memory_space<vmem>>, %arg5: memref<21x32xf32, #tpu.memory_space<vmem>>, %arg6: memref<4x128xf32, #tpu.memory_space<vmem>>, %arg7: memref<6x32x128xbf16, #tpu.memory_space<vmem>>, %arg8: memref<2x128x32xbf16, #tpu.memory_space<vmem>>, %arg9: memref<32x32xf32, #tpu.memory_space<vmem>>) attributes {dimension_semantics = [#tpu.dimension_semantics<arbitrary>], iteration_bounds = array<i64: 1>, scalar_prefetch = 0 : i64, scratch_operands = 0 : i64, tpu.core_type = #tpu.core_type<tc>, window_params = [{pipeline_mode = #tpu.pipeline_mode<synchronous>, transform_indices = @transform_0, window_bounds = array<i64: 32, 32>}, {pipeline_mode = #tpu.pipeline_mode<synchronous>, transform_indices = @transform_1, window_bounds = array<i64: 32, 1>}, {pipeline_mode = #tpu.pipeline_mode<synchronous>, transform_indices = @transform_2, window_bounds = array<i64: 32, 32>}, {pipeline_mode = #tpu.pipeline_mode<synchronous>, transform_indices = @transform_3, window_bounds = array<i64: 4, 32, 32>}, {pipeline_mode = #tpu.pipeline_mode<synchronous>, transform_indices = @transform_4, window_bounds = array<i64: 21, 32>}, {pipeline_mode = #tpu.pipeline_mode<synchronous>, transform_indices = @transform_5, window_bounds = array<i64: 4, 128>}, {pipeline_mode = #tpu.pipeline_mode<synchronous>, transform_indices = @transform_6, window_bounds = array<i64: 6, 32, 128>}, {pipeline_mode = #tpu.pipeline_mode<synchronous>, transform_indices = @transform_7, window_bounds = array<i64: 2, 128, 32>}, {pipeline_mode = #tpu.pipeline_mode<synchronous>, transform_indices = @transform_8, window_bounds = array<i64: 32, 32>}]} {
    %c0 = arith.constant 0 : index
    %c0_0 = arith.constant 0 : index
    %0 = vector.load %arg1[%c0, %c0_0] : memref<32x32xf32, #tpu.memory_space<vmem>>, vector<32x32xf32>
    %c0_1 = arith.constant 0 : index
    %c0_2 = arith.constant 0 : index
    %1 = vector.load %arg2[%c0_1, %c0_2] : memref<32x1xf32, #tpu.memory_space<vmem>>, vector<32x1xf32>
    %c0_3 = arith.constant 0 : index
    %c0_4 = arith.constant 0 : index
    %2 = vector.load %arg3[%c0_3, %c0_4] : memref<32x32xf32, #tpu.memory_space<vmem>>, vector<32x32xf32>
    %c0_5 = arith.constant 0 : index
    %c0_6 = arith.constant 0 : index
    %3 = vector.load %arg5[%c0_5, %c0_6] : memref<21x32xf32, #tpu.memory_space<vmem>>, vector<21x32xf32>
    %c0_7 = arith.constant 0 : index
    %c0_8 = arith.constant 0 : index
    %4 = vector.load %arg6[%c0_7, %c0_8] : memref<4x128xf32, #tpu.memory_space<vmem>>, vector<4x128xf32>
    %cst = arith.constant dense<0.000000e+00> : vector<32xf32>
    %5 = vector.multi_reduction <add>, %0, %cst [1] : vector<32x32xf32> to vector<32xf32>
    %6 = vector.shape_cast %5 : vector<32xf32> to vector<32x1xf32>
    %cst_9 = arith.constant 3.200000e+01 : f32
    %7 = vector.broadcast %cst_9 : f32 to vector<32x1xf32>
    %8 = arith.divf %6, %7 : vector<32x1xf32>
    %9 = vector.broadcast %8 : vector<32x1xf32> to vector<32x32xf32>
    %10 = arith.subf %0, %9 : vector<32x32xf32>
    %11 = arith.mulf %10, %10 : vector<32x32xf32>
    %cst_10 = arith.constant dense<0.000000e+00> : vector<32xf32>
    %12 = vector.multi_reduction <add>, %11, %cst_10 [1] : vector<32x32xf32> to vector<32xf32>
    %13 = vector.shape_cast %12 : vector<32xf32> to vector<32x1xf32>
    %cst_11 = arith.constant 3.200000e+01 : f32
    %14 = vector.broadcast %cst_11 : f32 to vector<32x1xf32>
    %15 = arith.divf %13, %14 : vector<32x1xf32>
    %16 = vector.broadcast %8 : vector<32x1xf32> to vector<32x32xf32>
    %17 = arith.subf %0, %16 : vector<32x32xf32>
    %cst_12 = arith.constant 9.99999997E-7 : f32
    %18 = vector.broadcast %cst_12 : f32 to vector<32x1xf32>
    %19 = arith.addf %15, %18 : vector<32x1xf32>
    %20 = math.rsqrt %19 : vector<32x1xf32>
    %21 = vector.broadcast %20 : vector<32x1xf32> to vector<32x32xf32>
    %22 = arith.mulf %17, %21 : vector<32x32xf32>
    %23 = vector.extract_strided_slice %3 {offsets = [0, 0], sizes = [1, 32], strides = [1, 1]} : vector<21x32xf32> to vector<1x32xf32>
    %cst_13 = arith.constant 1.000000e+00 : f32
    %24 = vector.broadcast %cst_13 : f32 to vector<1x32xf32>
    %25 = arith.addf %24, %23 : vector<1x32xf32>
    %26 = vector.broadcast %25 : vector<1x32xf32> to vector<32x32xf32>
    %27 = arith.mulf %22, %26 : vector<32x32xf32>
    %28 = vector.extract_strided_slice %3 {offsets = [1, 0], sizes = [1, 32], strides = [1, 1]} : vector<21x32xf32> to vector<1x32xf32>
    %29 = vector.broadcast %28 : vector<1x32xf32> to vector<32x32xf32>
    %30 = arith.addf %27, %29 : vector<32x32xf32>
    %c0_14 = arith.constant 0 : index
    %c0_15 = arith.constant 0 : index
    %c0_16 = arith.constant 0 : index
    %31 = vector.load %arg7[%c0_14, %c0_15, %c0_16] : memref<6x32x128xbf16, #tpu.memory_space<vmem>>, vector<1x32x128xbf16>
    %32 = vector.shape_cast %31 : vector<1x32x128xbf16> to vector<32x128xbf16>
    %33 = arith.truncf %30 : vector<32x32xf32> to vector<32x32xbf16>
    %cst_17 = arith.constant dense<0.000000e+00> : vector<32x128xf32>
    %34 = tpu.matmul %33, %32, %cst_17 {dimension_numbers = #tpu.dot_dimension_numbers<[1], [0], [0], [1], [0, 0, 1, 1], [], []>} : vector<32x32xbf16>, vector<32x128xbf16>, vector<32x128xf32> -> vector<32x128xf32>
    %35 = vector.extract_strided_slice %4 {offsets = [0, 0], sizes = [1, 128], strides = [1, 1]} : vector<4x128xf32> to vector<1x128xf32>
    %36 = vector.broadcast %35 : vector<1x128xf32> to vector<32x128xf32>
    %37 = arith.addf %34, %36 : vector<32x128xf32>
    %38 = arith.negf %37 : vector<32x128xf32>
    %39 = math.exp %38 : vector<32x128xf32>
    %cst_18 = arith.constant 1.000000e+00 : f32
    %40 = vector.broadcast %cst_18 : f32 to vector<32x128xf32>
    %41 = arith.addf %40, %39 : vector<32x128xf32>
    %42 = arith.divf %40, %41 : vector<32x128xf32>
    %43 = arith.mulf %37, %42 : vector<32x128xf32>
    %44 = vector.broadcast %1 : vector<32x1xf32> to vector<32x128xf32>
    %45 = arith.mulf %43, %44 : vector<32x128xf32>
    %c0_19 = arith.constant 0 : index
    %c0_20 = arith.constant 0 : index
    %c0_21 = arith.constant 0 : index
    %46 = vector.load %arg8[%c0_19, %c0_20, %c0_21] : memref<2x128x32xbf16, #tpu.memory_space<vmem>>, vector<1x128x32xbf16>
    %47 = vector.shape_cast %46 : vector<1x128x32xbf16> to vector<128x32xbf16>
    %48 = arith.truncf %45 : vector<32x128xf32> to vector<32x128xbf16>
    %cst_22 = arith.constant dense<0.000000e+00> : vector<32x32xf32>
    %49 = tpu.matmul %48, %47, %cst_22 {dimension_numbers = #tpu.dot_dimension_numbers<[1], [0], [0], [1], [0, 0, 1, 1], [], []>} : vector<32x128xbf16>, vector<128x32xbf16>, vector<32x32xf32> -> vector<32x32xf32>
    %50 = vector.extract_strided_slice %3 {offsets = [2, 0], sizes = [1, 32], strides = [1, 1]} : vector<21x32xf32> to vector<1x32xf32>
    %51 = vector.broadcast %50 : vector<1x32xf32> to vector<32x32xf32>
    %52 = arith.addf %49, %51 : vector<32x32xf32>
    %53 = vector.broadcast %1 : vector<32x1xf32> to vector<32x32xf32>
    %54 = arith.mulf %52, %53 : vector<32x32xf32>
    %cst_23 = arith.constant 5.000000e-01 : f32
    %55 = vector.broadcast %cst_23 : f32 to vector<32x32xf32>
    %56 = arith.mulf %55, %54 : vector<32x32xf32>
    %57 = arith.addf %0, %56 : vector<32x32xf32>
    %cst_24 = arith.constant dense<0.000000e+00> : vector<32xf32>
    %58 = vector.multi_reduction <add>, %57, %cst_24 [1] : vector<32x32xf32> to vector<32xf32>
    %59 = vector.shape_cast %58 : vector<32xf32> to vector<32x1xf32>
    %cst_25 = arith.constant 3.200000e+01 : f32
    %60 = vector.broadcast %cst_25 : f32 to vector<32x1xf32>
    %61 = arith.divf %59, %60 : vector<32x1xf32>
    %62 = vector.broadcast %61 : vector<32x1xf32> to vector<32x32xf32>
    %63 = arith.subf %57, %62 : vector<32x32xf32>
    %64 = arith.mulf %63, %63 : vector<32x32xf32>
    %cst_26 = arith.constant dense<0.000000e+00> : vector<32xf32>
    %65 = vector.multi_reduction <add>, %64, %cst_26 [1] : vector<32x32xf32> to vector<32xf32>
    %66 = vector.shape_cast %65 : vector<32xf32> to vector<32x1xf32>
    %cst_27 = arith.constant 3.200000e+01 : f32
    %67 = vector.broadcast %cst_27 : f32 to vector<32x1xf32>
    %68 = arith.divf %66, %67 : vector<32x1xf32>
    %69 = vector.broadcast %61 : vector<32x1xf32> to vector<32x32xf32>
    %70 = arith.subf %57, %69 : vector<32x32xf32>
    %cst_28 = arith.constant 9.99999997E-7 : f32
    %71 = vector.broadcast %cst_28 : f32 to vector<32x1xf32>
    %72 = arith.addf %68, %71 : vector<32x1xf32>
    %73 = math.rsqrt %72 : vector<32x1xf32>
    %74 = vector.broadcast %73 : vector<32x1xf32> to vector<32x32xf32>
    %75 = arith.mulf %70, %74 : vector<32x32xf32>
    %76 = vector.extract_strided_slice %3 {offsets = [3, 0], sizes = [1, 32], strides = [1, 1]} : vector<21x32xf32> to vector<1x32xf32>
    %cst_29 = arith.constant 1.000000e+00 : f32
    %77 = vector.broadcast %cst_29 : f32 to vector<1x32xf32>
    %78 = arith.addf %77, %76 : vector<1x32xf32>
    %79 = vector.broadcast %78 : vector<1x32xf32> to vector<32x32xf32>
    %80 = arith.mulf %75, %79 : vector<32x32xf32>
    %81 = vector.extract_strided_slice %3 {offsets = [4, 0], sizes = [1, 32], strides = [1, 1]} : vector<21x32xf32> to vector<1x32xf32>
    %82 = vector.broadcast %81 : vector<1x32xf32> to vector<32x32xf32>
    %83 = arith.addf %80, %82 : vector<32x32xf32>
    %c1 = arith.constant 1 : index
    %c0_30 = arith.constant 0 : index
    %c0_31 = arith.constant 0 : index
    %84 = vector.load %arg7[%c1, %c0_30, %c0_31] : memref<6x32x128xbf16, #tpu.memory_space<vmem>>, vector<1x32x128xbf16>
    %85 = vector.shape_cast %84 : vector<1x32x128xbf16> to vector<32x128xbf16>
    %86 = arith.truncf %83 : vector<32x32xf32> to vector<32x32xbf16>
    %cst_32 = arith.constant dense<0.000000e+00> : vector<32x128xf32>
    %87 = tpu.matmul %86, %85, %cst_32 {dimension_numbers = #tpu.dot_dimension_numbers<[1], [0], [0], [1], [0, 0, 1, 1], [], []>} : vector<32x32xbf16>, vector<32x128xbf16>, vector<32x128xf32> -> vector<32x128xf32>
    %88 = vector.extract_strided_slice %4 {offsets = [2, 0], sizes = [1, 128], strides = [1, 1]} : vector<4x128xf32> to vector<1x128xf32>
    %89 = vector.broadcast %88 : vector<1x128xf32> to vector<32x128xf32>
    %90 = arith.addf %87, %89 : vector<32x128xf32>
    %c2 = arith.constant 2 : index
    %c0_33 = arith.constant 0 : index
    %c0_34 = arith.constant 0 : index
    %91 = vector.load %arg7[%c2, %c0_33, %c0_34] : memref<6x32x128xbf16, #tpu.memory_space<vmem>>, vector<1x32x128xbf16>
    %92 = vector.shape_cast %91 : vector<1x32x128xbf16> to vector<32x128xbf16>
    %93 = arith.extf %92 : vector<32x128xbf16> to vector<32x128xf32>
    %cst_35 = arith.constant 0.000000e+00 : f32
    %94 = vector.broadcast %cst_35 : f32 to vector<32x128xf32>
    %95 = vector.extract_strided_slice %90 {offsets = [0, 0], sizes = [32, 8], strides = [1, 1]} : vector<32x128xf32> to vector<32x8xf32>
    %96 = vector.extract_strided_slice %90 {offsets = [0, 32], sizes = [32, 8], strides = [1, 1]} : vector<32x128xf32> to vector<32x8xf32>
    %97 = vector.extract_strided_slice %90 {offsets = [0, 64], sizes = [32, 8], strides = [1, 1]} : vector<32x128xf32> to vector<32x8xf32>
    %98 = arith.truncf %95 : vector<32x8xf32> to vector<32x8xbf16>
    %99 = arith.truncf %96 : vector<32x8xf32> to vector<32x8xbf16>
    %cst_36 = arith.constant dense<0.000000e+00> : vector<32x32xf32>
    %100 = tpu.matmul %98, %99, %cst_36 {dimension_numbers = #tpu.dot_dimension_numbers<[1], [1], [0], [0], [0, 0, 1, 0], [], []>} : vector<32x8xbf16>, vector<32x8xbf16>, vector<32x32xf32> -> vector<32x32xf32>
    %cst_37 = arith.constant 0.353553385 : f32
    %101 = vector.broadcast %cst_37 : f32 to vector<32x32xf32>
    %102 = arith.mulf %100, %101 : vector<32x32xf32>
    %103 = arith.addf %102, %2 : vector<32x32xf32>
    %cst_38 = arith.constant dense<0xFF800000> : vector<32xf32>
    %104 = vector.multi_reduction <maximumf>, %103, %cst_38 [1] : vector<32x32xf32> to vector<32xf32>
    %105 = vector.shape_cast %104 : vector<32xf32> to vector<32x1xf32>
    %106 = vector.broadcast %105 : vector<32x1xf32> to vector<32x32xf32>
    %107 = arith.subf %103, %106 : vector<32x32xf32>
    %108 = math.exp %107 : vector<32x32xf32>
    %cst_39 = arith.constant dense<0.000000e+00> : vector<32xf32>
    %109 = vector.multi_reduction <add>, %108, %cst_39 [1] : vector<32x32xf32> to vector<32xf32>
    %110 = vector.shape_cast %109 : vector<32xf32> to vector<32x1xf32>
    %111 = tpu.reciprocal %110 {approx = true} : vector<32x1xf32> -> vector<32x1xf32>
    %112 = vector.broadcast %111 : vector<32x1xf32> to vector<32x32xf32>
    %113 = arith.mulf %108, %112 : vector<32x32xf32>
    %114 = arith.truncf %113 : vector<32x32xf32> to vector<32x32xbf16>
    %115 = arith.truncf %97 : vector<32x8xf32> to vector<32x8xbf16>
    %cst_40 = arith.constant dense<0.000000e+00> : vector<32x8xf32>
    %116 = tpu.matmul %114, %115, %cst_40 {dimension_numbers = #tpu.dot_dimension_numbers<[1], [0], [0], [1], [0, 0, 1, 1], [], []>} : vector<32x32xbf16>, vector<32x8xbf16>, vector<32x8xf32> -> vector<32x8xf32>
    %117 = vector.extract_strided_slice %93 {offsets = [0, 0], sizes = [8, 128], strides = [1, 1]} : vector<32x128xf32> to vector<8x128xf32>
    %118 = arith.truncf %116 : vector<32x8xf32> to vector<32x8xbf16>
    %119 = arith.truncf %117 : vector<8x128xf32> to vector<8x128xbf16>
    %cst_41 = arith.constant dense<0.000000e+00> : vector<32x128xf32>
    %120 = tpu.matmul %118, %119, %cst_41 {dimension_numbers = #tpu.dot_dimension_numbers<[1], [0], [0], [1], [0, 0, 1, 1], [], []>} : vector<32x8xbf16>, vector<8x128xbf16>, vector<32x128xf32> -> vector<32x128xf32>
    %121 = arith.addf %94, %120 : vector<32x128xf32>
    %122 = vector.extract_strided_slice %90 {offsets = [0, 8], sizes = [32, 8], strides = [1, 1]} : vector<32x128xf32> to vector<32x8xf32>
    %123 = vector.extract_strided_slice %90 {offsets = [0, 40], sizes = [32, 8], strides = [1, 1]} : vector<32x128xf32> to vector<32x8xf32>
    %124 = vector.extract_strided_slice %90 {offsets = [0, 72], sizes = [32, 8], strides = [1, 1]} : vector<32x128xf32> to vector<32x8xf32>
    %125 = arith.truncf %122 : vector<32x8xf32> to vector<32x8xbf16>
    %126 = arith.truncf %123 : vector<32x8xf32> to vector<32x8xbf16>
    %cst_42 = arith.constant dense<0.000000e+00> : vector<32x32xf32>
    %127 = tpu.matmul %125, %126, %cst_42 {dimension_numbers = #tpu.dot_dimension_numbers<[1], [1], [0], [0], [0, 0, 1, 0], [], []>} : vector<32x8xbf16>, vector<32x8xbf16>, vector<32x32xf32> -> vector<32x32xf32>
    %cst_43 = arith.constant 0.353553385 : f32
    %128 = vector.broadcast %cst_43 : f32 to vector<32x32xf32>
    %129 = arith.mulf %127, %128 : vector<32x32xf32>
    %130 = arith.addf %129, %2 : vector<32x32xf32>
    %cst_44 = arith.constant dense<0xFF800000> : vector<32xf32>
    %131 = vector.multi_reduction <maximumf>, %130, %cst_44 [1] : vector<32x32xf32> to vector<32xf32>
    %132 = vector.shape_cast %131 : vector<32xf32> to vector<32x1xf32>
    %133 = vector.broadcast %132 : vector<32x1xf32> to vector<32x32xf32>
    %134 = arith.subf %130, %133 : vector<32x32xf32>
    %135 = math.exp %134 : vector<32x32xf32>
    %cst_45 = arith.constant dense<0.000000e+00> : vector<32xf32>
    %136 = vector.multi_reduction <add>, %135, %cst_45 [1] : vector<32x32xf32> to vector<32xf32>
    %137 = vector.shape_cast %136 : vector<32xf32> to vector<32x1xf32>
    %138 = tpu.reciprocal %137 {approx = true} : vector<32x1xf32> -> vector<32x1xf32>
    %139 = vector.broadcast %138 : vector<32x1xf32> to vector<32x32xf32>
    %140 = arith.mulf %135, %139 : vector<32x32xf32>
    %141 = arith.truncf %140 : vector<32x32xf32> to vector<32x32xbf16>
    %142 = arith.truncf %124 : vector<32x8xf32> to vector<32x8xbf16>
    %cst_46 = arith.constant dense<0.000000e+00> : vector<32x8xf32>
    %143 = tpu.matmul %141, %142, %cst_46 {dimension_numbers = #tpu.dot_dimension_numbers<[1], [0], [0], [1], [0, 0, 1, 1], [], []>} : vector<32x32xbf16>, vector<32x8xbf16>, vector<32x8xf32> -> vector<32x8xf32>
    %144 = vector.extract_strided_slice %93 {offsets = [8, 0], sizes = [8, 128], strides = [1, 1]} : vector<32x128xf32> to vector<8x128xf32>
    %145 = arith.truncf %143 : vector<32x8xf32> to vector<32x8xbf16>
    %146 = arith.truncf %144 : vector<8x128xf32> to vector<8x128xbf16>
    %cst_47 = arith.constant dense<0.000000e+00> : vector<32x128xf32>
    %147 = tpu.matmul %145, %146, %cst_47 {dimension_numbers = #tpu.dot_dimension_numbers<[1], [0], [0], [1], [0, 0, 1, 1], [], []>} : vector<32x8xbf16>, vector<8x128xbf16>, vector<32x128xf32> -> vector<32x128xf32>
    %148 = arith.addf %121, %147 : vector<32x128xf32>
    %149 = vector.extract_strided_slice %90 {offsets = [0, 16], sizes = [32, 8], strides = [1, 1]} : vector<32x128xf32> to vector<32x8xf32>
    %150 = vector.extract_strided_slice %90 {offsets = [0, 48], sizes = [32, 8], strides = [1, 1]} : vector<32x128xf32> to vector<32x8xf32>
    %151 = vector.extract_strided_slice %90 {offsets = [0, 80], sizes = [32, 8], strides = [1, 1]} : vector<32x128xf32> to vector<32x8xf32>
    %152 = arith.truncf %149 : vector<32x8xf32> to vector<32x8xbf16>
    %153 = arith.truncf %150 : vector<32x8xf32> to vector<32x8xbf16>
    %cst_48 = arith.constant dense<0.000000e+00> : vector<32x32xf32>
    %154 = tpu.matmul %152, %153, %cst_48 {dimension_numbers = #tpu.dot_dimension_numbers<[1], [1], [0], [0], [0, 0, 1, 0], [], []>} : vector<32x8xbf16>, vector<32x8xbf16>, vector<32x32xf32> -> vector<32x32xf32>
    %cst_49 = arith.constant 0.353553385 : f32
    %155 = vector.broadcast %cst_49 : f32 to vector<32x32xf32>
    %156 = arith.mulf %154, %155 : vector<32x32xf32>
    %157 = arith.addf %156, %2 : vector<32x32xf32>
    %cst_50 = arith.constant dense<0xFF800000> : vector<32xf32>
    %158 = vector.multi_reduction <maximumf>, %157, %cst_50 [1] : vector<32x32xf32> to vector<32xf32>
    %159 = vector.shape_cast %158 : vector<32xf32> to vector<32x1xf32>
    %160 = vector.broadcast %159 : vector<32x1xf32> to vector<32x32xf32>
    %161 = arith.subf %157, %160 : vector<32x32xf32>
    %162 = math.exp %161 : vector<32x32xf32>
    %cst_51 = arith.constant dense<0.000000e+00> : vector<32xf32>
    %163 = vector.multi_reduction <add>, %162, %cst_51 [1] : vector<32x32xf32> to vector<32xf32>
    %164 = vector.shape_cast %163 : vector<32xf32> to vector<32x1xf32>
    %165 = tpu.reciprocal %164 {approx = true} : vector<32x1xf32> -> vector<32x1xf32>
    %166 = vector.broadcast %165 : vector<32x1xf32> to vector<32x32xf32>
    %167 = arith.mulf %162, %166 : vector<32x32xf32>
    %168 = arith.truncf %167 : vector<32x32xf32> to vector<32x32xbf16>
    %169 = arith.truncf %151 : vector<32x8xf32> to vector<32x8xbf16>
    %cst_52 = arith.constant dense<0.000000e+00> : vector<32x8xf32>
    %170 = tpu.matmul %168, %169, %cst_52 {dimension_numbers = #tpu.dot_dimension_numbers<[1], [0], [0], [1], [0, 0, 1, 1], [], []>} : vector<32x32xbf16>, vector<32x8xbf16>, vector<32x8xf32> -> vector<32x8xf32>
    %171 = vector.extract_strided_slice %93 {offsets = [16, 0], sizes = [8, 128], strides = [1, 1]} : vector<32x128xf32> to vector<8x128xf32>
    %172 = arith.truncf %170 : vector<32x8xf32> to vector<32x8xbf16>
    %173 = arith.truncf %171 : vector<8x128xf32> to vector<8x128xbf16>
    %cst_53 = arith.constant dense<0.000000e+00> : vector<32x128xf32>
    %174 = tpu.matmul %172, %173, %cst_53 {dimension_numbers = #tpu.dot_dimension_numbers<[1], [0], [0], [1], [0, 0, 1, 1], [], []>} : vector<32x8xbf16>, vector<8x128xbf16>, vector<32x128xf32> -> vector<32x128xf32>
    %175 = arith.addf %148, %174 : vector<32x128xf32>
    %176 = vector.extract_strided_slice %90 {offsets = [0, 24], sizes = [32, 8], strides = [1, 1]} : vector<32x128xf32> to vector<32x8xf32>
    %177 = vector.extract_strided_slice %90 {offsets = [0, 56], sizes = [32, 8], strides = [1, 1]} : vector<32x128xf32> to vector<32x8xf32>
    %178 = vector.extract_strided_slice %90 {offsets = [0, 88], sizes = [32, 8], strides = [1, 1]} : vector<32x128xf32> to vector<32x8xf32>
    %179 = arith.truncf %176 : vector<32x8xf32> to vector<32x8xbf16>
    %180 = arith.truncf %177 : vector<32x8xf32> to vector<32x8xbf16>
    %cst_54 = arith.constant dense<0.000000e+00> : vector<32x32xf32>
    %181 = tpu.matmul %179, %180, %cst_54 {dimension_numbers = #tpu.dot_dimension_numbers<[1], [1], [0], [0], [0, 0, 1, 0], [], []>} : vector<32x8xbf16>, vector<32x8xbf16>, vector<32x32xf32> -> vector<32x32xf32>
    %cst_55 = arith.constant 0.353553385 : f32
    %182 = vector.broadcast %cst_55 : f32 to vector<32x32xf32>
    %183 = arith.mulf %181, %182 : vector<32x32xf32>
    %184 = arith.addf %183, %2 : vector<32x32xf32>
    %cst_56 = arith.constant dense<0xFF800000> : vector<32xf32>
    %185 = vector.multi_reduction <maximumf>, %184, %cst_56 [1] : vector<32x32xf32> to vector<32xf32>
    %186 = vector.shape_cast %185 : vector<32xf32> to vector<32x1xf32>
    %187 = vector.broadcast %186 : vector<32x1xf32> to vector<32x32xf32>
    %188 = arith.subf %184, %187 : vector<32x32xf32>
    %189 = math.exp %188 : vector<32x32xf32>
    %cst_57 = arith.constant dense<0.000000e+00> : vector<32xf32>
    %190 = vector.multi_reduction <add>, %189, %cst_57 [1] : vector<32x32xf32> to vector<32xf32>
    %191 = vector.shape_cast %190 : vector<32xf32> to vector<32x1xf32>
    %192 = tpu.reciprocal %191 {approx = true} : vector<32x1xf32> -> vector<32x1xf32>
    %193 = vector.broadcast %192 : vector<32x1xf32> to vector<32x32xf32>
    %194 = arith.mulf %189, %193 : vector<32x32xf32>
    %195 = arith.truncf %194 : vector<32x32xf32> to vector<32x32xbf16>
    %196 = arith.truncf %178 : vector<32x8xf32> to vector<32x8xbf16>
    %cst_58 = arith.constant dense<0.000000e+00> : vector<32x8xf32>
    %197 = tpu.matmul %195, %196, %cst_58 {dimension_numbers = #tpu.dot_dimension_numbers<[1], [0], [0], [1], [0, 0, 1, 1], [], []>} : vector<32x32xbf16>, vector<32x8xbf16>, vector<32x8xf32> -> vector<32x8xf32>
    %198 = vector.extract_strided_slice %93 {offsets = [24, 0], sizes = [8, 128], strides = [1, 1]} : vector<32x128xf32> to vector<8x128xf32>
    %199 = arith.truncf %197 : vector<32x8xf32> to vector<32x8xbf16>
    %200 = arith.truncf %198 : vector<8x128xf32> to vector<8x128xbf16>
    %cst_59 = arith.constant dense<0.000000e+00> : vector<32x128xf32>
    %201 = tpu.matmul %199, %200, %cst_59 {dimension_numbers = #tpu.dot_dimension_numbers<[1], [0], [0], [1], [0, 0, 1, 1], [], []>} : vector<32x8xbf16>, vector<8x128xbf16>, vector<32x128xf32> -> vector<32x128xf32>
    %202 = arith.addf %175, %201 : vector<32x128xf32>
    %203 = vector.extract_strided_slice %202 {offsets = [0, 0], sizes = [32, 32], strides = [1, 1]} : vector<32x128xf32> to vector<32x32xf32>
    %204 = arith.addf %57, %203 : vector<32x32xf32>
    %205 = vector.extract_strided_slice %3 {offsets = [5, 0], sizes = [1, 32], strides = [1, 1]} : vector<21x32xf32> to vector<1x32xf32>
    %206 = vector.broadcast %205 : vector<1x32xf32> to vector<32x32xf32>
    %207 = arith.addf %204, %206 : vector<32x32xf32>
    %cst_60 = arith.constant dense<0.000000e+00> : vector<32xf32>
    %208 = vector.multi_reduction <add>, %207, %cst_60 [1] : vector<32x32xf32> to vector<32xf32>
    %209 = vector.shape_cast %208 : vector<32xf32> to vector<32x1xf32>
    %cst_61 = arith.constant 3.200000e+01 : f32
    %210 = vector.broadcast %cst_61 : f32 to vector<32x1xf32>
    %211 = arith.divf %209, %210 : vector<32x1xf32>
    %212 = vector.broadcast %211 : vector<32x1xf32> to vector<32x32xf32>
    %213 = arith.subf %207, %212 : vector<32x32xf32>
    %214 = arith.mulf %213, %213 : vector<32x32xf32>
    %cst_62 = arith.constant dense<0.000000e+00> : vector<32xf32>
    %215 = vector.multi_reduction <add>, %214, %cst_62 [1] : vector<32x32xf32> to vector<32xf32>
    %216 = vector.shape_cast %215 : vector<32xf32> to vector<32x1xf32>
    %cst_63 = arith.constant 3.200000e+01 : f32
    %217 = vector.broadcast %cst_63 : f32 to vector<32x1xf32>
    %218 = arith.divf %216, %217 : vector<32x1xf32>
    %219 = vector.broadcast %211 : vector<32x1xf32> to vector<32x32xf32>
    %220 = arith.subf %207, %219 : vector<32x32xf32>
    %cst_64 = arith.constant 9.99999997E-7 : f32
    %221 = vector.broadcast %cst_64 : f32 to vector<32x1xf32>
    %222 = arith.addf %218, %221 : vector<32x1xf32>
    %223 = math.rsqrt %222 : vector<32x1xf32>
    %224 = vector.broadcast %223 : vector<32x1xf32> to vector<32x32xf32>
    %225 = arith.mulf %220, %224 : vector<32x32xf32>
    %226 = vector.extract_strided_slice %3 {offsets = [6, 0], sizes = [1, 32], strides = [1, 1]} : vector<21x32xf32> to vector<1x32xf32>
    %cst_65 = arith.constant 1.000000e+00 : f32
    %227 = vector.broadcast %cst_65 : f32 to vector<1x32xf32>
    %228 = arith.addf %227, %226 : vector<1x32xf32>
    %229 = vector.broadcast %228 : vector<1x32xf32> to vector<32x32xf32>
    %230 = arith.mulf %225, %229 : vector<32x32xf32>
    %231 = vector.extract_strided_slice %3 {offsets = [7, 0], sizes = [1, 32], strides = [1, 1]} : vector<21x32xf32> to vector<1x32xf32>
    %232 = vector.broadcast %231 : vector<1x32xf32> to vector<32x32xf32>
    %233 = arith.addf %230, %232 : vector<32x32xf32>
    %c3 = arith.constant 3 : index
    %c0_66 = arith.constant 0 : index
    %c0_67 = arith.constant 0 : index
    %234 = vector.load %arg7[%c3, %c0_66, %c0_67] : memref<6x32x128xbf16, #tpu.memory_space<vmem>>, vector<1x32x128xbf16>
    %235 = vector.shape_cast %234 : vector<1x32x128xbf16> to vector<32x128xbf16>
    %236 = arith.truncf %233 : vector<32x32xf32> to vector<32x32xbf16>
    %cst_68 = arith.constant dense<0.000000e+00> : vector<32x128xf32>
    %237 = tpu.matmul %236, %235, %cst_68 {dimension_numbers = #tpu.dot_dimension_numbers<[1], [0], [0], [1], [0, 0, 1, 1], [], []>} : vector<32x32xbf16>, vector<32x128xbf16>, vector<32x128xf32> -> vector<32x128xf32>
    %238 = vector.extract_strided_slice %4 {offsets = [3, 0], sizes = [1, 128], strides = [1, 1]} : vector<4x128xf32> to vector<1x128xf32>
    %239 = vector.broadcast %238 : vector<1x128xf32> to vector<32x128xf32>
    %240 = arith.addf %237, %239 : vector<32x128xf32>
    %241 = vector.extract_strided_slice %240 {offsets = [0, 0], sizes = [32, 32], strides = [1, 1]} : vector<32x128xf32> to vector<32x32xf32>
    %242 = vector.extract_strided_slice %240 {offsets = [0, 32], sizes = [32, 32], strides = [1, 1]} : vector<32x128xf32> to vector<32x32xf32>
    %243 = arith.negf %242 : vector<32x32xf32>
    %244 = math.exp %243 : vector<32x32xf32>
    %cst_69 = arith.constant 1.000000e+00 : f32
    %245 = vector.broadcast %cst_69 : f32 to vector<32x32xf32>
    %246 = arith.addf %245, %244 : vector<32x32xf32>
    %247 = arith.divf %245, %246 : vector<32x32xf32>
    %248 = arith.mulf %241, %247 : vector<32x32xf32>
    %249 = vector.broadcast %1 : vector<32x1xf32> to vector<32x32xf32>
    %250 = arith.mulf %248, %249 : vector<32x32xf32>
    %251 = vector.extract_strided_slice %3 {offsets = [18, 0], sizes = [1, 32], strides = [1, 1]} : vector<21x32xf32> to vector<1x32xf32>
    %252 = vector.broadcast %251 : vector<1x32xf32> to vector<32x32xf32>
    %253 = arith.mulf %250, %252 : vector<32x32xf32>
    %c0_70 = arith.constant 0 : index
    %c0_71 = arith.constant 0 : index
    %c0_72 = arith.constant 0 : index
    %254 = vector.load %arg4[%c0_70, %c0_71, %c0_72] : memref<4x32x32xf32, #tpu.memory_space<vmem>>, vector<1x32x32xf32>
    %255 = vector.shape_cast %254 : vector<1x32x32xf32> to vector<32x32xf32>
    %cst_73 = arith.constant dense<0.000000e+00> : vector<32x32xf32>
    %256 = tpu.matmul %255, %250, %cst_73 {dimension_numbers = #tpu.dot_dimension_numbers<[1], [0], [0], [1], [0, 0, 1, 1], [], []>} : vector<32x32xf32>, vector<32x32xf32>, vector<32x32xf32> -> vector<32x32xf32>
    %257 = vector.extract_strided_slice %3 {offsets = [16, 0], sizes = [1, 32], strides = [1, 1]} : vector<21x32xf32> to vector<1x32xf32>
    %258 = vector.broadcast %257 : vector<1x32xf32> to vector<32x32xf32>
    %259 = arith.mulf %256, %258 : vector<32x32xf32>
    %260 = arith.addf %253, %259 : vector<32x32xf32>
    %c1_74 = arith.constant 1 : index
    %c0_75 = arith.constant 0 : index
    %c0_76 = arith.constant 0 : index
    %261 = vector.load %arg4[%c1_74, %c0_75, %c0_76] : memref<4x32x32xf32, #tpu.memory_space<vmem>>, vector<1x32x32xf32>
    %262 = vector.shape_cast %261 : vector<1x32x32xf32> to vector<32x32xf32>
    %cst_77 = arith.constant dense<0.000000e+00> : vector<32x32xf32>
    %263 = tpu.matmul %262, %250, %cst_77 {dimension_numbers = #tpu.dot_dimension_numbers<[1], [0], [0], [1], [0, 0, 1, 1], [], []>} : vector<32x32xf32>, vector<32x32xf32>, vector<32x32xf32> -> vector<32x32xf32>
    %264 = vector.extract_strided_slice %3 {offsets = [17, 0], sizes = [1, 32], strides = [1, 1]} : vector<21x32xf32> to vector<1x32xf32>
    %265 = vector.broadcast %264 : vector<1x32xf32> to vector<32x32xf32>
    %266 = arith.mulf %263, %265 : vector<32x32xf32>
    %267 = arith.addf %260, %266 : vector<32x32xf32>
    %c2_78 = arith.constant 2 : index
    %c0_79 = arith.constant 0 : index
    %c0_80 = arith.constant 0 : index
    %268 = vector.load %arg4[%c2_78, %c0_79, %c0_80] : memref<4x32x32xf32, #tpu.memory_space<vmem>>, vector<1x32x32xf32>
    %269 = vector.shape_cast %268 : vector<1x32x32xf32> to vector<32x32xf32>
    %cst_81 = arith.constant dense<0.000000e+00> : vector<32x32xf32>
    %270 = tpu.matmul %269, %250, %cst_81 {dimension_numbers = #tpu.dot_dimension_numbers<[1], [0], [0], [1], [0, 0, 1, 1], [], []>} : vector<32x32xf32>, vector<32x32xf32>, vector<32x32xf32> -> vector<32x32xf32>
    %271 = vector.extract_strided_slice %3 {offsets = [19, 0], sizes = [1, 32], strides = [1, 1]} : vector<21x32xf32> to vector<1x32xf32>
    %272 = vector.broadcast %271 : vector<1x32xf32> to vector<32x32xf32>
    %273 = arith.mulf %270, %272 : vector<32x32xf32>
    %274 = arith.addf %267, %273 : vector<32x32xf32>
    %c3_82 = arith.constant 3 : index
    %c0_83 = arith.constant 0 : index
    %c0_84 = arith.constant 0 : index
    %275 = vector.load %arg4[%c3_82, %c0_83, %c0_84] : memref<4x32x32xf32, #tpu.memory_space<vmem>>, vector<1x32x32xf32>
    %276 = vector.shape_cast %275 : vector<1x32x32xf32> to vector<32x32xf32>
    %cst_85 = arith.constant dense<0.000000e+00> : vector<32x32xf32>
    %277 = tpu.matmul %276, %250, %cst_85 {dimension_numbers = #tpu.dot_dimension_numbers<[1], [0], [0], [1], [0, 0, 1, 1], [], []>} : vector<32x32xf32>, vector<32x32xf32>, vector<32x32xf32> -> vector<32x32xf32>
    %278 = vector.extract_strided_slice %3 {offsets = [20, 0], sizes = [1, 32], strides = [1, 1]} : vector<21x32xf32> to vector<1x32xf32>
    %279 = vector.broadcast %278 : vector<1x32xf32> to vector<32x32xf32>
    %280 = arith.mulf %277, %279 : vector<32x32xf32>
    %281 = arith.addf %274, %280 : vector<32x32xf32>
    %282 = vector.extract_strided_slice %3 {offsets = [8, 0], sizes = [1, 32], strides = [1, 1]} : vector<21x32xf32> to vector<1x32xf32>
    %283 = vector.broadcast %282 : vector<1x32xf32> to vector<32x32xf32>
    %284 = arith.mulf %281, %283 : vector<32x32xf32>
    %285 = vector.extract_strided_slice %3 {offsets = [9, 0], sizes = [1, 32], strides = [1, 1]} : vector<21x32xf32> to vector<1x32xf32>
    %286 = vector.broadcast %285 : vector<1x32xf32> to vector<32x32xf32>
    %287 = arith.addf %284, %286 : vector<32x32xf32>
    %288 = vector.broadcast %1 : vector<32x1xf32> to vector<32x32xf32>
    %289 = arith.mulf %287, %288 : vector<32x32xf32>
    %290 = arith.negf %289 : vector<32x32xf32>
    %291 = math.exp %290 : vector<32x32xf32>
    %cst_86 = arith.constant 1.000000e+00 : f32
    %292 = vector.broadcast %cst_86 : f32 to vector<32x32xf32>
    %293 = arith.addf %292, %291 : vector<32x32xf32>
    %294 = arith.divf %292, %293 : vector<32x32xf32>
    %295 = arith.mulf %289, %294 : vector<32x32xf32>
    %c4 = arith.constant 4 : index
    %c0_87 = arith.constant 0 : index
    %c0_88 = arith.constant 0 : index
    %296 = vector.load %arg7[%c4, %c0_87, %c0_88] : memref<6x32x128xbf16, #tpu.memory_space<vmem>>, vector<1x32x128xbf16>
    %297 = vector.shape_cast %296 : vector<1x32x128xbf16> to vector<32x128xbf16>
    %298 = arith.truncf %295 : vector<32x32xf32> to vector<32x32xbf16>
    %cst_89 = arith.constant dense<0.000000e+00> : vector<32x128xf32>
    %299 = tpu.matmul %298, %297, %cst_89 {dimension_numbers = #tpu.dot_dimension_numbers<[1], [0], [0], [1], [0, 0, 1, 1], [], []>} : vector<32x32xbf16>, vector<32x128xbf16>, vector<32x128xf32> -> vector<32x128xf32>
    %300 = vector.extract_strided_slice %299 {offsets = [0, 0], sizes = [32, 32], strides = [1, 1]} : vector<32x128xf32> to vector<32x32xf32>
    %301 = arith.addf %207, %300 : vector<32x32xf32>
    %302 = vector.extract_strided_slice %3 {offsets = [10, 0], sizes = [1, 32], strides = [1, 1]} : vector<21x32xf32> to vector<1x32xf32>
    %303 = vector.broadcast %302 : vector<1x32xf32> to vector<32x32xf32>
    %304 = arith.addf %301, %303 : vector<32x32xf32>
    %cst_90 = arith.constant dense<0.000000e+00> : vector<32xf32>
    %305 = vector.multi_reduction <add>, %304, %cst_90 [1] : vector<32x32xf32> to vector<32xf32>
    %306 = vector.shape_cast %305 : vector<32xf32> to vector<32x1xf32>
    %cst_91 = arith.constant 3.200000e+01 : f32
    %307 = vector.broadcast %cst_91 : f32 to vector<32x1xf32>
    %308 = arith.divf %306, %307 : vector<32x1xf32>
    %309 = vector.broadcast %308 : vector<32x1xf32> to vector<32x32xf32>
    %310 = arith.subf %304, %309 : vector<32x32xf32>
    %311 = arith.mulf %310, %310 : vector<32x32xf32>
    %cst_92 = arith.constant dense<0.000000e+00> : vector<32xf32>
    %312 = vector.multi_reduction <add>, %311, %cst_92 [1] : vector<32x32xf32> to vector<32xf32>
    %313 = vector.shape_cast %312 : vector<32xf32> to vector<32x1xf32>
    %cst_93 = arith.constant 3.200000e+01 : f32
    %314 = vector.broadcast %cst_93 : f32 to vector<32x1xf32>
    %315 = arith.divf %313, %314 : vector<32x1xf32>
    %316 = vector.broadcast %308 : vector<32x1xf32> to vector<32x32xf32>
    %317 = arith.subf %304, %316 : vector<32x32xf32>
    %cst_94 = arith.constant 9.99999997E-7 : f32
    %318 = vector.broadcast %cst_94 : f32 to vector<32x1xf32>
    %319 = arith.addf %315, %318 : vector<32x1xf32>
    %320 = math.rsqrt %319 : vector<32x1xf32>
    %321 = vector.broadcast %320 : vector<32x1xf32> to vector<32x32xf32>
    %322 = arith.mulf %317, %321 : vector<32x32xf32>
    %323 = vector.extract_strided_slice %3 {offsets = [11, 0], sizes = [1, 32], strides = [1, 1]} : vector<21x32xf32> to vector<1x32xf32>
    %cst_95 = arith.constant 1.000000e+00 : f32
    %324 = vector.broadcast %cst_95 : f32 to vector<1x32xf32>
    %325 = arith.addf %324, %323 : vector<1x32xf32>
    %326 = vector.broadcast %325 : vector<1x32xf32> to vector<32x32xf32>
    %327 = arith.mulf %322, %326 : vector<32x32xf32>
    %328 = vector.extract_strided_slice %3 {offsets = [12, 0], sizes = [1, 32], strides = [1, 1]} : vector<21x32xf32> to vector<1x32xf32>
    %329 = vector.broadcast %328 : vector<1x32xf32> to vector<32x32xf32>
    %330 = arith.addf %327, %329 : vector<32x32xf32>
    %c5 = arith.constant 5 : index
    %c0_96 = arith.constant 0 : index
    %c0_97 = arith.constant 0 : index
    %331 = vector.load %arg7[%c5, %c0_96, %c0_97] : memref<6x32x128xbf16, #tpu.memory_space<vmem>>, vector<1x32x128xbf16>
    %332 = vector.shape_cast %331 : vector<1x32x128xbf16> to vector<32x128xbf16>
    %333 = arith.truncf %330 : vector<32x32xf32> to vector<32x32xbf16>
    %cst_98 = arith.constant dense<0.000000e+00> : vector<32x128xf32>
    %334 = tpu.matmul %333, %332, %cst_98 {dimension_numbers = #tpu.dot_dimension_numbers<[1], [0], [0], [1], [0, 0, 1, 1], [], []>} : vector<32x32xbf16>, vector<32x128xbf16>, vector<32x128xf32> -> vector<32x128xf32>
    %335 = vector.extract_strided_slice %4 {offsets = [1, 0], sizes = [1, 128], strides = [1, 1]} : vector<4x128xf32> to vector<1x128xf32>
    %336 = vector.broadcast %335 : vector<1x128xf32> to vector<32x128xf32>
    %337 = arith.addf %334, %336 : vector<32x128xf32>
    %338 = arith.negf %337 : vector<32x128xf32>
    %339 = math.exp %338 : vector<32x128xf32>
    %cst_99 = arith.constant 1.000000e+00 : f32
    %340 = vector.broadcast %cst_99 : f32 to vector<32x128xf32>
    %341 = arith.addf %340, %339 : vector<32x128xf32>
    %342 = arith.divf %340, %341 : vector<32x128xf32>
    %343 = arith.mulf %337, %342 : vector<32x128xf32>
    %344 = vector.broadcast %1 : vector<32x1xf32> to vector<32x128xf32>
    %345 = arith.mulf %343, %344 : vector<32x128xf32>
    %c1_100 = arith.constant 1 : index
    %c0_101 = arith.constant 0 : index
    %c0_102 = arith.constant 0 : index
    %346 = vector.load %arg8[%c1_100, %c0_101, %c0_102] : memref<2x128x32xbf16, #tpu.memory_space<vmem>>, vector<1x128x32xbf16>
    %347 = vector.shape_cast %346 : vector<1x128x32xbf16> to vector<128x32xbf16>
    %348 = arith.truncf %345 : vector<32x128xf32> to vector<32x128xbf16>
    %cst_103 = arith.constant dense<0.000000e+00> : vector<32x32xf32>
    %349 = tpu.matmul %348, %347, %cst_103 {dimension_numbers = #tpu.dot_dimension_numbers<[1], [0], [0], [1], [0, 0, 1, 1], [], []>} : vector<32x128xbf16>, vector<128x32xbf16>, vector<32x32xf32> -> vector<32x32xf32>
    %350 = vector.extract_strided_slice %3 {offsets = [13, 0], sizes = [1, 32], strides = [1, 1]} : vector<21x32xf32> to vector<1x32xf32>
    %351 = vector.broadcast %350 : vector<1x32xf32> to vector<32x32xf32>
    %352 = arith.addf %349, %351 : vector<32x32xf32>
    %353 = vector.broadcast %1 : vector<32x1xf32> to vector<32x32xf32>
    %354 = arith.mulf %352, %353 : vector<32x32xf32>
    %cst_104 = arith.constant 5.000000e-01 : f32
    %355 = vector.broadcast %cst_104 : f32 to vector<32x32xf32>
    %356 = arith.mulf %355, %354 : vector<32x32xf32>
    %357 = arith.addf %304, %356 : vector<32x32xf32>
    %cst_105 = arith.constant dense<0.000000e+00> : vector<32xf32>
    %358 = vector.multi_reduction <add>, %357, %cst_105 [1] : vector<32x32xf32> to vector<32xf32>
    %359 = vector.shape_cast %358 : vector<32xf32> to vector<32x1xf32>
    %cst_106 = arith.constant 3.200000e+01 : f32
    %360 = vector.broadcast %cst_106 : f32 to vector<32x1xf32>
    %361 = arith.divf %359, %360 : vector<32x1xf32>
    %362 = vector.broadcast %361 : vector<32x1xf32> to vector<32x32xf32>
    %363 = arith.subf %357, %362 : vector<32x32xf32>
    %364 = arith.mulf %363, %363 : vector<32x32xf32>
    %cst_107 = arith.constant dense<0.000000e+00> : vector<32xf32>
    %365 = vector.multi_reduction <add>, %364, %cst_107 [1] : vector<32x32xf32> to vector<32xf32>
    %366 = vector.shape_cast %365 : vector<32xf32> to vector<32x1xf32>
    %cst_108 = arith.constant 3.200000e+01 : f32
    %367 = vector.broadcast %cst_108 : f32 to vector<32x1xf32>
    %368 = arith.divf %366, %367 : vector<32x1xf32>
    %369 = vector.broadcast %361 : vector<32x1xf32> to vector<32x32xf32>
    %370 = arith.subf %357, %369 : vector<32x32xf32>
    %cst_109 = arith.constant 9.99999997E-7 : f32
    %371 = vector.broadcast %cst_109 : f32 to vector<32x1xf32>
    %372 = arith.addf %368, %371 : vector<32x1xf32>
    %373 = math.rsqrt %372 : vector<32x1xf32>
    %374 = vector.broadcast %373 : vector<32x1xf32> to vector<32x32xf32>
    %375 = arith.mulf %370, %374 : vector<32x32xf32>
    %376 = vector.extract_strided_slice %3 {offsets = [14, 0], sizes = [1, 32], strides = [1, 1]} : vector<21x32xf32> to vector<1x32xf32>
    %cst_110 = arith.constant 1.000000e+00 : f32
    %377 = vector.broadcast %cst_110 : f32 to vector<1x32xf32>
    %378 = arith.addf %377, %376 : vector<1x32xf32>
    %379 = vector.broadcast %378 : vector<1x32xf32> to vector<32x32xf32>
    %380 = arith.mulf %375, %379 : vector<32x32xf32>
    %381 = vector.extract_strided_slice %3 {offsets = [15, 0], sizes = [1, 32], strides = [1, 1]} : vector<21x32xf32> to vector<1x32xf32>
    %382 = vector.broadcast %381 : vector<1x32xf32> to vector<32x32xf32>
    %383 = arith.addf %380, %382 : vector<32x32xf32>
    %c0_111 = arith.constant 0 : index
    %c0_112 = arith.constant 0 : index
    %384 = vector.load %arg9[%c0_111, %c0_112] : memref<32x32xf32, #tpu.memory_space<vmem>>, vector<32x32xf32>
    tpu.vector_store %arg9[%c0_111, %c0_112], %383 {strides = array<i32>} : memref<32x32xf32, #tpu.memory_space<vmem>>, vector<32x32xf32>,
    return
  }
  func.func @transform_0(%arg0: i32) -> (i32, i32) {
    %c0_i32 = arith.constant 0 : i32
    %c0_i32_0 = arith.constant 0 : i32
    %c0_i32_1 = arith.constant 0 : i32
    return %c0_i32, %c0_i32_0 : i32, i32
  }
  func.func @transform_1(%arg0: i32) -> (i32, i32) {
    %c0_i32 = arith.constant 0 : i32
    %c0_i32_0 = arith.constant 0 : i32
    %c0_i32_1 = arith.constant 0 : i32
    return %c0_i32, %c0_i32_0 : i32, i32
  }
  func.func @transform_2(%arg0: i32) -> (i32, i32) {
    %c0_i32 = arith.constant 0 : i32
    %c0_i32_0 = arith.constant 0 : i32
    %c0_i32_1 = arith.constant 0 : i32
    return %c0_i32, %c0_i32_0 : i32, i32
  }
  func.func @transform_3(%arg0: i32) -> (i32, i32, i32) {
    %c0_i32 = arith.constant 0 : i32
    %c0_i32_0 = arith.constant 0 : i32
    %c0_i32_1 = arith.constant 0 : i32
    %c0_i32_2 = arith.constant 0 : i32
    return %c0_i32, %c0_i32_0, %c0_i32_1 : i32, i32, i32
  }
  func.func @transform_4(%arg0: i32) -> (i32, i32) {
    %c0_i32 = arith.constant 0 : i32
    %c0_i32_0 = arith.constant 0 : i32
    %c0_i32_1 = arith.constant 0 : i32
    return %c0_i32, %c0_i32_0 : i32, i32
  }
  func.func @transform_5(%arg0: i32) -> (i32, i32) {
    %c0_i32 = arith.constant 0 : i32
    %c0_i32_0 = arith.constant 0 : i32
    %c0_i32_1 = arith.constant 0 : i32
    return %c0_i32, %c0_i32_0 : i32, i32
  }
  func.func @transform_6(%arg0: i32) -> (i32, i32, i32) {
    %c0_i32 = arith.constant 0 : i32
    %c0_i32_0 = arith.constant 0 : i32
    %c0_i32_1 = arith.constant 0 : i32
    %c0_i32_2 = arith.constant 0 : i32
    return %c0_i32, %c0_i32_0, %c0_i32_1 : i32, i32, i32
  }
  func.func @transform_7(%arg0: i32) -> (i32, i32, i32) {
    %c0_i32 = arith.constant 0 : i32
    %c0_i32_0 = arith.constant 0 : i32
    %c0_i32_1 = arith.constant 0 : i32
    %c0_i32_2 = arith.constant 0 : i32
    return %c0_i32, %c0_i32_0, %c0_i32_1 : i32, i32, i32
  }
  func.func @transform_8(%arg0: i32) -> (i32, i32) {
    %c0_i32 = arith.constant 0 : i32
    %c0_i32_0 = arith.constant 0 : i32
    %c0_i32_1 = arith.constant 0 : i32
    return %c0_i32, %c0_i32_0 : i32, i32
  }
}

</mosaic_0001>

<llo_original>
// kernel: conformer_block_pallas.1
$region0: #{conformer_block_pallas.1}
  #allocation0 [shape = 'u32[]', space=smem, size = 0x4, offset = 0x4, fixed_abs, tag = 'smem constant byte address 0x4 - core index']
  #allocation1 [shape = 'u32[144,128]{1,0:T(1,128)}', space=vmem, size = 0x12000, scoped, tag = 'internal scratch']
  %s0 = inlined_call_operand.vmem [shape: f32[32,32], index: 0, kind: input, shape index: {}]
  %s1 = inlined_call_operand.vmem [shape: f32[32,1], index: 1, kind: input, shape index: {}]
  %s2 = inlined_call_operand.vmem [shape: f32[32,32], index: 2, kind: input, shape index: {}]
  %s3 = inlined_call_operand.vmem [shape: f32[4,32,32], index: 3, kind: input, shape index: {}]
  %s4 = inlined_call_operand.vmem [shape: f32[21,32], index: 4, kind: input, shape index: {}]
  %s5 = inlined_call_operand.vmem [shape: f32[4,128], index: 5, kind: input, shape index: {}]
  %s6 = inlined_call_operand.vmem [shape: bf16[6,32,128], index: 6, kind: input, shape index: {}]
  %s7 = inlined_call_operand.vmem [shape: bf16[2,128,32], index: 7, kind: input, shape index: {}]
  %s8 = inlined_call_operand.hbm [shape: f32[32,32], index: 8, kind: output, shape index: {}]
  %s9 = sld [smem:[#allocation0]]
  $region42: #{conformer_block_pallas.1} parent=0
    _
  %s11 = ssub.s32 1, %s9
  %s12 = scalar_select 0, %s11, %s9
  $region1: #{conformer_block_pallas.1} parent=0
    #allocation2 [shape = 'u8[16384]{0}', space=vmem, size = 0x4000, scoped, tag = 'output window, operand 0, single buffered']
    #allocation3 [shape = 's32[1]{0}', space=sflag, size = 0x4, scoped, tag = 'scoped memory for conformer_block_pallas.1']
    %13 = vsyncpa [#allocation3], 0
    // Predicated region
    $region2: #{conformer_block_pallas.1} parent=1 // pred_check
      _
    $region3: #{conformer_block_pallas.1} parent=1 // pred_check_branch
      %15 = sbr.rel (0) target = $region5
    $region4: #{conformer_block_pallas.1} parent=1 // pred_region
      _
    $region5: #{conformer_block_pallas.1} parent=1 // pred_fallthru
      _
    // Predicated region
    $region6: #{conformer_block_pallas.1} parent=1 // pred_check
      _
    $region7: #{conformer_block_pallas.1} parent=1 // pred_check_branch
      %17 = sbr.rel (0) target = $region9
    $region8: #{conformer_block_pallas.1} parent=1 // pred_region
      _
    $region9: #{conformer_block_pallas.1} parent=1 // pred_fallthru
      _
    // Predicated region
    $region10: #{conformer_block_pallas.1} parent=1 // pred_check
      _
    $region11: #{conformer_block_pallas.1} parent=1 // pred_check_branch
      %19 = sbr.rel (0) target = $region13
    $region12: #{conformer_block_pallas.1} parent=1 // pred_region
      _
    $region13: #{conformer_block_pallas.1} parent=1 // pred_fallthru
      _
    // Predicated region
    $region14: #{conformer_block_pallas.1} parent=1 // pred_check
      _
    $region15: #{conformer_block_pallas.1} parent=1 // pred_check_branch
      %21 = sbr.rel (0) target = $region17
    $region16: #{conformer_block_pallas.1} parent=1 // pred_region
      _
    $region17: #{conformer_block_pallas.1} parent=1 // pred_fallthru
      _
    // Predicated region
    $region18: #{conformer_block_pallas.1} parent=1 // pred_check
      _
    $region19: #{conformer_block_pallas.1} parent=1 // pred_check_branch
      %23 = sbr.rel (0) target = $region21
    $region20: #{conformer_block_pallas.1} parent=1 // pred_region
      _
    $region21: #{conformer_block_pallas.1} parent=1 // pred_fallthru
      _
    // Predicated region
    $region22: #{conformer_block_pallas.1} parent=1 // pred_check
      _
    $region23: #{conformer_block_pallas.1} parent=1 // pred_check_branch
      %25 = sbr.rel (0) target = $region25
    $region24: #{conformer_block_pallas.1} parent=1 // pred_region
      _
    $region25: #{conformer_block_pallas.1} parent=1 // pred_fallthru
      _
    // Predicated region
    $region26: #{conformer_block_pallas.1} parent=1 // pred_check
      _
    $region27: #{conformer_block_pallas.1} parent=1 // pred_check_branch
      %27 = sbr.rel (0) target = $region29
    $region28: #{conformer_block_pallas.1} parent=1 // pred_region
      _
    $region29: #{conformer_block_pallas.1} parent=1 // pred_fallthru
      _
    // Predicated region
    $region30: #{conformer_block_pallas.1} parent=1 // pred_check
      _
    $region31: #{conformer_block_pallas.1} parent=1 // pred_check_branch
      %29 = sbr.rel (0) target = $region33
    $region32: #{conformer_block_pallas.1} parent=1 // pred_region
      _
    $region33: #{conformer_block_pallas.1} parent=1 // pred_fallthru
      _
    %v31 = vld [vmem:[%s0] sm:$0xff]
    %v32 = vld [vmem:[%s0 + $0x8] sm:$0xff]
    %v33 = vld [vmem:[%s0 + $0x10] sm:$0xff]
    %v34 = vld [vmem:[%s0 + $0x18] sm:$0xff]
    %v35 = vld [vmem:[%s1] sm:$0xff]
    %v36 = vld [vmem:[%s1 + $0x8] sm:$0xff]
    %v37 = vld [vmem:[%s1 + $0x10] sm:$0xff]
    %v38 = vld [vmem:[%s1 + $0x18] sm:$0xff]
    %v39 = vld [vmem:[%s2] sm:$0xff]
    %v40 = vld [vmem:[%s2 + $0x8] sm:$0xff]
    %v41 = vld [vmem:[%s2 + $0x10] sm:$0xff]
    %v42 = vld [vmem:[%s2 + $0x18] sm:$0xff]
    %v43 = vld [vmem:[%s4] sm:$0xff]
    %v44 = vld [vmem:[%s4 + $0x8] sm:$0xff]
    %v45 = vld [vmem:[%s4 + $0x10] sm:$0x1f]
    %v46 = vld [vmem:[%s5] sm:$0xf]
    %vm47 = vcmask 261120
    %v48 = vsel %vm47, %v31, 0.0
    %49 = vadd.xlane.f32.xlu0 %v48
    %v50 = vpop.xlane.xlu0 %49
    %v51 = vsel %vm47, %v32, 0.0
    %52 = vadd.xlane.f32.xlu0 %v51
    %v53 = vpop.xlane.xlu0 %52
    %v54 = vsel %vm47, %v33, 0.0
    %55 = vadd.xlane.f32.xlu0 %v54
    %v56 = vpop.xlane.xlu0 %55
    %v57 = vsel %vm47, %v34, 0.0
    %58 = vadd.xlane.f32.xlu0 %v57
    %v59 = vpop.xlane.xlu0 %58
    %v60 = vrcp.pop 32.0
    %v61 = vmul.f32 %v50, %v60
    %v62 = vmul.f32 %v53, %v60
    %v63 = vmul.f32 %v56, %v60
    %v64 = vmul.f32 %v59, %v60
    %v65 = vsub.f32 %v31, %v61
    %v66 = vsub.f32 %v32, %v62
    %v67 = vsub.f32 %v33, %v63
    %v68 = vsub.f32 %v34, %v64
    %v69 = vmul.f32 %v65, %v65
    %v70 = vmul.f32 %v66, %v66
    %v71 = vmul.f32 %v67, %v67
    %v72 = vmul.f32 %v68, %v68
    %v73 = vsel %vm47, %v69, 0.0
    %74 = vadd.xlane.f32.xlu0 %v73
    %v75 = vpop.xlane.xlu0 %74
    %v76 = vsel %vm47, %v70, 0.0
    %77 = vadd.xlane.f32.xlu0 %v76
    %v78 = vpop.xlane.xlu0 %77
    %v79 = vsel %vm47, %v71, 0.0
    %80 = vadd.xlane.f32.xlu0 %v79
    %v81 = vpop.xlane.xlu0 %80
    %v82 = vsel %vm47, %v72, 0.0
    %83 = vadd.xlane.f32.xlu0 %v82
    %v84 = vpop.xlane.xlu0 %83
    %v85 = vmul.f32 %v75, %v60
    %v86 = vmul.f32 %v78, %v60
    %v87 = vmul.f32 %v81, %v60
    %v88 = vmul.f32 %v84, %v60
    %v89 = vadd.f32 %v85, 1e-06
    %v90 = vadd.f32 %v86, 1e-06
    %v91 = vadd.f32 %v87, 1e-06
    %v92 = vadd.f32 %v88, 1e-06
    %v93 = vrsqrt.pop %v89
    %v94 = vrsqrt.pop %v90
    %v95 = vrsqrt.pop %v91
    %v96 = vrsqrt.pop %v92
    %v97 = vmul.f32 %v65, %v93
    %v98 = vmul.f32 %v66, %v94
    %v99 = vmul.f32 %v67, %v95
    %v100 = vmul.f32 %v68, %v96
    %v101 = vadd.f32 %v43, 1.0
    %v102 = vlaneseq
    %v103 = vshrl.u32 %v102, 7
    %v104 = vsub.s32 0, %v103
    %v105 = vrot.slane %v101, %v104
    %v106 = vmul.f32 %v97, %v105
    %v107 = vmul.f32 %v98, %v105
    %v108 = vmul.f32 %v99, %v105
    %v109 = vmul.f32 %v100, %v105
    %v110 = vlaneseq
    %v111 = vshrl.u32 %v110, 7
    %v112 = vsub.s32 1, %v111
    %v113 = vrot.slane %v43, %v112
    %v114 = vadd.f32 %v106, %v113
    %v115 = vadd.f32 %v107, %v113
    %v116 = vadd.f32 %v108, %v113
    %v117 = vadd.f32 %v109, %v113
    %v118 = vld [vmem:[%s6] sm:$0xf]
    %v119 = vld [vmem:[%s6 + $0x4] sm:$0xf]
    %v120 = vld [vmem:[%s6 + $0x8] sm:$0xf]
    %v121 = vld [vmem:[%s6 + $0xc] sm:$0xf]
    %v122 = vpack.c.bf16 %v115, %v114
    %v123 = vpack.c.bf16 %v117, %v116
    %v124 = vlaneseq
    %v125 = vshrl.u32 %v124, 7
    %v126 = vsub.s32 0, %v125
    %v127 = vrot.slane %v46, %v126
    %v132 = vunpack.c.l.b16 %v118
    %v133 = vunpack.c.l.b16 %v119
    %v134 = vunpack.c.l.b16 %v120
    %v135 = vunpack.c.l.b16 %v121
    %v136 = vpack.c.b16 %v133, %v132
    %v137 = vpack.c.b16 %v135, %v134
    %v141 = vsel %vm47, %v122, 0
    %v144 = vsel %vm47, %v123, 0
    %146 = vmatprep.subr.bf16.mxu0 0
    %147 = vmatpush1.bf16.msra.mxu0 0
    %148 = vmatprep.subr.bf16.mxu0 0
    %149 = vmatpush1.bf16.msra.mxu0 0
    %150 = vmatprep.subr.bf16.mxu0 0
    %151 = vmatpush1.bf16.msra.mxu0 0
    %152 = vmatprep.subr.bf16.mxu0 0
    %153 = vmatpush1.bf16.msra.mxu0 0
    %154 = vmatprep.subr.bf16.mxu0 0
    %155 = vmatpush1.bf16.msra.mxu0 0
    %156 = vmatprep.subr.bf16.mxu0 0
    %157 = vmatpush1.bf16.msra.mxu0 0
    %158 = vmatprep.subr.bf16.mxu0 0
    %159 = vmatpush1.bf16.msra.mxu0 %v137
    %160 = vmatprep.subr.bf16.mxu0 0
    %161 = vmatpush1.bf16.msra.mxu0 %v136
    %162 = vmatprep.subr.bf16.mxu0 0
    %163 = vmatpush2.bf16.msra.mxu0 0
    %164 = vmatprep.subr.bf16.mxu0 0
    %165 = vmatpush2.bf16.msra.mxu0 0
    %166 = vmatprep.subr.bf16.mxu0 0
    %167 = vmatpush2.bf16.msra.mxu0 0
    %168 = vmatprep.subr.bf16.mxu0 0
    %169 = vmatpush2.bf16.msra.mxu0 0
    %170 = vmatprep.subr.bf16.mxu0 0
    %171 = vmatpush2.bf16.msra.mxu0 0
    %172 = vmatprep.subr.bf16.mxu0 0
    %173 = vmatpush2.bf16.msra.mxu0 0
    %174 = vmatprep.subr.bf16.mxu0 0
    %175 = vmatpush2.bf16.msra.mxu0 0
    %176 = vmatprep.subr.bf16.mxu0 0
    %177 = vmatpush2.bf16.msra.mxu0 0
    %178 = vmatprep.mubr.bf16.mxu0 0
    %179 = vmatmul.mubr.bf16.gmra.mxu0 %v141
    %v180 = vpop.f32.mrf.mxu0
    %v181 = vadd.f32 %v127, %v180
    %v182 = vpop.f32.mrf.mxu0
    %v183 = vpop.f32.mrf.mxu0
    %v184 = vadd.f32 %v127, %v183
    %v185 = vpop.f32.mrf.mxu0
    %186 = vmatprep.mubr.bf16.mxu0 0
    %187 = vmatmul.mubr.bf16.gmra.mxu0 %v144
    %v188 = vpop.f32.mrf.mxu0
    %v189 = vadd.f32 %v127, %v188
    %v190 = vpop.f32.mrf.mxu0
    %v191 = vpop.f32.mrf.mxu0
    %v192 = vadd.f32 %v127, %v191
    %v193 = vpop.f32.mrf.mxu0
    %194 = vdwg.mxu0
    %v195 = vxor.u32 %v181, 2147483648
    %v196 = vxor.u32 %v184, 2147483648
    %v197 = vxor.u32 %v189, 2147483648
    %v198 = vxor.u32 %v192, 2147483648
    %v199 = vmul.f32 %v195, 1.442695
    %v200 = vpow.pop %v199
    %v201 = vmul.f32 %v196, 1.442695
    %v202 = vpow.pop %v201
    %v203 = vmul.f32 %v197, 1.442695
    %v204 = vpow.pop %v203
    %v205 = vmul.f32 %v198, 1.442695
    %v206 = vpow.pop %v205
    %v207 = vadd.f32 %v200, 1.0
    %v208 = vadd.f32 %v202, 1.0
    %v209 = vadd.f32 %v204, 1.0
    %v210 = vadd.f32 %v206, 1.0
    %v211 = vrcp.pop %v207
    %v212 = vmul.f32 1.0, %v211
    %v213 = vrcp.pop %v208
    %v214 = vmul.f32 1.0, %v213
    %v215 = vrcp.pop %v209
    %v216 = vmul.f32 1.0, %v215
    %v217 = vrcp.pop %v210
    %v218 = vmul.f32 1.0, %v217
    %v219 = vmul.f32 %v181, %v212
    %v220 = vmul.f32 %v184, %v214
    %v221 = vmul.f32 %v189, %v216
    %v222 = vmul.f32 %v192, %v218
    %224 = vset.pattern.permute.xlu0 0
    %225 = vperm.xlu0 %224, %v35
    %v226 = vpop.permute.xlu0 %225
    %229 = vset.pattern.permute.xlu0 0
    %230 = vperm.xlu0 %229, %v36
    %v231 = vpop.permute.xlu0 %230
    %234 = vset.pattern.permute.xlu0 0
    %235 = vperm.xlu0 %234, %v37
    %v236 = vpop.permute.xlu0 %235
    %239 = vset.pattern.permute.xlu0 0
    %240 = vperm.xlu0 %239, %v38
    %v241 = vpop.permute.xlu0 %240
    %v243 = vmul.f32 %v219, %v226
    %v244 = vmul.f32 %v220, %v231
    %v245 = vmul.f32 %v221, %v236
    %v246 = vmul.f32 %v222, %v241
    %v247 = vld [vmem:[%s7] sm:$0xf]
    %v248 = vld [vmem:[%s7 + $0x4] sm:$0xf]
    %v249 = vld [vmem:[%s7 + $0x8] sm:$0xf]
    %v250 = vld [vmem:[%s7 + $0xc] sm:$0xf]
    %v251 = vld [vmem:[%s7 + $0x10] sm:$0xf]
    %v252 = vld [vmem:[%s7 + $0x14] sm:$0xf]
    %v253 = vld [vmem:[%s7 + $0x18] sm:$0xf]
    %v254 = vld [vmem:[%s7 + $0x1c] sm:$0xf]
    %v255 = vld [vmem:[%s7 + $0x20] sm:$0xf]
    %v256 = vld [vmem:[%s7 + $0x24] sm:$0xf]
    %v257 = vld [vmem:[%s7 + $0x28] sm:$0xf]
    %v258 = vld [vmem:[%s7 + $0x2c] sm:$0xf]
    %v259 = vld [vmem:[%s7 + $0x30] sm:$0xf]
    %v260 = vld [vmem:[%s7 + $0x34] sm:$0xf]
    %v261 = vld [vmem:[%s7 + $0x38] sm:$0xf]
    %v262 = vld [vmem:[%s7 + $0x3c] sm:$0xf]
    %v263 = vpack.c.bf16 %v244, %v243
    %v264 = vpack.c.bf16 %v246, %v245
    %v265 = vlaneseq
    %v266 = vshrl.u32 %v265, 7
    %v267 = vsub.s32 2, %v266
    %v268 = vrot.slane %v43, %v267
    %v285 = vunpack.c.l.b16 %v247
    %v286 = vunpack.c.l.b16 %v248
    %v287 = vunpack.c.l.b16 %v249
    %v288 = vunpack.c.l.b16 %v250
    %v289 = vunpack.c.l.b16 %v251
    %v290 = vunpack.c.l.b16 %v252
    %v291 = vunpack.c.l.b16 %v253
    %v292 = vunpack.c.l.b16 %v254
    %v293 = vunpack.c.l.b16 %v255
    %v294 = vunpack.c.l.b16 %v256
    %v295 = vunpack.c.l.b16 %v257
    %v296 = vunpack.c.l.b16 %v258
    %v297 = vunpack.c.l.b16 %v259
    %v298 = vunpack.c.l.b16 %v260
    %v299 = vunpack.c.l.b16 %v261
    %v300 = vunpack.c.l.b16 %v262
    %v301 = vpack.c.b16 %v286, %v285
    %v302 = vpack.c.b16 %v288, %v287
    %v303 = vpack.c.b16 %v290, %v289
    %v304 = vpack.c.b16 %v292, %v291
    %v305 = vpack.c.b16 %v294, %v293
    %v306 = vpack.c.b16 %v296, %v295
    %v307 = vpack.c.b16 %v298, %v297
    %v308 = vpack.c.b16 %v300, %v299
    %317 = vmatprep.subr.bf16.mxu0 0
    %318 = vmatpush1.bf16.msra.mxu0 %v308
    %319 = vmatprep.subr.bf16.mxu0 0
    %320 = vmatpush1.bf16.msra.mxu0 %v307
    %321 = vmatprep.subr.bf16.mxu0 0
    %322 = vmatpush1.bf16.msra.mxu0 %v306
    %323 = vmatprep.subr.bf16.mxu0 0
    %324 = vmatpush1.bf16.msra.mxu0 %v305
    %325 = vmatprep.subr.bf16.mxu0 0
    %326 = vmatpush1.bf16.msra.mxu0 %v304
    %327 = vmatprep.subr.bf16.mxu0 0
    %328 = vmatpush1.bf16.msra.mxu0 %v303
    %329 = vmatprep.subr.bf16.mxu0 0
    %330 = vmatpush1.bf16.msra.mxu0 %v302
    %331 = vmatprep.subr.bf16.mxu0 0
    %332 = vmatpush1.bf16.msra.mxu0 %v301
    %333 = vmatprep.subr.bf16.mxu0 0
    %334 = vmatpush2.bf16.msra.mxu0 0
    %335 = vmatprep.subr.bf16.mxu0 0
    %336 = vmatpush2.bf16.msra.mxu0 0
    %337 = vmatprep.subr.bf16.mxu0 0
    %338 = vmatpush2.bf16.msra.mxu0 0
    %339 = vmatprep.subr.bf16.mxu0 0
    %340 = vmatpush2.bf16.msra.mxu0 0
    %341 = vmatprep.subr.bf16.mxu0 0
    %342 = vmatpush2.bf16.msra.mxu0 0
    %343 = vmatprep.subr.bf16.mxu0 0
    %344 = vmatpush2.bf16.msra.mxu0 0
    %345 = vmatprep.subr.bf16.mxu0 0
    %346 = vmatpush2.bf16.msra.mxu0 0
    %347 = vmatprep.subr.bf16.mxu0 0
    %348 = vmatpush2.bf16.msra.mxu0 0
    %349 = vmatprep.mubr.bf16.mxu0 0
    %350 = vmatmul.mubr.bf16.gmra.mxu0 %v263
    %v351 = vpop.f32.mrf.mxu0
    %v352 = vadd.f32 %v268, %v351
    %v353 = vpop.f32.mrf.mxu0
    %v354 = vpop.f32.mrf.mxu0
    %v355 = vadd.f32 %v268, %v354
    %v356 = vpop.f32.mrf.mxu0
    %357 = vmatprep.mubr.bf16.mxu0 0
    %358 = vmatmul.mubr.bf16.gmra.mxu0 %v264
    %v359 = vpop.f32.mrf.mxu0
    %v360 = vadd.f32 %v268, %v359
    %v361 = vpop.f32.mrf.mxu0
    %v362 = vpop.f32.mrf.mxu0
    %v363 = vadd.f32 %v268, %v362
    %v364 = vpop.f32.mrf.mxu0
    %365 = vdwg.mxu0
    %v366 = vmul.f32 %v352, %v226
    %v367 = vmul.f32 %v355, %v231
    %v368 = vmul.f32 %v360, %v236
    %v369 = vmul.f32 %v363, %v241
    %v370 = vmul.f32 %v366, 0.5
    %v371 = vmul.f32 %v367, 0.5
    %v372 = vmul.f32 %v368, 0.5
    %v373 = vmul.f32 %v369, 0.5
    %v374 = vadd.f32 %v31, %v370
    %v375 = vadd.f32 %v32, %v371
    %v376 = vadd.f32 %v33, %v372
    %v377 = vadd.f32 %v34, %v373
    %v378 = vsel %vm47, %v374, 0.0
    %379 = vadd.xlane.f32.xlu0 %v378
    %v380 = vpop.xlane.xlu0 %379
    %v381 = vsel %vm47, %v375, 0.0
    %382 = vadd.xlane.f32.xlu0 %v381
    %v383 = vpop.xlane.xlu0 %382
    %v384 = vsel %vm47, %v376, 0.0
    %385 = vadd.xlane.f32.xlu0 %v384
    %v386 = vpop.xlane.xlu0 %385
    %v387 = vsel %vm47, %v377, 0.0
    %388 = vadd.xlane.f32.xlu0 %v387
    %v389 = vpop.xlane.xlu0 %388
    %v390 = vmul.f32 %v380, %v60
    %v391 = vmul.f32 %v383, %v60
    %v392 = vmul.f32 %v386, %v60
    %v393 = vmul.f32 %v389, %v60
    %v394 = vsub.f32 %v374, %v390
    %v395 = vsub.f32 %v375, %v391
    %v396 = vsub.f32 %v376, %v392
    %v397 = vsub.f32 %v377, %v393
    %v398 = vmul.f32 %v394, %v394
    %v399 = vmul.f32 %v395, %v395
    %v400 = vmul.f32 %v396, %v396
    %v401 = vmul.f32 %v397, %v397
    %v402 = vsel %vm47, %v398, 0.0
    %403 = vadd.xlane.f32.xlu0 %v402
    %v404 = vpop.xlane.xlu0 %403
    %v405 = vsel %vm47, %v399, 0.0
    %406 = vadd.xlane.f32.xlu0 %v405
    %v407 = vpop.xlane.xlu0 %406
    %v408 = vsel %vm47, %v400, 0.0
    %409 = vadd.xlane.f32.xlu0 %v408
    %v410 = vpop.xlane.xlu0 %409
    %v411 = vsel %vm47, %v401, 0.0
    %412 = vadd.xlane.f32.xlu0 %v411
    %v413 = vpop.xlane.xlu0 %412
    %v414 = vmul.f32 %v404, %v60
    %v415 = vmul.f32 %v407, %v60
    %v416 = vmul.f32 %v410, %v60
    %v417 = vmul.f32 %v413, %v60
    %v418 = vadd.f32 %v414, 1e-06
    %v419 = vadd.f32 %v415, 1e-06
    %v420 = vadd.f32 %v416, 1e-06
    %v421 = vadd.f32 %v417, 1e-06
    %v422 = vrsqrt.pop %v418
    %v423 = vrsqrt.pop %v419
    %v424 = vrsqrt.pop %v420
    %v425 = vrsqrt.pop %v421
    %v426 = vmul.f32 %v394, %v422
    %v427 = vmul.f32 %v395, %v423
    %v428 = vmul.f32 %v396, %v424
    %v429 = vmul.f32 %v397, %v425
    %v430 = vlaneseq
    %v431 = vshrl.u32 %v430, 7
    %v432 = vsub.s32 3, %v431
    %v433 = vrot.slane %v101, %v432
    %v434 = vmul.f32 %v426, %v433
    %v435 = vmul.f32 %v427, %v433
    %v436 = vmul.f32 %v428, %v433
    %v437 = vmul.f32 %v429, %v433
    %v438 = vlaneseq
    %v439 = vshrl.u32 %v438, 7
    %v440 = vsub.s32 4, %v439
    %v441 = vrot.slane %v43, %v440
    %v442 = vadd.f32 %v434, %v441
    %v443 = vadd.f32 %v435, %v441
    %v444 = vadd.f32 %v436, %v441
    %v445 = vadd.f32 %v437, %v441
    %s446 = scalar_lea.vmem %s6, 16
    %v447 = vld [vmem:[%s446] sm:$0xf]
    %v448 = vld [vmem:[%s446 + $0x4] sm:$0xf]
    %v449 = vld [vmem:[%s446 + $0x8] sm:$0xf]
    %v450 = vld [vmem:[%s446 + $0xc] sm:$0xf]
    %v451 = vpack.c.bf16 %v443, %v442
    %v452 = vpack.c.bf16 %v445, %v444
    %v453 = vlaneseq
    %v454 = vshrl.u32 %v453, 7
    %v455 = vsub.s32 2, %v454
    %v456 = vrot.slane %v46, %v455
    %v461 = vunpack.c.l.b16 %v447
    %v462 = vunpack.c.l.b16 %v448
    %v463 = vunpack.c.l.b16 %v449
    %v464 = vunpack.c.l.b16 %v450
    %v465 = vpack.c.b16 %v462, %v461
    %v466 = vpack.c.b16 %v464, %v463
    %v470 = vsel %vm47, %v451, 0
    %v473 = vsel %vm47, %v452, 0
    %475 = vmatprep.subr.bf16.mxu0 0
    %476 = vmatpush1.bf16.msra.mxu0 0
    %477 = vmatprep.subr.bf16.mxu0 0
    %478 = vmatpush1.bf16.msra.mxu0 0
    %479 = vmatprep.subr.bf16.mxu0 0
    %480 = vmatpush1.bf16.msra.mxu0 0
    %481 = vmatprep.subr.bf16.mxu0 0
    %482 = vmatpush1.bf16.msra.mxu0 0
    %483 = vmatprep.subr.bf16.mxu0 0
    %484 = vmatpush1.bf16.msra.mxu0 0
    %485 = vmatprep.subr.bf16.mxu0 0
    %486 = vmatpush1.bf16.msra.mxu0 0
    %487 = vmatprep.subr.bf16.mxu0 0
    %488 = vmatpush1.bf16.msra.mxu0 %v466
    %489 = vmatprep.subr.bf16.mxu0 0
    %490 = vmatpush1.bf16.msra.mxu0 %v465
    %491 = vmatprep.subr.bf16.mxu0 0
    %492 = vmatpush2.bf16.msra.mxu0 0
    %493 = vmatprep.subr.bf16.mxu0 0
    %494 = vmatpush2.bf16.msra.mxu0 0
    %495 = vmatprep.subr.bf16.mxu0 0
    %496 = vmatpush2.bf16.msra.mxu0 0
    %497 = vmatprep.subr.bf16.mxu0 0
    %498 = vmatpush2.bf16.msra.mxu0 0
    %499 = vmatprep.subr.bf16.mxu0 0
    %500 = vmatpush2.bf16.msra.mxu0 0
    %501 = vmatprep.subr.bf16.mxu0 0
    %502 = vmatpush2.bf16.msra.mxu0 0
    %503 = vmatprep.subr.bf16.mxu0 0
    %504 = vmatpush2.bf16.msra.mxu0 0
    %505 = vmatprep.subr.bf16.mxu0 0
    %506 = vmatpush2.bf16.msra.mxu0 0
    %507 = vmatprep.mubr.bf16.mxu0 0
    %508 = vmatmul.mubr.bf16.gmra.mxu0 %v470
    %v509 = vpop.f32.mrf.mxu0
    %v510 = vadd.f32 %v456, %v509
    %v511 = vpop.f32.mrf.mxu0
    %v512 = vpop.f32.mrf.mxu0
    %v513 = vadd.f32 %v456, %v512
    %v514 = vpop.f32.mrf.mxu0
    %515 = vmatprep.mubr.bf16.mxu0 0
    %516 = vmatmul.mubr.bf16.gmra.mxu0 %v473
    %v517 = vpop.f32.mrf.mxu0
    %v518 = vadd.f32 %v456, %v517
    %v519 = vpop.f32.mrf.mxu0
    %v520 = vpop.f32.mrf.mxu0
    %v521 = vadd.f32 %v456, %v520
    %v522 = vpop.f32.mrf.mxu0
    %523 = vdwg.mxu0
    %s524 = scalar_lea.vmem %s6, 32
    %v525 = vld [vmem:[%s524] sm:$0xf]
    %v526 = vld [vmem:[%s524 + $0x4] sm:$0xf]
    %v527 = vld [vmem:[%s524 + $0x8] sm:$0xf]
    %v528 = vld [vmem:[%s524 + $0xc] sm:$0xf]
    %v529 = vunpack.c.l.bf16 %v525
    %v530 = vunpack.c.l.bf16 %v526
    %v531 = vunpack.c.l.bf16 %v527
    %v532 = vunpack.c.l.bf16 %v528
    %v533 = vpack.c.bf16 %v513, %v510
    %v534 = vpack.c.bf16 %v521, %v518
    %537 = vrot.lane.b32.xlu0 %v533, 96
    %v538 = vpop.permute.xlu0 %537
    %539 = vrot.lane.b32.xlu0 %v534, 96
    %v540 = vpop.permute.xlu0 %539
    %vm541 = vcmask 64512
    %v543 = vsel %vm541, %v533, 0
    %v546 = vsel %vm541, %v534, 0
    %v549 = vsel %vm541, %v538, 0
    %v552 = vsel %vm541, %v540, 0
    %554 = vmatprep.subr.bf16.mxu0 0
    %555 = vmatpush1.bf16.xpose.msra.mxu0 0
    %556 = vmatprep.subr.bf16.mxu0 0
    %557 = vmatpush1.bf16.xpose.msra.mxu0 0
    %558 = vmatprep.subr.bf16.mxu0 0
    %559 = vmatpush1.bf16.xpose.msra.mxu0 0
    %560 = vmatprep.subr.bf16.mxu0 0
    %561 = vmatpush1.bf16.xpose.msra.mxu0 0
    %562 = vmatprep.subr.bf16.mxu0 0
    %563 = vmatpush1.bf16.xpose.msra.mxu0 0
    %564 = vmatprep.subr.bf16.mxu0 0
    %565 = vmatpush1.bf16.xpose.msra.mxu0 0
    %566 = vmatprep.subr.bf16.mxu0 0
    %567 = vmatpush1.bf16.xpose.msra.mxu0 %v552
    %568 = vmatprep.subr.bf16.mxu0 0
    %569 = vmatpush1.bf16.xpose.msra.mxu0 %v549
    %570 = vmatprep.subr.bf16.mxu0 0
    %571 = vmatpush2.bf16.xpose.msra.mxu0 0
    %572 = vmatprep.subr.bf16.mxu0 0
    %573 = vmatpush2.bf16.xpose.msra.mxu0 0
    %574 = vmatprep.subr.bf16.mxu0 0
    %575 = vmatpush2.bf16.xpose.msra.mxu0 0
    %576 = vmatprep.subr.bf16.mxu0 0
    %577 = vmatpush2.bf16.xpose.msra.mxu0 0
    %578 = vmatprep.subr.bf16.mxu0 0
    %579 = vmatpush2.bf16.xpose.msra.mxu0 0
    %580 = vmatprep.subr.bf16.mxu0 0
    %581 = vmatpush2.bf16.xpose.msra.mxu0 0
    %582 = vmatprep.subr.bf16.mxu0 0
    %583 = vmatpush2.bf16.xpose.msra.mxu0 0
    %584 = vmatprep.subr.bf16.mxu0 0
    %585 = vmatpush2.bf16.xpose.msra.mxu0 0
    %586 = vmatprep.mubr.bf16.mxu0 0
    %587 = vmatmul.mubr.bf16.gmra.mxu0 %v543
    %v588 = vpop.f32.mrf.mxu0
    %v589 = vadd.f32 0.0, %v588
    %v590 = vpop.f32.mrf.mxu0
    %v591 = vpop.f32.mrf.mxu0
    %v592 = vadd.f32 0.0, %v591
    %v593 = vpop.f32.mrf.mxu0
    %594 = vmatprep.mubr.bf16.mxu0 0
    %595 = vmatmul.mubr.bf16.gmra.mxu0 %v546
    %v596 = vpop.f32.mrf.mxu0
    %v597 = vadd.f32 0.0, %v596
    %v598 = vpop.f32.mrf.mxu0
    %v599 = vpop.f32.mrf.mxu0
    %v600 = vadd.f32 0.0, %v599
    %v601 = vpop.f32.mrf.mxu0
    %602 = vdwg.mxu0
    %v603 = vmul.f32 %v589, 0.35355338
    %v604 = vmul.f32 %v592, 0.35355338
    %v605 = vmul.f32 %v597, 0.35355338
    %v606 = vmul.f32 %v600, 0.35355338
    %v607 = vadd.f32 %v603, %v39
    %v608 = vadd.f32 %v604, %v40
    %v609 = vadd.f32 %v605, %v41
    %v610 = vadd.f32 %v606, %v42
    %v611 = vsel %vm47, %v607, -inf
    %612 = vmax.xlane.f32.xlu0 %v611
    %v613 = vpop.xlane.xlu0 %612
    %v614 = vsel %vm47, %v608, -inf
    %615 = vmax.xlane.f32.xlu0 %v614
    %v616 = vpop.xlane.xlu0 %615
    %v617 = vsel %vm47, %v609, -inf
    %618 = vmax.xlane.f32.xlu0 %v617
    %v619 = vpop.xlane.xlu0 %618
    %v620 = vsel %vm47, %v610, -inf
    %621 = vmax.xlane.f32.xlu0 %v620
    %v622 = vpop.xlane.xlu0 %621
    %v623 = vsub.f32 %v607, %v613
    %v624 = vsub.f32 %v608, %v616
    %v625 = vsub.f32 %v609, %v619
    %v626 = vsub.f32 %v610, %v622
    %v627 = vmul.f32 %v623, 1.442695
    %v628 = vpow.pop %v627
    %v629 = vmul.f32 %v624, 1.442695
    %v630 = vpow.pop %v629
    %v631 = vmul.f32 %v625, 1.442695
    %v632 = vpow.pop %v631
    %v633 = vmul.f32 %v626, 1.442695
    %v634 = vpow.pop %v633
    %v635 = vsel %vm47, %v628, 0.0
    %636 = vadd.xlane.f32.xlu0 %v635
    %v637 = vpop.xlane.xlu0 %636
    %v638 = vsel %vm47, %v630, 0.0
    %639 = vadd.xlane.f32.xlu0 %v638
    %v640 = vpop.xlane.xlu0 %639
    %v641 = vsel %vm47, %v632, 0.0
    %642 = vadd.xlane.f32.xlu0 %v641
    %v643 = vpop.xlane.xlu0 %642
    %v644 = vsel %vm47, %v634, 0.0
    %645 = vadd.xlane.f32.xlu0 %v644
    %v646 = vpop.xlane.xlu0 %645
    %v647 = vrcp.pop %v637
    %v648 = vrcp.pop %v640
    %v649 = vrcp.pop %v643
    %v650 = vrcp.pop %v646
    %v651 = vmul.f32 %v628, %v647
    %v652 = vmul.f32 %v630, %v648
    %v653 = vmul.f32 %v632, %v649
    %v654 = vmul.f32 %v634, %v650
    %v655 = vpack.c.bf16 %v652, %v651
    %v656 = vpack.c.bf16 %v654, %v653
    %657 = vrot.lane.b32.xlu0 %v533, 64
    %v658 = vpop.permute.xlu0 %657
    %659 = vrot.lane.b32.xlu0 %v534, 64
    %v660 = vpop.permute.xlu0 %659
    %v664 = vsel %vm47, %v655, 0
    %v667 = vsel %vm47, %v656, 0
    %669 = vmatprep.subr.bf16.mxu0 0
    %670 = vmatpush1.bf16.msra.mxu0 0
    %671 = vmatprep.subr.bf16.mxu0 0
    %672 = vmatpush1.bf16.msra.mxu0 0
    %673 = vmatprep.subr.bf16.mxu0 0
    %674 = vmatpush1.bf16.msra.mxu0 0
    %675 = vmatprep.subr.bf16.mxu0 0
    %676 = vmatpush1.bf16.msra.mxu0 0
    %677 = vmatprep.subr.bf16.mxu0 0
    %678 = vmatpush1.bf16.msra.mxu0 0
    %679 = vmatprep.subr.bf16.mxu0 0
    %680 = vmatpush1.bf16.msra.mxu0 0
    %681 = vmatprep.subr.bf16.mxu0 0
    %682 = vmatpush1.bf16.msra.mxu0 %v660
    %683 = vmatprep.subr.bf16.mxu0 0
    %684 = vmatpush1.bf16.msra.mxu0 %v658
    %685 = vmatprep.subr.bf16.mxu0 0
    %686 = vmatpush2.bf16.msra.mxu0 0
    %687 = vmatprep.subr.bf16.mxu0 0
    %688 = vmatpush2.bf16.msra.mxu0 0
    %689 = vmatprep.subr.bf16.mxu0 0
    %690 = vmatpush2.bf16.msra.mxu0 0
    %691 = vmatprep.subr.bf16.mxu0 0
    %692 = vmatpush2.bf16.msra.mxu0 0
    %693 = vmatprep.subr.bf16.mxu0 0
    %694 = vmatpush2.bf16.msra.mxu0 0
    %695 = vmatprep.subr.bf16.mxu0 0
    %696 = vmatpush2.bf16.msra.mxu0 0
    %697 = vmatprep.subr.bf16.mxu0 0
    %698 = vmatpush2.bf16.msra.mxu0 0
    %699 = vmatprep.subr.bf16.mxu0 0
    %700 = vmatpush2.bf16.msra.mxu0 0
    %701 = vmatprep.mubr.bf16.mxu0 0
    %702 = vmatmul.mubr.bf16.gmra.mxu0 %v664
    %v703 = vpop.f32.mrf.mxu0
    %v704 = vadd.f32 0.0, %v703
    %v705 = vpop.f32.mrf.mxu0
    %v706 = vpop.f32.mrf.mxu0
    %v707 = vadd.f32 0.0, %v706
    %v708 = vpop.f32.mrf.mxu0
    %709 = vmatprep.mubr.bf16.mxu0 0
    %710 = vmatmul.mubr.bf16.gmra.mxu0 %v667
    %v711 = vpop.f32.mrf.mxu0
    %v712 = vadd.f32 0.0, %v711
    %v713 = vpop.f32.mrf.mxu0
    %v714 = vpop.f32.mrf.mxu0
    %v715 = vadd.f32 0.0, %v714
    %v716 = vpop.f32.mrf.mxu0
    %717 = vdwg.mxu0
    %v718 = vpack.c.bf16 %v707, %v704
    %v719 = vpack.c.bf16 %v715, %v712
    %v720 = vpack.c.bf16 %v529, %v529
    %721 = vrot.lane.b32.xlu0 %v533, 120
    %v722 = vpop.permute.xlu0 %721
    %723 = vrot.lane.b32.xlu0 %v534, 120
    %v724 = vpop.permute.xlu0 %723
    %725 = vrot.lane.b32.xlu0 %v533, 88
    %v726 = vpop.permute.xlu0 %725
    %727 = vrot.lane.b32.xlu0 %v534, 88
    %v728 = vpop.permute.xlu0 %727
    %v730 = vsel %vm541, %v722, 0
    %v733 = vsel %vm541, %v724, 0
    %v736 = vsel %vm541, %v726, 0
    %v739 = vsel %vm541, %v728, 0
    %741 = vmatprep.subr.bf16.mxu0 0
    %742 = vmatpush1.bf16.xpose.msra.mxu0 0
    %743 = vmatprep.subr.bf16.mxu0 0
    %744 = vmatpush1.bf16.xpose.msra.mxu0 0
    %745 = vmatprep.subr.bf16.mxu0 0
    %746 = vmatpush1.bf16.xpose.msra.mxu0 0
    %747 = vmatprep.subr.bf16.mxu0 0
    %748 = vmatpush1.bf16.xpose.msra.mxu0 0
    %749 = vmatprep.subr.bf16.mxu0 0
    %750 = vmatpush1.bf16.xpose.msra.mxu0 0
    %751 = vmatprep.subr.bf16.mxu0 0
    %752 = vmatpush1.bf16.xpose.msra.mxu0 0
    %753 = vmatprep.subr.bf16.mxu0 0
    %754 = vmatpush1.bf16.xpose.msra.mxu0 %v739
    %755 = vmatprep.subr.bf16.mxu0 0
    %756 = vmatpush1.bf16.xpose.msra.mxu0 %v736
    %757 = vmatprep.subr.bf16.mxu0 0
    %758 = vmatpush2.bf16.xpose.msra.mxu0 0
    %759 = vmatprep.subr.bf16.mxu0 0
    %760 = vmatpush2.bf16.xpose.msra.mxu0 0
    %761 = vmatprep.subr.bf16.mxu0 0
    %762 = vmatpush2.bf16.xpose.msra.mxu0 0
    %763 = vmatprep.subr.bf16.mxu0 0
    %764 = vmatpush2.bf16.xpose.msra.mxu0 0
    %765 = vmatprep.subr.bf16.mxu0 0
    %766 = vmatpush2.bf16.xpose.msra.mxu0 0
    %767 = vmatprep.subr.bf16.mxu0 0
    %768 = vmatpush2.bf16.xpose.msra.mxu0 0
    %769 = vmatprep.subr.bf16.mxu0 0
    %770 = vmatpush2.bf16.xpose.msra.mxu0 0
    %771 = vmatprep.subr.bf16.mxu0 0
    %772 = vmatpush2.bf16.xpose.msra.mxu0 0
    %773 = vmatprep.mubr.bf16.mxu0 0
    %774 = vmatmul.mubr.bf16.gmra.mxu0 %v730
    %v775 = vpop.f32.mrf.mxu0
    %v776 = vadd.f32 0.0, %v775
    %v777 = vpop.f32.mrf.mxu0
    %v778 = vpop.f32.mrf.mxu0
    %v779 = vadd.f32 0.0, %v778
    %v780 = vpop.f32.mrf.mxu0
    %781 = vmatprep.mubr.bf16.mxu0 0
    %782 = vmatmul.mubr.bf16.gmra.mxu0 %v733
    %v783 = vpop.f32.mrf.mxu0
    %v784 = vadd.f32 0.0, %v783
    %v785 = vpop.f32.mrf.mxu0
    %v786 = vpop.f32.mrf.mxu0
    %v787 = vadd.f32 0.0, %v786
    %v788 = vpop.f32.mrf.mxu0
    %789 = vdwg.mxu0
    %v790 = vmul.f32 %v776, 0.35355338
    %v791 = vmul.f32 %v779, 0.35355338
    %v792 = vmul.f32 %v784, 0.35355338
    %v793 = vmul.f32 %v787, 0.35355338
    %v794 = vadd.f32 %v790, %v39
    %v795 = vadd.f32 %v791, %v40
    %v796 = vadd.f32 %v792, %v41
    %v797 = vadd.f32 %v793, %v42
    %v798 = vsel %vm47, %v794, -inf
    %799 = vmax.xlane.f32.xlu0 %v798
    %v800 = vpop.xlane.xlu0 %799
    %v801 = vsel %vm47, %v795, -inf
    %802 = vmax.xlane.f32.xlu0 %v801
    %v803 = vpop.xlane.xlu0 %802
    %v804 = vsel %vm47, %v796, -inf
    %805 = vmax.xlane.f32.xlu0 %v804
    %v806 = vpop.xlane.xlu0 %805
    %v807 = vsel %vm47, %v797, -inf
    %808 = vmax.xlane.f32.xlu0 %v807
    %v809 = vpop.xlane.xlu0 %808
    %v810 = vsub.f32 %v794, %v800
    %v811 = vsub.f32 %v795, %v803
    %v812 = vsub.f32 %v796, %v806
    %v813 = vsub.f32 %v797, %v809
    %v814 = vmul.f32 %v810, 1.442695
    %v815 = vpow.pop %v814
    %v816 = vmul.f32 %v811, 1.442695
    %v817 = vpow.pop %v816
    %v818 = vmul.f32 %v812, 1.442695
    %v819 = vpow.pop %v818
    %v820 = vmul.f32 %v813, 1.442695
    %v821 = vpow.pop %v820
    %v822 = vsel %vm47, %v815, 0.0
    %823 = vadd.xlane.f32.xlu0 %v822
    %v824 = vpop.xlane.xlu0 %823
    %v825 = vsel %vm47, %v817, 0.0
    %826 = vadd.xlane.f32.xlu0 %v825
    %v827 = vpop.xlane.xlu0 %826
    %v828 = vsel %vm47, %v819, 0.0
    %829 = vadd.xlane.f32.xlu0 %v828
    %v830 = vpop.xlane.xlu0 %829
    %v831 = vsel %vm47, %v821, 0.0
    %832 = vadd.xlane.f32.xlu0 %v831
    %v833 = vpop.xlane.xlu0 %832
    %v834 = vrcp.pop %v824
    %v835 = vrcp.pop %v827
    %v836 = vrcp.pop %v830
    %v837 = vrcp.pop %v833
    %v838 = vmul.f32 %v815, %v834
    %v839 = vmul.f32 %v817, %v835
    %v840 = vmul.f32 %v819, %v836
    %v841 = vmul.f32 %v821, %v837
    %v842 = vpack.c.bf16 %v839, %v838
    %v843 = vpack.c.bf16 %v841, %v840
    %844 = vrot.lane.b32.xlu0 %v533, 56
    %v845 = vpop.permute.xlu0 %844
    %846 = vrot.lane.b32.xlu0 %v534, 56
    %v847 = vpop.permute.xlu0 %846
    %v851 = vsel %vm47, %v842, 0
    %v854 = vsel %vm47, %v843, 0
    %856 = vmatprep.subr.bf16.mxu0 0
    %857 = vmatpush1.bf16.msra.mxu0 0
    %858 = vmatprep.subr.bf16.mxu0 0
    %859 = vmatpush1.bf16.msra.mxu0 0
    %860 = vmatprep.subr.bf16.mxu0 0
    %861 = vmatpush1.bf16.msra.mxu0 0
    %862 = vmatprep.subr.bf16.mxu0 0
    %863 = vmatpush1.bf16.msra.mxu0 0
    %864 = vmatprep.subr.bf16.mxu0 0
    %865 = vmatpush1.bf16.msra.mxu0 0
    %866 = vmatprep.subr.bf16.mxu0 0
    %867 = vmatpush1.bf16.msra.mxu0 0
    %868 = vmatprep.subr.bf16.mxu0 0
    %869 = vmatpush1.bf16.msra.mxu0 %v847
    %870 = vmatprep.subr.bf16.mxu0 0
    %871 = vmatpush1.bf16.msra.mxu0 %v845
    %872 = vmatprep.subr.bf16.mxu0 0
    %873 = vmatpush2.bf16.msra.mxu0 0
    %874 = vmatprep.subr.bf16.mxu0 0
    %875 = vmatpush2.bf16.msra.mxu0 0
    %876 = vmatprep.subr.bf16.mxu0 0
    %877 = vmatpush2.bf16.msra.mxu0 0
    %878 = vmatprep.subr.bf16.mxu0 0
    %879 = vmatpush2.bf16.msra.mxu0 0
    %880 = vmatprep.subr.bf16.mxu0 0
    %881 = vmatpush2.bf16.msra.mxu0 0
    %882 = vmatprep.subr.bf16.mxu0 0
    %883 = vmatpush2.bf16.msra.mxu0 0
    %884 = vmatprep.subr.bf16.mxu0 0
    %885 = vmatpush2.bf16.msra.mxu0 0
    %886 = vmatprep.subr.bf16.mxu0 0
    %887 = vmatpush2.bf16.msra.mxu0 0
    %888 = vmatprep.mubr.bf16.mxu0 0
    %889 = vmatmul.mubr.bf16.gmra.mxu0 %v851
    %v890 = vpop.f32.mrf.mxu0
    %v891 = vadd.f32 0.0, %v890
    %v892 = vpop.f32.mrf.mxu0
    %v893 = vpop.f32.mrf.mxu0
    %v894 = vadd.f32 0.0, %v893
    %v895 = vpop.f32.mrf.mxu0
    %896 = vmatprep.mubr.bf16.mxu0 0
    %897 = vmatmul.mubr.bf16.gmra.mxu0 %v854
    %v898 = vpop.f32.mrf.mxu0
    %v899 = vadd.f32 0.0, %v898
    %v900 = vpop.f32.mrf.mxu0
    %v901 = vpop.f32.mrf.mxu0
    %v902 = vadd.f32 0.0, %v901
    %v903 = vpop.f32.mrf.mxu0
    %904 = vdwg.mxu0
    %v905 = vpack.c.bf16 %v894, %v891
    %v906 = vpack.c.bf16 %v902, %v899
    %v907 = vpack.c.bf16 %v530, %v530
    %v909 = vsel %vm541, %v905, 0
    %v912 = vsel %vm541, %v906, 0
    %vm914 = vcmask 1043456
    %v916 = vsel %vm914, %v907, 0
    %918 = vmatprep.subr.bf16.mxu0 0
    %919 = vmatpush1.bf16.msra.mxu0 0
    %920 = vmatprep.subr.bf16.mxu0 0
    %921 = vmatpush1.bf16.msra.mxu0 0
    %922 = vmatprep.subr.bf16.mxu0 0
    %923 = vmatpush1.bf16.msra.mxu0 0
    %924 = vmatprep.subr.bf16.mxu0 0
    %925 = vmatpush1.bf16.msra.mxu0 0
    %926 = vmatprep.subr.bf16.mxu0 0
    %927 = vmatpush1.bf16.msra.mxu0 0
    %928 = vmatprep.subr.bf16.mxu0 0
    %929 = vmatpush1.bf16.msra.mxu0 0
    %930 = vmatprep.subr.bf16.mxu0 0
    %931 = vmatpush1.bf16.msra.mxu0 0
    %932 = vmatprep.subr.bf16.mxu0 0
    %933 = vmatpush1.bf16.msra.mxu0 %v916
    %934 = vmatprep.subr.bf16.mxu0 0
    %935 = vmatpush2.bf16.msra.mxu0 0
    %936 = vmatprep.subr.bf16.mxu0 0
    %937 = vmatpush2.bf16.msra.mxu0 0
    %938 = vmatprep.subr.bf16.mxu0 0
    %939 = vmatpush2.bf16.msra.mxu0 0
    %940 = vmatprep.subr.bf16.mxu0 0
    %941 = vmatpush2.bf16.msra.mxu0 0
    %942 = vmatprep.subr.bf16.mxu0 0
    %943 = vmatpush2.bf16.msra.mxu0 0
    %944 = vmatprep.subr.bf16.mxu0 0
    %945 = vmatpush2.bf16.msra.mxu0 0
    %946 = vmatprep.subr.bf16.mxu0 0
    %947 = vmatpush2.bf16.msra.mxu0 0
    %948 = vmatprep.subr.bf16.mxu0 0
    %949 = vmatpush2.bf16.msra.mxu0 0
    %950 = vmatprep.mubr.bf16.mxu0 0
    %951 = vmatmul.mubr.bf16.gmra.mxu0 %v909
    %v952 = vpop.f32.mrf.mxu0
    %v953 = vadd.f32 0.0, %v952
    %v954 = vpop.f32.mrf.mxu0
    %v955 = vpop.f32.mrf.mxu0
    %v956 = vadd.f32 0.0, %v955
    %v957 = vpop.f32.mrf.mxu0
    %958 = vmatprep.mubr.bf16.mxu0 0
    %959 = vmatmul.mubr.bf16.gmra.mxu0 %v912
    %v960 = vpop.f32.mrf.mxu0
    %v961 = vadd.f32 0.0, %v960
    %v962 = vpop.f32.mrf.mxu0
    %v963 = vpop.f32.mrf.mxu0
    %v964 = vadd.f32 0.0, %v963
    %v965 = vpop.f32.mrf.mxu0
    %966 = vdwg.mxu0
    %v968 = vsel %vm541, %v718, 0
    %v971 = vsel %vm541, %v719, 0
    %v974 = vsel %vm914, %v720, 0
    %976 = vmatprep.subr.bf16.mxu0 0
    %977 = vmatpush1.bf16.msra.mxu0 0
    %978 = vmatprep.subr.bf16.mxu0 0
    %979 = vmatpush1.bf16.msra.mxu0 0
    %980 = vmatprep.subr.bf16.mxu0 0
    %981 = vmatpush1.bf16.msra.mxu0 0
    %982 = vmatprep.subr.bf16.mxu0 0
    %983 = vmatpush1.bf16.msra.mxu0 0
    %984 = vmatprep.subr.bf16.mxu0 0
    %985 = vmatpush1.bf16.msra.mxu0 0
    %986 = vmatprep.subr.bf16.mxu0 0
    %987 = vmatpush1.bf16.msra.mxu0 0
    %988 = vmatprep.subr.bf16.mxu0 0
    %989 = vmatpush1.bf16.msra.mxu0 0
    %990 = vmatprep.subr.bf16.mxu0 0
    %991 = vmatpush1.bf16.msra.mxu0 %v974
    %992 = vmatprep.subr.bf16.mxu0 0
    %993 = vmatpush2.bf16.msra.mxu0 0
    %994 = vmatprep.subr.bf16.mxu0 0
    %995 = vmatpush2.bf16.msra.mxu0 0
    %996 = vmatprep.subr.bf16.mxu0 0
    %997 = vmatpush2.bf16.msra.mxu0 0
    %998 = vmatprep.subr.bf16.mxu0 0
    %999 = vmatpush2.bf16.msra.mxu0 0
    %1000 = vmatprep.subr.bf16.mxu0 0
    %1001 = vmatpush2.bf16.msra.mxu0 0
    %1002 = vmatprep.subr.bf16.mxu0 0
    %1003 = vmatpush2.bf16.msra.mxu0 0
    %1004 = vmatprep.subr.bf16.mxu0 0
    %1005 = vmatpush2.bf16.msra.mxu0 0
    %1006 = vmatprep.subr.bf16.mxu0 0
    %1007 = vmatpush2.bf16.msra.mxu0 0
    %1008 = vmatprep.mubr.bf16.mxu0 0
    %1009 = vmatmul.mubr.bf16.gmra.mxu0 %v968
    %v1010 = vpop.f32.mrf.mxu0
    %v1011 = vadd.f32 %v953, %v1010
    %v1012 = vpop.f32.mrf.mxu0
    %v1013 = vpop.f32.mrf.mxu0
    %v1014 = vadd.f32 %v956, %v1013
    %v1015 = vpop.f32.mrf.mxu0
    %1016 = vmatprep.mubr.bf16.mxu0 0
    %1017 = vmatmul.mubr.bf16.gmra.mxu0 %v971
    %v1018 = vpop.f32.mrf.mxu0
    %v1019 = vadd.f32 %v961, %v1018
    %v1020 = vpop.f32.mrf.mxu0
    %v1021 = vpop.f32.mrf.mxu0
    %v1022 = vadd.f32 %v964, %v1021
    %v1023 = vpop.f32.mrf.mxu0
    %1024 = vdwg.mxu0
    %1025 = vrot.lane.b32.xlu0 %v533, 112
    %v1026 = vpop.permute.xlu0 %1025
    %1027 = vrot.lane.b32.xlu0 %v534, 112
    %v1028 = vpop.permute.xlu0 %1027
    %1029 = vrot.lane.b32.xlu0 %v533, 80
    %v1030 = vpop.permute.xlu0 %1029
    %1031 = vrot.lane.b32.xlu0 %v534, 80
    %v1032 = vpop.permute.xlu0 %1031
    %v1034 = vsel %vm541, %v1026, 0
    %v1037 = vsel %vm541, %v1028, 0
    %v1040 = vsel %vm541, %v1030, 0
    %v1043 = vsel %vm541, %v1032, 0
    %1045 = vmatprep.subr.bf16.mxu0 0
    %1046 = vmatpush1.bf16.xpose.msra.mxu0 0
    %1047 = vmatprep.subr.bf16.mxu0 0
    %1048 = vmatpush1.bf16.xpose.msra.mxu0 0
    %1049 = vmatprep.subr.bf16.mxu0 0
    %1050 = vmatpush1.bf16.xpose.msra.mxu0 0
    %1051 = vmatprep.subr.bf16.mxu0 0
    %1052 = vmatpush1.bf16.xpose.msra.mxu0 0
    %1053 = vmatprep.subr.bf16.mxu0 0
    %1054 = vmatpush1.bf16.xpose.msra.mxu0 0
    %1055 = vmatprep.subr.bf16.mxu0 0
    %1056 = vmatpush1.bf16.xpose.msra.mxu0 0
    %1057 = vmatprep.subr.bf16.mxu0 0
    %1058 = vmatpush1.bf16.xpose.msra.mxu0 %v1043
    %1059 = vmatprep.subr.bf16.mxu0 0
    %1060 = vmatpush1.bf16.xpose.msra.mxu0 %v1040
    %1061 = vmatprep.subr.bf16.mxu0 0
    %1062 = vmatpush2.bf16.xpose.msra.mxu0 0
    %1063 = vmatprep.subr.bf16.mxu0 0
    %1064 = vmatpush2.bf16.xpose.msra.mxu0 0
    %1065 = vmatprep.subr.bf16.mxu0 0
    %1066 = vmatpush2.bf16.xpose.msra.mxu0 0
    %1067 = vmatprep.subr.bf16.mxu0 0
    %1068 = vmatpush2.bf16.xpose.msra.mxu0 0
    %1069 = vmatprep.subr.bf16.mxu0 0
    %1070 = vmatpush2.bf16.xpose.msra.mxu0 0
    %1071 = vmatprep.subr.bf16.mxu0 0
    %1072 = vmatpush2.bf16.xpose.msra.mxu0 0
    %1073 = vmatprep.subr.bf16.mxu0 0
    %1074 = vmatpush2.bf16.xpose.msra.mxu0 0
    %1075 = vmatprep.subr.bf16.mxu0 0
    %1076 = vmatpush2.bf16.xpose.msra.mxu0 0
    %1077 = vmatprep.mubr.bf16.mxu0 0
    %1078 = vmatmul.mubr.bf16.gmra.mxu0 %v1034
    %v1079 = vpop.f32.mrf.mxu0
    %v1080 = vadd.f32 0.0, %v1079
    %v1081 = vpop.f32.mrf.mxu0
    %v1082 = vpop.f32.mrf.mxu0
    %v1083 = vadd.f32 0.0, %v1082
    %v1084 = vpop.f32.mrf.mxu0
    %1085 = vmatprep.mubr.bf16.mxu0 0
    %1086 = vmatmul.mubr.bf16.gmra.mxu0 %v1037
    %v1087 = vpop.f32.mrf.mxu0
    %v1088 = vadd.f32 0.0, %v1087
    %v1089 = vpop.f32.mrf.mxu0
    %v1090 = vpop.f32.mrf.mxu0
    %v1091 = vadd.f32 0.0, %v1090
    %v1092 = vpop.f32.mrf.mxu0
    %1093 = vdwg.mxu0
    %v1094 = vmul.f32 %v1080, 0.35355338
    %v1095 = vmul.f32 %v1083, 0.35355338
    %v1096 = vmul.f32 %v1088, 0.35355338
    %v1097 = vmul.f32 %v1091, 0.35355338
    %v1098 = vadd.f32 %v1094, %v39
    %v1099 = vadd.f32 %v1095, %v40
    %v1100 = vadd.f32 %v1096, %v41
    %v1101 = vadd.f32 %v1097, %v42
    %v1102 = vsel %vm47, %v1098, -inf
    %1103 = vmax.xlane.f32.xlu0 %v1102
    %v1104 = vpop.xlane.xlu0 %1103
    %v1105 = vsel %vm47, %v1099, -inf
    %1106 = vmax.xlane.f32.xlu0 %v1105
    %v1107 = vpop.xlane.xlu0 %1106
    %v1108 = vsel %vm47, %v1100, -inf
    %1109 = vmax.xlane.f32.xlu0 %v1108
    %v1110 = vpop.xlane.xlu0 %1109
    %v1111 = vsel %vm47, %v1101, -inf
    %1112 = vmax.xlane.f32.xlu0 %v1111
    %v1113 = vpop.xlane.xlu0 %1112
    %v1114 = vsub.f32 %v1098, %v1104
    %v1115 = vsub.f32 %v1099, %v1107
    %v1116 = vsub.f32 %v1100, %v1110
    %v1117 = vsub.f32 %v1101, %v1113
    %v1118 = vmul.f32 %v1114, 1.442695
    %v1119 = vpow.pop %v1118
    %v1120 = vmul.f32 %v1115, 1.442695
    %v1121 = vpow.pop %v1120
    %v1122 = vmul.f32 %v1116, 1.442695
    %v1123 = vpow.pop %v1122
    %v1124 = vmul.f32 %v1117, 1.442695
    %v1125 = vpow.pop %v1124
    %v1126 = vsel %vm47, %v1119, 0.0
    %1127 = vadd.xlane.f32.xlu0 %v1126
    %v1128 = vpop.xlane.xlu0 %1127
    %v1129 = vsel %vm47, %v1121, 0.0
    %1130 = vadd.xlane.f32.xlu0 %v1129
    %v1131 = vpop.xlane.xlu0 %1130
    %v1132 = vsel %vm47, %v1123, 0.0
    %1133 = vadd.xlane.f32.xlu0 %v1132
    %v1134 = vpop.xlane.xlu0 %1133
    %v1135 = vsel %vm47, %v1125, 0.0
    %1136 = vadd.xlane.f32.xlu0 %v1135
    %v1137 = vpop.xlane.xlu0 %1136
    %v1138 = vrcp.pop %v1128
    %v1139 = vrcp.pop %v1131
    %v1140 = vrcp.pop %v1134
    %v1141 = vrcp.pop %v1137
    %v1142 = vmul.f32 %v1119, %v1138
    %v1143 = vmul.f32 %v1121, %v1139
    %v1144 = vmul.f32 %v1123, %v1140
    %v1145 = vmul.f32 %v1125, %v1141
    %v1146 = vpack.c.bf16 %v1143, %v1142
    %v1147 = vpack.c.bf16 %v1145, %v1144
    %1148 = vrot.lane.b32.xlu0 %v533, 48
    %v1149 = vpop.permute.xlu0 %1148
    %1150 = vrot.lane.b32.xlu0 %v534, 48
    %v1151 = vpop.permute.xlu0 %1150
    %v1155 = vsel %vm47, %v1146, 0
    %v1158 = vsel %vm47, %v1147, 0
    %1160 = vmatprep.subr.bf16.mxu0 0
    %1161 = vmatpush1.bf16.msra.mxu0 0
    %1162 = vmatprep.subr.bf16.mxu0 0
    %1163 = vmatpush1.bf16.msra.mxu0 0
    %1164 = vmatprep.subr.bf16.mxu0 0
    %1165 = vmatpush1.bf16.msra.mxu0 0
    %1166 = vmatprep.subr.bf16.mxu0 0
    %1167 = vmatpush1.bf16.msra.mxu0 0
    %1168 = vmatprep.subr.bf16.mxu0 0
    %1169 = vmatpush1.bf16.msra.mxu0 0
    %1170 = vmatprep.subr.bf16.mxu0 0
    %1171 = vmatpush1.bf16.msra.mxu0 0
    %1172 = vmatprep.subr.bf16.mxu0 0
    %1173 = vmatpush1.bf16.msra.mxu0 %v1151
    %1174 = vmatprep.subr.bf16.mxu0 0
    %1175 = vmatpush1.bf16.msra.mxu0 %v1149
    %1176 = vmatprep.subr.bf16.mxu0 0
    %1177 = vmatpush2.bf16.msra.mxu0 0
    %1178 = vmatprep.subr.bf16.mxu0 0
    %1179 = vmatpush2.bf16.msra.mxu0 0
    %1180 = vmatprep.subr.bf16.mxu0 0
    %1181 = vmatpush2.bf16.msra.mxu0 0
    %1182 = vmatprep.subr.bf16.mxu0 0
    %1183 = vmatpush2.bf16.msra.mxu0 0
    %1184 = vmatprep.subr.bf16.mxu0 0
    %1185 = vmatpush2.bf16.msra.mxu0 0
    %1186 = vmatprep.subr.bf16.mxu0 0
    %1187 = vmatpush2.bf16.msra.mxu0 0
    %1188 = vmatprep.subr.bf16.mxu0 0
    %1189 = vmatpush2.bf16.msra.mxu0 0
    %1190 = vmatprep.subr.bf16.mxu0 0
    %1191 = vmatpush2.bf16.msra.mxu0 0
    %1192 = vmatprep.mubr.bf16.mxu0 0
    %1193 = vmatmul.mubr.bf16.gmra.mxu0 %v1155
    %v1194 = vpop.f32.mrf.mxu0
    %v1195 = vadd.f32 0.0, %v1194
    %v1196 = vpop.f32.mrf.mxu0
    %v1197 = vpop.f32.mrf.mxu0
    %v1198 = vadd.f32 0.0, %v1197
    %v1199 = vpop.f32.mrf.mxu0
    %1200 = vmatprep.mubr.bf16.mxu0 0
    %1201 = vmatmul.mubr.bf16.gmra.mxu0 %v1158
    %v1202 = vpop.f32.mrf.mxu0
    %v1203 = vadd.f32 0.0, %v1202
    %v1204 = vpop.f32.mrf.mxu0
    %v1205 = vpop.f32.mrf.mxu0
    %v1206 = vadd.f32 0.0, %v1205
    %v1207 = vpop.f32.mrf.mxu0
    %1208 = vdwg.mxu0
    %v1209 = vpack.c.bf16 %v1198, %v1195
    %v1210 = vpack.c.bf16 %v1206, %v1203
    %v1211 = vpack.c.bf16 %v531, %v531
    %v1213 = vsel %vm541, %v1209, 0
    %v1216 = vsel %vm541, %v1210, 0
    %v1219 = vsel %vm914, %v1211, 0
    %1221 = vmatprep.subr.bf16.mxu0 0
    %1222 = vmatpush1.bf16.msra.mxu0 0
    %1223 = vmatprep.subr.bf16.mxu0 0
    %1224 = vmatpush1.bf16.msra.mxu0 0
    %1225 = vmatprep.subr.bf16.mxu0 0
    %1226 = vmatpush1.bf16.msra.mxu0 0
    %1227 = vmatprep.subr.bf16.mxu0 0
    %1228 = vmatpush1.bf16.msra.mxu0 0
    %1229 = vmatprep.subr.bf16.mxu0 0
    %1230 = vmatpush1.bf16.msra.mxu0 0
    %1231 = vmatprep.subr.bf16.mxu0 0
    %1232 = vmatpush1.bf16.msra.mxu0 0
    %1233 = vmatprep.subr.bf16.mxu0 0
    %1234 = vmatpush1.bf16.msra.mxu0 0
    %1235 = vmatprep.subr.bf16.mxu0 0
    %1236 = vmatpush1.bf16.msra.mxu0 %v1219
    %1237 = vmatprep.subr.bf16.mxu0 0
    %1238 = vmatpush2.bf16.msra.mxu0 0
    %1239 = vmatprep.subr.bf16.mxu0 0
    %1240 = vmatpush2.bf16.msra.mxu0 0
    %1241 = vmatprep.subr.bf16.mxu0 0
    %1242 = vmatpush2.bf16.msra.mxu0 0
    %1243 = vmatprep.subr.bf16.mxu0 0
    %1244 = vmatpush2.bf16.msra.mxu0 0
    %1245 = vmatprep.subr.bf16.mxu0 0
    %1246 = vmatpush2.bf16.msra.mxu0 0
    %1247 = vmatprep.subr.bf16.mxu0 0
    %1248 = vmatpush2.bf16.msra.mxu0 0
    %1249 = vmatprep.subr.bf16.mxu0 0
    %1250 = vmatpush2.bf16.msra.mxu0 0
    %1251 = vmatprep.subr.bf16.mxu0 0
    %1252 = vmatpush2.bf16.msra.mxu0 0
    %1253 = vmatprep.mubr.bf16.mxu0 0
    %1254 = vmatmul.mubr.bf16.gmra.mxu0 %v1213
    %v1255 = vpop.f32.mrf.mxu0
    %v1256 = vadd.f32 0.0, %v1255
    %v1257 = vpop.f32.mrf.mxu0
    %v1258 = vpop.f32.mrf.mxu0
    %v1259 = vadd.f32 0.0, %v1258
    %v1260 = vpop.f32.mrf.mxu0
    %1261 = vmatprep.mubr.bf16.mxu0 0
    %1262 = vmatmul.mubr.bf16.gmra.mxu0 %v1216
    %v1263 = vpop.f32.mrf.mxu0
    %v1264 = vadd.f32 0.0, %v1263
    %v1265 = vpop.f32.mrf.mxu0
    %v1266 = vpop.f32.mrf.mxu0
    %v1267 = vadd.f32 0.0, %v1266
    %v1268 = vpop.f32.mrf.mxu0
    %1269 = vdwg.mxu0
    %v1270 = vadd.f32 %v1011, %v1256
    %v1271 = vadd.f32 %v1014, %v1259
    %v1272 = vadd.f32 %v1019, %v1264
    %v1273 = vadd.f32 %v1022, %v1267
    %1274 = vrot.lane.b32.xlu0 %v533, 104
    %v1275 = vpop.permute.xlu0 %1274
    %1276 = vrot.lane.b32.xlu0 %v534, 104
    %v1277 = vpop.permute.xlu0 %1276
    %1278 = vrot.lane.b32.xlu0 %v533, 72
    %v1279 = vpop.permute.xlu0 %1278
    %1280 = vrot.lane.b32.xlu0 %v534, 72
    %v1281 = vpop.permute.xlu0 %1280
    %v1283 = vsel %vm541, %v1275, 0
    %v1286 = vsel %vm541, %v1277, 0
    %v1289 = vsel %vm541, %v1279, 0
    %v1292 = vsel %vm541, %v1281, 0
    %1294 = vmatprep.subr.bf16.mxu0 0
    %1295 = vmatpush1.bf16.xpose.msra.mxu0 0
    %1296 = vmatprep.subr.bf16.mxu0 0
    %1297 = vmatpush1.bf16.xpose.msra.mxu0 0
    %1298 = vmatprep.subr.bf16.mxu0 0
    %1299 = vmatpush1.bf16.xpose.msra.mxu0 0
    %1300 = vmatprep.subr.bf16.mxu0 0
    %1301 = vmatpush1.bf16.xpose.msra.mxu0 0
    %1302 = vmatprep.subr.bf16.mxu0 0
    %1303 = vmatpush1.bf16.xpose.msra.mxu0 0
    %1304 = vmatprep.subr.bf16.mxu0 0
    %1305 = vmatpush1.bf16.xpose.msra.mxu0 0
    %1306 = vmatprep.subr.bf16.mxu0 0
    %1307 = vmatpush1.bf16.xpose.msra.mxu0 %v1292
    %1308 = vmatprep.subr.bf16.mxu0 0
    %1309 = vmatpush1.bf16.xpose.msra.mxu0 %v1289
    %1310 = vmatprep.subr.bf16.mxu0 0
    %1311 = vmatpush2.bf16.xpose.msra.mxu0 0
    %1312 = vmatprep.subr.bf16.mxu0 0
    %1313 = vmatpush2.bf16.xpose.msra.mxu0 0
    %1314 = vmatprep.subr.bf16.mxu0 0
    %1315 = vmatpush2.bf16.xpose.msra.mxu0 0
    %1316 = vmatprep.subr.bf16.mxu0 0
    %1317 = vmatpush2.bf16.xpose.msra.mxu0 0
    %1318 = vmatprep.subr.bf16.mxu0 0
    %1319 = vmatpush2.bf16.xpose.msra.mxu0 0
    %1320 = vmatprep.subr.bf16.mxu0 0
    %1321 = vmatpush2.bf16.xpose.msra.mxu0 0
    %1322 = vmatprep.subr.bf16.mxu0 0
    %1323 = vmatpush2.bf16.xpose.msra.mxu0 0
    %1324 = vmatprep.subr.bf16.mxu0 0
    %1325 = vmatpush2.bf16.xpose.msra.mxu0 0
    %1326 = vmatprep.mubr.bf16.mxu0 0
    %1327 = vmatmul.mubr.bf16.gmra.mxu0 %v1283
    %v1328 = vpop.f32.mrf.mxu0
    %v1329 = vadd.f32 0.0, %v1328
    %v1330 = vpop.f32.mrf.mxu0
    %v1331 = vpop.f32.mrf.mxu0
    %v1332 = vadd.f32 0.0, %v1331
    %v1333 = vpop.f32.mrf.mxu0
    %1334 = vmatprep.mubr.bf16.mxu0 0
    %1335 = vmatmul.mubr.bf16.gmra.mxu0 %v1286
    %v1336 = vpop.f32.mrf.mxu0
    %v1337 = vadd.f32 0.0, %v1336
    %v1338 = vpop.f32.mrf.mxu0
    %v1339 = vpop.f32.mrf.mxu0
    %v1340 = vadd.f32 0.0, %v1339
    %v1341 = vpop.f32.mrf.mxu0
    %1342 = vdwg.mxu0
    %v1343 = vmul.f32 %v1329, 0.35355338
    %v1344 = vmul.f32 %v1332, 0.35355338
    %v1345 = vmul.f32 %v1337, 0.35355338
    %v1346 = vmul.f32 %v1340, 0.35355338
    %v1347 = vadd.f32 %v1343, %v39
    %v1348 = vadd.f32 %v1344, %v40
    %v1349 = vadd.f32 %v1345, %v41
    %v1350 = vadd.f32 %v1346, %v42
    %v1351 = vsel %vm47, %v1347, -inf
    %1352 = vmax.xlane.f32.xlu0 %v1351
    %v1353 = vpop.xlane.xlu0 %1352
    %v1354 = vsel %vm47, %v1348, -inf
    %1355 = vmax.xlane.f32.xlu0 %v1354
    %v1356 = vpop.xlane.xlu0 %1355
    %v1357 = vsel %vm47, %v1349, -inf
    %1358 = vmax.xlane.f32.xlu0 %v1357
    %v1359 = vpop.xlane.xlu0 %1358
    %v1360 = vsel %vm47, %v1350, -inf
    %1361 = vmax.xlane.f32.xlu0 %v1360
    %v1362 = vpop.xlane.xlu0 %1361
    %v1363 = vsub.f32 %v1347, %v1353
    %v1364 = vsub.f32 %v1348, %v1356
    %v1365 = vsub.f32 %v1349, %v1359
    %v1366 = vsub.f32 %v1350, %v1362
    %v1367 = vmul.f32 %v1363, 1.442695
    %v1368 = vpow.pop %v1367
    %v1369 = vmul.f32 %v1364, 1.442695
    %v1370 = vpow.pop %v1369
    %v1371 = vmul.f32 %v1365, 1.442695
    %v1372 = vpow.pop %v1371
    %v1373 = vmul.f32 %v1366, 1.442695
    %v1374 = vpow.pop %v1373
    %v1375 = vsel %vm47, %v1368, 0.0
    %1376 = vadd.xlane.f32.xlu0 %v1375
    %v1377 = vpop.xlane.xlu0 %1376
    %v1378 = vsel %vm47, %v1370, 0.0
    %1379 = vadd.xlane.f32.xlu0 %v1378
    %v1380 = vpop.xlane.xlu0 %1379
    %v1381 = vsel %vm47, %v1372, 0.0
    %1382 = vadd.xlane.f32.xlu0 %v1381
    %v1383 = vpop.xlane.xlu0 %1382
    %v1384 = vsel %vm47, %v1374, 0.0
    %1385 = vadd.xlane.f32.xlu0 %v1384
    %v1386 = vpop.xlane.xlu0 %1385
    %v1387 = vrcp.pop %v1377
    %v1388 = vrcp.pop %v1380
    %v1389 = vrcp.pop %v1383
    %v1390 = vrcp.pop %v1386
    %v1391 = vmul.f32 %v1368, %v1387
    %v1392 = vmul.f32 %v1370, %v1388
    %v1393 = vmul.f32 %v1372, %v1389
    %v1394 = vmul.f32 %v1374, %v1390
    %v1395 = vpack.c.bf16 %v1392, %v1391
    %v1396 = vpack.c.bf16 %v1394, %v1393
    %1397 = vrot.lane.b32.xlu0 %v533, 40
    %v1398 = vpop.permute.xlu0 %1397
    %1399 = vrot.lane.b32.xlu0 %v534, 40
    %v1400 = vpop.permute.xlu0 %1399
    %v1404 = vsel %vm47, %v1395, 0
    %v1407 = vsel %vm47, %v1396, 0
    %1409 = vmatprep.subr.bf16.mxu0 0
    %1410 = vmatpush1.bf16.msra.mxu0 0
    %1411 = vmatprep.subr.bf16.mxu0 0
    %1412 = vmatpush1.bf16.msra.mxu0 0
    %1413 = vmatprep.subr.bf16.mxu0 0
    %1414 = vmatpush1.bf16.msra.mxu0 0
    %1415 = vmatprep.subr.bf16.mxu0 0
    %1416 = vmatpush1.bf16.msra.mxu0 0
    %1417 = vmatprep.subr.bf16.mxu0 0
    %1418 = vmatpush1.bf16.msra.mxu0 0
    %1419 = vmatprep.subr.bf16.mxu0 0
    %1420 = vmatpush1.bf16.msra.mxu0 0
    %1421 = vmatprep.subr.bf16.mxu0 0
    %1422 = vmatpush1.bf16.msra.mxu0 %v1400
    %1423 = vmatprep.subr.bf16.mxu0 0
    %1424 = vmatpush1.bf16.msra.mxu0 %v1398
    %1425 = vmatprep.subr.bf16.mxu0 0
    %1426 = vmatpush2.bf16.msra.mxu0 0
    %1427 = vmatprep.subr.bf16.mxu0 0
    %1428 = vmatpush2.bf16.msra.mxu0 0
    %1429 = vmatprep.subr.bf16.mxu0 0
    %1430 = vmatpush2.bf16.msra.mxu0 0
    %1431 = vmatprep.subr.bf16.mxu0 0
    %1432 = vmatpush2.bf16.msra.mxu0 0
    %1433 = vmatprep.subr.bf16.mxu0 0
    %1434 = vmatpush2.bf16.msra.mxu0 0
    %1435 = vmatprep.subr.bf16.mxu0 0
    %1436 = vmatpush2.bf16.msra.mxu0 0
    %1437 = vmatprep.subr.bf16.mxu0 0
    %1438 = vmatpush2.bf16.msra.mxu0 0
    %1439 = vmatprep.subr.bf16.mxu0 0
    %1440 = vmatpush2.bf16.msra.mxu0 0
    %1441 = vmatprep.mubr.bf16.mxu0 0
    %1442 = vmatmul.mubr.bf16.gmra.mxu0 %v1404
    %v1443 = vpop.f32.mrf.mxu0
    %v1444 = vadd.f32 0.0, %v1443
    %v1445 = vpop.f32.mrf.mxu0
    %v1446 = vpop.f32.mrf.mxu0
    %v1447 = vadd.f32 0.0, %v1446
    %v1448 = vpop.f32.mrf.mxu0
    %1449 = vmatprep.mubr.bf16.mxu0 0
    %1450 = vmatmul.mubr.bf16.gmra.mxu0 %v1407
    %v1451 = vpop.f32.mrf.mxu0
    %v1452 = vadd.f32 0.0, %v1451
    %v1453 = vpop.f32.mrf.mxu0
    %v1454 = vpop.f32.mrf.mxu0
    %v1455 = vadd.f32 0.0, %v1454
    %v1456 = vpop.f32.mrf.mxu0
    %1457 = vdwg.mxu0
    %v1458 = vpack.c.bf16 %v1447, %v1444
    %v1459 = vpack.c.bf16 %v1455, %v1452
    %v1460 = vpack.c.bf16 %v532, %v532
    %v1462 = vsel %vm541, %v1458, 0
    %v1465 = vsel %vm541, %v1459, 0
    %v1468 = vsel %vm914, %v1460, 0
    %1470 = vmatprep.subr.bf16.mxu0 0
    %1471 = vmatpush1.bf16.msra.mxu0 0
    %1472 = vmatprep.subr.bf16.mxu0 0
    %1473 = vmatpush1.bf16.msra.mxu0 0
    %1474 = vmatprep.subr.bf16.mxu0 0
    %1475 = vmatpush1.bf16.msra.mxu0 0
    %1476 = vmatprep.subr.bf16.mxu0 0
    %1477 = vmatpush1.bf16.msra.mxu0 0
    %1478 = vmatprep.subr.bf16.mxu0 0
    %1479 = vmatpush1.bf16.msra.mxu0 0
    %1480 = vmatprep.subr.bf16.mxu0 0
    %1481 = vmatpush1.bf16.msra.mxu0 0
    %1482 = vmatprep.subr.bf16.mxu0 0
    %1483 = vmatpush1.bf16.msra.mxu0 0
    %1484 = vmatprep.subr.bf16.mxu0 0
    %1485 = vmatpush1.bf16.msra.mxu0 %v1468
    %1486 = vmatprep.subr.bf16.mxu0 0
    %1487 = vmatpush2.bf16.msra.mxu0 0
    %1488 = vmatprep.subr.bf16.mxu0 0
    %1489 = vmatpush2.bf16.msra.mxu0 0
    %1490 = vmatprep.subr.bf16.mxu0 0
    %1491 = vmatpush2.bf16.msra.mxu0 0
    %1492 = vmatprep.subr.bf16.mxu0 0
    %1493 = vmatpush2.bf16.msra.mxu0 0
    %1494 = vmatprep.subr.bf16.mxu0 0
    %1495 = vmatpush2.bf16.msra.mxu0 0
    %1496 = vmatprep.subr.bf16.mxu0 0
    %1497 = vmatpush2.bf16.msra.mxu0 0
    %1498 = vmatprep.subr.bf16.mxu0 0
    %1499 = vmatpush2.bf16.msra.mxu0 0
    %1500 = vmatprep.subr.bf16.mxu0 0
    %1501 = vmatpush2.bf16.msra.mxu0 0
    %1502 = vmatprep.mubr.bf16.mxu0 0
    %1503 = vmatmul.mubr.bf16.gmra.mxu0 %v1462
    %v1504 = vpop.f32.mrf.mxu0
    %v1505 = vadd.f32 0.0, %v1504
    %v1506 = vpop.f32.mrf.mxu0
    %v1507 = vpop.f32.mrf.mxu0
    %v1508 = vadd.f32 0.0, %v1507
    %v1509 = vpop.f32.mrf.mxu0
    %1510 = vmatprep.mubr.bf16.mxu0 0
    %1511 = vmatmul.mubr.bf16.gmra.mxu0 %v1465
    %v1512 = vpop.f32.mrf.mxu0
    %v1513 = vadd.f32 0.0, %v1512
    %v1514 = vpop.f32.mrf.mxu0
    %v1515 = vpop.f32.mrf.mxu0
    %v1516 = vadd.f32 0.0, %v1515
    %v1517 = vpop.f32.mrf.mxu0
    %1518 = vdwg.mxu0
    %v1519 = vadd.f32 %v1270, %v1505
    %v1520 = vadd.f32 %v1271, %v1508
    %v1521 = vadd.f32 %v1272, %v1513
    %v1522 = vadd.f32 %v1273, %v1516
    %v1523 = vadd.f32 %v374, %v1519
    %v1524 = vadd.f32 %v375, %v1520
    %v1525 = vadd.f32 %v376, %v1521
    %v1526 = vadd.f32 %v377, %v1522
    %v1527 = vlaneseq
    %v1528 = vshrl.u32 %v1527, 7
    %v1529 = vsub.s32 5, %v1528
    %v1530 = vrot.slane %v43, %v1529
    %v1531 = vadd.f32 %v1523, %v1530
    %v1532 = vadd.f32 %v1524, %v1530
    %v1533 = vadd.f32 %v1525, %v1530
    %v1534 = vadd.f32 %v1526, %v1530
    %v1535 = vsel %vm47, %v1531, 0.0
    %1536 = vadd.xlane.f32.xlu0 %v1535
    %v1537 = vpop.xlane.xlu0 %1536
    %v1538 = vsel %vm47, %v1532, 0.0
    %1539 = vadd.xlane.f32.xlu0 %v1538
    %v1540 = vpop.xlane.xlu0 %1539
    %v1541 = vsel %vm47, %v1533, 0.0
    %1542 = vadd.xlane.f32.xlu0 %v1541
    %v1543 = vpop.xlane.xlu0 %1542
    %v1544 = vsel %vm47, %v1534, 0.0
    %1545 = vadd.xlane.f32.xlu0 %v1544
    %v1546 = vpop.xlane.xlu0 %1545
    %v1547 = vmul.f32 %v1537, %v60
    %v1548 = vmul.f32 %v1540, %v60
    %v1549 = vmul.f32 %v1543, %v60
    %v1550 = vmul.f32 %v1546, %v60
    %v1551 = vsub.f32 %v1531, %v1547
    %v1552 = vsub.f32 %v1532, %v1548
    %v1553 = vsub.f32 %v1533, %v1549
    %v1554 = vsub.f32 %v1534, %v1550
    %v1555 = vmul.f32 %v1551, %v1551
    %v1556 = vmul.f32 %v1552, %v1552
    %v1557 = vmul.f32 %v1553, %v1553
    %v1558 = vmul.f32 %v1554, %v1554
    %v1559 = vsel %vm47, %v1555, 0.0
    %1560 = vadd.xlane.f32.xlu0 %v1559
    %v1561 = vpop.xlane.xlu0 %1560
    %v1562 = vsel %vm47, %v1556, 0.0
    %1563 = vadd.xlane.f32.xlu0 %v1562
    %v1564 = vpop.xlane.xlu0 %1563
    %v1565 = vsel %vm47, %v1557, 0.0
    %1566 = vadd.xlane.f32.xlu0 %v1565
    %v1567 = vpop.xlane.xlu0 %1566
    %v1568 = vsel %vm47, %v1558, 0.0
    %1569 = vadd.xlane.f32.xlu0 %v1568
    %v1570 = vpop.xlane.xlu0 %1569
    %v1571 = vmul.f32 %v1561, %v60
    %v1572 = vmul.f32 %v1564, %v60
    %v1573 = vmul.f32 %v1567, %v60
    %v1574 = vmul.f32 %v1570, %v60
    %v1575 = vadd.f32 %v1571, 1e-06
    %v1576 = vadd.f32 %v1572, 1e-06
    %v1577 = vadd.f32 %v1573, 1e-06
    %v1578 = vadd.f32 %v1574, 1e-06
    %v1579 = vrsqrt.pop %v1575
    %v1580 = vrsqrt.pop %v1576
    %v1581 = vrsqrt.pop %v1577
    %v1582 = vrsqrt.pop %v1578
    %v1583 = vmul.f32 %v1551, %v1579
    %v1584 = vmul.f32 %v1552, %v1580
    %v1585 = vmul.f32 %v1553, %v1581
    %v1586 = vmul.f32 %v1554, %v1582
    %v1587 = vlaneseq
    %v1588 = vshrl.u32 %v1587, 7
    %v1589 = vsub.s32 6, %v1588
    %v1590 = vrot.slane %v101, %v1589
    %v1591 = vmul.f32 %v1583, %v1590
    %v1592 = vmul.f32 %v1584, %v1590
    %v1593 = vmul.f32 %v1585, %v1590
    %v1594 = vmul.f32 %v1586, %v1590
    %v1595 = vlaneseq
    %v1596 = vshrl.u32 %v1595, 7
    %v1597 = vsub.s32 7, %v1596
    %v1598 = vrot.slane %v43, %v1597
    %v1599 = vadd.f32 %v1591, %v1598
    %v1600 = vadd.f32 %v1592, %v1598
    %v1601 = vadd.f32 %v1593, %v1598
    %v1602 = vadd.f32 %v1594, %v1598
    %s1603 = scalar_lea.vmem %s6, 48
    %v1604 = vld [vmem:[%s1603] sm:$0xf]
    %v1605 = vld [vmem:[%s1603 + $0x4] sm:$0xf]
    %v1606 = vld [vmem:[%s1603 + $0x8] sm:$0xf]
    %v1607 = vld [vmem:[%s1603 + $0xc] sm:$0xf]
    %v1608 = vpack.c.bf16 %v1600, %v1599
    %v1609 = vpack.c.bf16 %v1602, %v1601
    %v1610 = vlaneseq
    %v1611 = vshrl.u32 %v1610, 7
    %v1612 = vsub.s32 3, %v1611
    %v1613 = vrot.slane %v46, %v1612
    %v1618 = vunpack.c.l.b16 %v1604
    %v1619 = vunpack.c.l.b16 %v1605
    %v1620 = vunpack.c.l.b16 %v1606
    %v1621 = vunpack.c.l.b16 %v1607
    %v1622 = vpack.c.b16 %v1619, %v1618
    %v1623 = vpack.c.b16 %v1621, %v1620
    %v1627 = vsel %vm47, %v1608, 0
    %v1630 = vsel %vm47, %v1609, 0
    %1632 = vmatprep.subr.bf16.mxu0 0
    %1633 = vmatpush1.bf16.msra.mxu0 0
    %1634 = vmatprep.subr.bf16.mxu0 0
    %1635 = vmatpush1.bf16.msra.mxu0 0
    %1636 = vmatprep.subr.bf16.mxu0 0
    %1637 = vmatpush1.bf16.msra.mxu0 0
    %1638 = vmatprep.subr.bf16.mxu0 0
    %1639 = vmatpush1.bf16.msra.mxu0 0
    %1640 = vmatprep.subr.bf16.mxu0 0
    %1641 = vmatpush1.bf16.msra.mxu0 0
    %1642 = vmatprep.subr.bf16.mxu0 0
    %1643 = vmatpush1.bf16.msra.mxu0 0
    %1644 = vmatprep.subr.bf16.mxu0 0
    %1645 = vmatpush1.bf16.msra.mxu0 %v1623
    %1646 = vmatprep.subr.bf16.mxu0 0
    %1647 = vmatpush1.bf16.msra.mxu0 %v1622
    %1648 = vmatprep.subr.bf16.mxu0 0
    %1649 = vmatpush2.bf16.msra.mxu0 0
    %1650 = vmatprep.subr.bf16.mxu0 0
    %1651 = vmatpush2.bf16.msra.mxu0 0
    %1652 = vmatprep.subr.bf16.mxu0 0
    %1653 = vmatpush2.bf16.msra.mxu0 0
    %1654 = vmatprep.subr.bf16.mxu0 0
    %1655 = vmatpush2.bf16.msra.mxu0 0
    %1656 = vmatprep.subr.bf16.mxu0 0
    %1657 = vmatpush2.bf16.msra.mxu0 0
    %1658 = vmatprep.subr.bf16.mxu0 0
    %1659 = vmatpush2.bf16.msra.mxu0 0
    %1660 = vmatprep.subr.bf16.mxu0 0
    %1661 = vmatpush2.bf16.msra.mxu0 0
    %1662 = vmatprep.subr.bf16.mxu0 0
    %1663 = vmatpush2.bf16.msra.mxu0 0
    %1664 = vmatprep.mubr.bf16.mxu0 0
    %1665 = vmatmul.mubr.bf16.gmra.mxu0 %v1627
    %v1666 = vpop.f32.mrf.mxu0
    %v1667 = vadd.f32 %v1613, %v1666
    %v1668 = vpop.f32.mrf.mxu0
    %v1669 = vpop.f32.mrf.mxu0
    %v1670 = vadd.f32 %v1613, %v1669
    %v1671 = vpop.f32.mrf.mxu0
    %1672 = vmatprep.mubr.bf16.mxu0 0
    %1673 = vmatmul.mubr.bf16.gmra.mxu0 %v1630
    %v1674 = vpop.f32.mrf.mxu0
    %v1675 = vadd.f32 %v1613, %v1674
    %v1676 = vpop.f32.mrf.mxu0
    %v1677 = vpop.f32.mrf.mxu0
    %v1678 = vadd.f32 %v1613, %v1677
    %v1679 = vpop.f32.mrf.mxu0
    %1680 = vdwg.mxu0
    %v1681 = vxor.u32 %v1667, 2147483648
    %v1682 = vxor.u32 %v1670, 2147483648
    %v1683 = vxor.u32 %v1675, 2147483648
    %v1684 = vxor.u32 %v1678, 2147483648
    %v1685 = vmul.f32 %v1681, 1.442695
    %v1686 = vpow.pop %v1685
    %v1687 = vmul.f32 %v1682, 1.442695
    %v1688 = vpow.pop %v1687
    %v1689 = vmul.f32 %v1683, 1.442695
    %v1690 = vpow.pop %v1689
    %v1691 = vmul.f32 %v1684, 1.442695
    %v1692 = vpow.pop %v1691
    %v1693 = vadd.f32 %v1686, 1.0
    %v1694 = vadd.f32 %v1688, 1.0
    %v1695 = vadd.f32 %v1690, 1.0
    %v1696 = vadd.f32 %v1692, 1.0
    %v1697 = vrcp.pop %v1693
    %v1698 = vmul.f32 1.0, %v1697
    %v1699 = vrcp.pop %v1694
    %v1700 = vmul.f32 1.0, %v1699
    %v1701 = vrcp.pop %v1695
    %v1702 = vmul.f32 1.0, %v1701
    %v1703 = vrcp.pop %v1696
    %v1704 = vmul.f32 1.0, %v1703
    %1709 = vrot.lane.b32.xlu0 %v1698, 96
    %v1710 = vpop.permute.xlu0 %1709
    %1711 = vrot.lane.b32.xlu0 %v1700, 96
    %v1712 = vpop.permute.xlu0 %1711
    %1713 = vrot.lane.b32.xlu0 %v1702, 96
    %v1714 = vpop.permute.xlu0 %1713
    %1715 = vrot.lane.b32.xlu0 %v1704, 96
    %v1716 = vpop.permute.xlu0 %1715
    %v1721 = vmul.f32 %v1667, %v1710
    %v1722 = vmul.f32 %v1670, %v1712
    %v1723 = vmul.f32 %v1675, %v1714
    %v1724 = vmul.f32 %v1678, %v1716
    %v1725 = vmul.f32 %v1721, %v226
    %v1726 = vmul.f32 %v1722, %v231
    %v1727 = vmul.f32 %v1723, %v236
    %v1728 = vmul.f32 %v1724, %v241
    %v1729 = vlaneseq
    %v1730 = vshrl.u32 %v1729, 7
    %v1731 = vsub.s32 2, %v1730
    %v1732 = vrot.slane %v45, %v1731
    %v1733 = vmul.f32 %v1725, %v1732
    %v1734 = vmul.f32 %v1726, %v1732
    %v1735 = vmul.f32 %v1727, %v1732
    %v1736 = vmul.f32 %v1728, %v1732
    %v1737 = vld [vmem:[%s3] sm:$0xff]
    %v1738 = vld [vmem:[%s3 + $0x8] sm:$0xff]
    %v1739 = vld [vmem:[%s3 + $0x10] sm:$0xff]
    %v1740 = vld [vmem:[%s3 + $0x18] sm:$0xff]
    %v1742 = vsel %vm47, %v1737, 0
    %v1745 = vsel %vm47, %v1738, 0
    %v1748 = vsel %vm47, %v1739, 0
    %v1751 = vsel %vm47, %v1740, 0
    %1753 = vmatprep.subr.mxu0 0.0
    %1754 = vmatpush1.msra.mxu0 0.0
    %1755 = vmatprep.subr.mxu0 0.0
    %1756 = vmatpush1.msra.mxu0 0.0
    %1757 = vmatprep.subr.mxu0 0.0
    %1758 = vmatpush1.msra.mxu0 0.0
    %1759 = vmatprep.subr.mxu0 0.0
    %1760 = vmatpush1.msra.mxu0 0.0
    %1761 = vmatprep.subr.mxu0 0.0
    %1762 = vmatpush1.msra.mxu0 0.0
    %1763 = vmatprep.subr.mxu0 0.0
    %1764 = vmatpush1.msra.mxu0 0.0
    %1765 = vmatprep.subr.mxu0 0.0
    %1766 = vmatpush1.msra.mxu0 0.0
    %1767 = vmatprep.subr.mxu0 0.0
    %1768 = vmatpush1.msra.mxu0 0.0
    %1769 = vmatprep.subr.mxu0 0.0
    %1770 = vmatpush1.msra.mxu0 0.0
    %1771 = vmatprep.subr.mxu0 0.0
    %1772 = vmatpush1.msra.mxu0 0.0
    %1773 = vmatprep.subr.mxu0 0.0
    %1774 = vmatpush1.msra.mxu0 0.0
    %1775 = vmatprep.subr.mxu0 0.0
    %1776 = vmatpush1.msra.mxu0 0.0
    %1777 = vmatprep.subr.mxu0 0.0
    %1778 = vmatpush1.msra.mxu0 %v1728
    %1779 = vmatprep.subr.mxu0 0.0
    %1780 = vmatpush1.msra.mxu0 %v1727
    %1781 = vmatprep.subr.mxu0 0.0
    %1782 = vmatpush1.msra.mxu0 %v1726
    %1783 = vmatprep.subr.mxu0 0.0
    %1784 = vmatpush1.msra.mxu0 %v1725
    %1785 = vmatprep.subr.mxu0 0.0
    %1786 = vmatpush2.msra.mxu0 0.0
    %1787 = vmatprep.subr.mxu0 0.0
    %1788 = vmatpush2.msra.mxu0 0.0
    %1789 = vmatprep.subr.mxu0 0.0
    %1790 = vmatpush2.msra.mxu0 0.0
    %1791 = vmatprep.subr.mxu0 0.0
    %1792 = vmatpush2.msra.mxu0 0.0
    %1793 = vmatprep.subr.mxu0 0.0
    %1794 = vmatpush2.msra.mxu0 0.0
    %1795 = vmatprep.subr.mxu0 0.0
    %1796 = vmatpush2.msra.mxu0 0.0
    %1797 = vmatprep.subr.mxu0 0.0
    %1798 = vmatpush2.msra.mxu0 0.0
    %1799 = vmatprep.subr.mxu0 0.0
    %1800 = vmatpush2.msra.mxu0 0.0
    %1801 = vmatprep.subr.mxu0 0.0
    %1802 = vmatpush2.msra.mxu0 0.0
    %1803 = vmatprep.subr.mxu0 0.0
    %1804 = vmatpush2.msra.mxu0 0.0
    %1805 = vmatprep.subr.mxu0 0.0
    %1806 = vmatpush2.msra.mxu0 0.0
    %1807 = vmatprep.subr.mxu0 0.0
    %1808 = vmatpush2.msra.mxu0 0.0
    %1809 = vmatprep.subr.mxu0 0.0
    %1810 = vmatpush2.msra.mxu0 0.0
    %1811 = vmatprep.subr.mxu0 0.0
    %1812 = vmatpush2.msra.mxu0 0.0
    %1813 = vmatprep.subr.mxu0 0.0
    %1814 = vmatpush2.msra.mxu0 0.0
    %1815 = vmatprep.subr.mxu0 0.0
    %1816 = vmatpush2.msra.mxu0 0.0
    %1817 = vmatprep.mubr.f32.mxu0 0.0
    %1818 = vmatmul.mubr.f32.gmra.mxu0 %v1742
    %v1819 = vpop.f32.mrf.mxu0
    %v1820 = vadd.f32 0.0, %v1819
    %v1821 = vpop.f32.mrf.mxu0
    %1822 = vmatprep.mubr.f32.mxu0 0.0
    %1823 = vmatmul.mubr.f32.gmra.mxu0 %v1745
    %v1824 = vpop.f32.mrf.mxu0
    %v1825 = vadd.f32 0.0, %v1824
    %v1826 = vpop.f32.mrf.mxu0
    %1827 = vmatprep.mubr.f32.mxu0 0.0
    %1828 = vmatmul.mubr.f32.gmra.mxu0 %v1748
    %v1829 = vpop.f32.mrf.mxu0
    %v1830 = vadd.f32 0.0, %v1829
    %v1831 = vpop.f32.mrf.mxu0
    %1832 = vmatprep.mubr.f32.mxu0 0.0
    %1833 = vmatmul.mubr.f32.gmra.mxu0 %v1751
    %v1834 = vpop.f32.mrf.mxu0
    %v1835 = vadd.f32 0.0, %v1834
    %v1836 = vpop.f32.mrf.mxu0
    %1837 = vdwg.mxu0
    %v1838 = vlaneseq
    %v1839 = vshrl.u32 %v1838, 7
    %v1840 = vsub.s32 0, %v1839
    %v1841 = vrot.slane %v45, %v1840
    %v1842 = vmul.f32 %v1820, %v1841
    %v1843 = vmul.f32 %v1825, %v1841
    %v1844 = vmul.f32 %v1830, %v1841
    %v1845 = vmul.f32 %v1835, %v1841
    %v1846 = vadd.f32 %v1733, %v1842
    %v1847 = vadd.f32 %v1734, %v1843
    %v1848 = vadd.f32 %v1735, %v1844
    %v1849 = vadd.f32 %v1736, %v1845
    %s1850 = scalar_lea.vmem %s3, 32
    %v1851 = vld [vmem:[%s1850] sm:$0xff]
    %v1852 = vld [vmem:[%s1850 + $0x8] sm:$0xff]
    %v1853 = vld [vmem:[%s1850 + $0x10] sm:$0xff]
    %v1854 = vld [vmem:[%s1850 + $0x18] sm:$0xff]
    %v1856 = vsel %vm47, %v1851, 0
    %v1859 = vsel %vm47, %v1852, 0
    %v1862 = vsel %vm47, %v1853, 0
    %v1865 = vsel %vm47, %v1854, 0
    %1867 = vmatprep.subr.mxu0 0.0
    %1868 = vmatpush1.msra.mxu0 0.0
    %1869 = vmatprep.subr.mxu0 0.0
    %1870 = vmatpush1.msra.mxu0 0.0
    %1871 = vmatprep.subr.mxu0 0.0
    %1872 = vmatpush1.msra.mxu0 0.0
    %1873 = vmatprep.subr.mxu0 0.0
    %1874 = vmatpush1.msra.mxu0 0.0
    %1875 = vmatprep.subr.mxu0 0.0
    %1876 = vmatpush1.msra.mxu0 0.0
    %1877 = vmatprep.subr.mxu0 0.0
    %1878 = vmatpush1.msra.mxu0 0.0
    %1879 = vmatprep.subr.mxu0 0.0
    %1880 = vmatpush1.msra.mxu0 0.0
    %1881 = vmatprep.subr.mxu0 0.0
    %1882 = vmatpush1.msra.mxu0 0.0
    %1883 = vmatprep.subr.mxu0 0.0
    %1884 = vmatpush1.msra.mxu0 0.0
    %1885 = vmatprep.subr.mxu0 0.0
    %1886 = vmatpush1.msra.mxu0 0.0
    %1887 = vmatprep.subr.mxu0 0.0
    %1888 = vmatpush1.msra.mxu0 0.0
    %1889 = vmatprep.subr.mxu0 0.0
    %1890 = vmatpush1.msra.mxu0 0.0
    %1891 = vmatprep.subr.mxu0 0.0
    %1892 = vmatpush1.msra.mxu0 %v1728
    %1893 = vmatprep.subr.mxu0 0.0
    %1894 = vmatpush1.msra.mxu0 %v1727
    %1895 = vmatprep.subr.mxu0 0.0
    %1896 = vmatpush1.msra.mxu0 %v1726
    %1897 = vmatprep.subr.mxu0 0.0
    %1898 = vmatpush1.msra.mxu0 %v1725
    %1899 = vmatprep.subr.mxu0 0.0
    %1900 = vmatpush2.msra.mxu0 0.0
    %1901 = vmatprep.subr.mxu0 0.0
    %1902 = vmatpush2.msra.mxu0 0.0
    %1903 = vmatprep.subr.mxu0 0.0
    %1904 = vmatpush2.msra.mxu0 0.0
    %1905 = vmatprep.subr.mxu0 0.0
    %1906 = vmatpush2.msra.mxu0 0.0
    %1907 = vmatprep.subr.mxu0 0.0
    %1908 = vmatpush2.msra.mxu0 0.0
    %1909 = vmatprep.subr.mxu0 0.0
    %1910 = vmatpush2.msra.mxu0 0.0
    %1911 = vmatprep.subr.mxu0 0.0
    %1912 = vmatpush2.msra.mxu0 0.0
    %1913 = vmatprep.subr.mxu0 0.0
    %1914 = vmatpush2.msra.mxu0 0.0
    %1915 = vmatprep.subr.mxu0 0.0
    %1916 = vmatpush2.msra.mxu0 0.0
    %1917 = vmatprep.subr.mxu0 0.0
    %1918 = vmatpush2.msra.mxu0 0.0
    %1919 = vmatprep.subr.mxu0 0.0
    %1920 = vmatpush2.msra.mxu0 0.0
    %1921 = vmatprep.subr.mxu0 0.0
    %1922 = vmatpush2.msra.mxu0 0.0
    %1923 = vmatprep.subr.mxu0 0.0
    %1924 = vmatpush2.msra.mxu0 0.0
    %1925 = vmatprep.subr.mxu0 0.0
    %1926 = vmatpush2.msra.mxu0 0.0
    %1927 = vmatprep.subr.mxu0 0.0
    %1928 = vmatpush2.msra.mxu0 0.0
    %1929 = vmatprep.subr.mxu0 0.0
    %1930 = vmatpush2.msra.mxu0 0.0
    %1931 = vmatprep.mubr.f32.mxu0 0.0
    %1932 = vmatmul.mubr.f32.gmra.mxu0 %v1856
    %v1933 = vpop.f32.mrf.mxu0
    %v1934 = vadd.f32 0.0, %v1933
    %v1935 = vpop.f32.mrf.mxu0
    %1936 = vmatprep.mubr.f32.mxu0 0.0
    %1937 = vmatmul.mubr.f32.gmra.mxu0 %v1859
    %v1938 = vpop.f32.mrf.mxu0
    %v1939 = vadd.f32 0.0, %v1938
    %v1940 = vpop.f32.mrf.mxu0
    %1941 = vmatprep.mubr.f32.mxu0 0.0
    %1942 = vmatmul.mubr.f32.gmra.mxu0 %v1862
    %v1943 = vpop.f32.mrf.mxu0
    %v1944 = vadd.f32 0.0, %v1943
    %v1945 = vpop.f32.mrf.mxu0
    %1946 = vmatprep.mubr.f32.mxu0 0.0
    %1947 = vmatmul.mubr.f32.gmra.mxu0 %v1865
    %v1948 = vpop.f32.mrf.mxu0
    %v1949 = vadd.f32 0.0, %v1948
    %v1950 = vpop.f32.mrf.mxu0
    %1951 = vdwg.mxu0
    %v1952 = vlaneseq
    %v1953 = vshrl.u32 %v1952, 7
    %v1954 = vsub.s32 1, %v1953
    %v1955 = vrot.slane %v45, %v1954
    %v1956 = vmul.f32 %v1934, %v1955
    %v1957 = vmul.f32 %v1939, %v1955
    %v1958 = vmul.f32 %v1944, %v1955
    %v1959 = vmul.f32 %v1949, %v1955
    %v1960 = vadd.f32 %v1846, %v1956
    %v1961 = vadd.f32 %v1847, %v1957
    %v1962 = vadd.f32 %v1848, %v1958
    %v1963 = vadd.f32 %v1849, %v1959
    %s1964 = scalar_lea.vmem %s3, 64
    %v1965 = vld [vmem:[%s1964] sm:$0xff]
    %v1966 = vld [vmem:[%s1964 + $0x8] sm:$0xff]
    %v1967 = vld [vmem:[%s1964 + $0x10] sm:$0xff]
    %v1968 = vld [vmem:[%s1964 + $0x18] sm:$0xff]
    %v1970 = vsel %vm47, %v1965, 0
    %v1973 = vsel %vm47, %v1966, 0
    %v1976 = vsel %vm47, %v1967, 0
    %v1979 = vsel %vm47, %v1968, 0
    %1981 = vmatprep.subr.mxu0 0.0
    %1982 = vmatpush1.msra.mxu0 0.0
    %1983 = vmatprep.subr.mxu0 0.0
    %1984 = vmatpush1.msra.mxu0 0.0
    %1985 = vmatprep.subr.mxu0 0.0
    %1986 = vmatpush1.msra.mxu0 0.0
    %1987 = vmatprep.subr.mxu0 0.0
    %1988 = vmatpush1.msra.mxu0 0.0
    %1989 = vmatprep.subr.mxu0 0.0
    %1990 = vmatpush1.msra.mxu0 0.0
    %1991 = vmatprep.subr.mxu0 0.0
    %1992 = vmatpush1.msra.mxu0 0.0
    %1993 = vmatprep.subr.mxu0 0.0
    %1994 = vmatpush1.msra.mxu0 0.0
    %1995 = vmatprep.subr.mxu0 0.0
    %1996 = vmatpush1.msra.mxu0 0.0
    %1997 = vmatprep.subr.mxu0 0.0
    %1998 = vmatpush1.msra.mxu0 0.0
    %1999 = vmatprep.subr.mxu0 0.0
    %2000 = vmatpush1.msra.mxu0 0.0
    %2001 = vmatprep.subr.mxu0 0.0
    %2002 = vmatpush1.msra.mxu0 0.0
    %2003 = vmatprep.subr.mxu0 0.0
    %2004 = vmatpush1.msra.mxu0 0.0
    %2005 = vmatprep.subr.mxu0 0.0
    %2006 = vmatpush1.msra.mxu0 %v1728
    %2007 = vmatprep.subr.mxu0 0.0
    %2008 = vmatpush1.msra.mxu0 %v1727
    %2009 = vmatprep.subr.mxu0 0.0
    %2010 = vmatpush1.msra.mxu0 %v1726
    %2011 = vmatprep.subr.mxu0 0.0
    %2012 = vmatpush1.msra.mxu0 %v1725
    %2013 = vmatprep.subr.mxu0 0.0
    %2014 = vmatpush2.msra.mxu0 0.0
    %2015 = vmatprep.subr.mxu0 0.0
    %2016 = vmatpush2.msra.mxu0 0.0
    %2017 = vmatprep.subr.mxu0 0.0
    %2018 = vmatpush2.msra.mxu0 0.0
    %2019 = vmatprep.subr.mxu0 0.0
    %2020 = vmatpush2.msra.mxu0 0.0
    %2021 = vmatprep.subr.mxu0 0.0
    %2022 = vmatpush2.msra.mxu0 0.0
    %2023 = vmatprep.subr.mxu0 0.0
    %2024 = vmatpush2.msra.mxu0 0.0
    %2025 = vmatprep.subr.mxu0 0.0
    %2026 = vmatpush2.msra.mxu0 0.0
    %2027 = vmatprep.subr.mxu0 0.0
    %2028 = vmatpush2.msra.mxu0 0.0
    %2029 = vmatprep.subr.mxu0 0.0
    %2030 = vmatpush2.msra.mxu0 0.0
    %2031 = vmatprep.subr.mxu0 0.0
    %2032 = vmatpush2.msra.mxu0 0.0
    %2033 = vmatprep.subr.mxu0 0.0
    %2034 = vmatpush2.msra.mxu0 0.0
    %2035 = vmatprep.subr.mxu0 0.0
    %2036 = vmatpush2.msra.mxu0 0.0
    %2037 = vmatprep.subr.mxu0 0.0
    %2038 = vmatpush2.msra.mxu0 0.0
    %2039 = vmatprep.subr.mxu0 0.0
    %2040 = vmatpush2.msra.mxu0 0.0
    %2041 = vmatprep.subr.mxu0 0.0
    %2042 = vmatpush2.msra.mxu0 0.0
    %2043 = vmatprep.subr.mxu0 0.0
    %2044 = vmatpush2.msra.mxu0 0.0
    %2045 = vmatprep.mubr.f32.mxu0 0.0
    %2046 = vmatmul.mubr.f32.gmra.mxu0 %v1970
    %v2047 = vpop.f32.mrf.mxu0
    %v2048 = vadd.f32 0.0, %v2047
    %v2049 = vpop.f32.mrf.mxu0
    %2050 = vmatprep.mubr.f32.mxu0 0.0
    %2051 = vmatmul.mubr.f32.gmra.mxu0 %v1973
    %v2052 = vpop.f32.mrf.mxu0
    %v2053 = vadd.f32 0.0, %v2052
    %v2054 = vpop.f32.mrf.mxu0
    %2055 = vmatprep.mubr.f32.mxu0 0.0
    %2056 = vmatmul.mubr.f32.gmra.mxu0 %v1976
    %v2057 = vpop.f32.mrf.mxu0
    %v2058 = vadd.f32 0.0, %v2057
    %v2059 = vpop.f32.mrf.mxu0
    %2060 = vmatprep.mubr.f32.mxu0 0.0
    %2061 = vmatmul.mubr.f32.gmra.mxu0 %v1979
    %v2062 = vpop.f32.mrf.mxu0
    %v2063 = vadd.f32 0.0, %v2062
    %v2064 = vpop.f32.mrf.mxu0
    %2065 = vdwg.mxu0
    %v2066 = vlaneseq
    %v2067 = vshrl.u32 %v2066, 7
    %v2068 = vsub.s32 3, %v2067
    %v2069 = vrot.slane %v45, %v2068
    %v2070 = vmul.f32 %v2048, %v2069
    %v2071 = vmul.f32 %v2053, %v2069
    %v2072 = vmul.f32 %v2058, %v2069
    %v2073 = vmul.f32 %v2063, %v2069
    %v2074 = vadd.f32 %v1960, %v2070
    %v2075 = vadd.f32 %v1961, %v2071
    %v2076 = vadd.f32 %v1962, %v2072
    %v2077 = vadd.f32 %v1963, %v2073
    %s2078 = scalar_lea.vmem %s3, 96
    %v2079 = vld [vmem:[%s2078] sm:$0xff]
    %v2080 = vld [vmem:[%s2078 + $0x8] sm:$0xff]
    %v2081 = vld [vmem:[%s2078 + $0x10] sm:$0xff]
    %v2082 = vld [vmem:[%s2078 + $0x18] sm:$0xff]
    %v2084 = vsel %vm47, %v2079, 0
    %v2087 = vsel %vm47, %v2080, 0
    %v2090 = vsel %vm47, %v2081, 0
    %v2093 = vsel %vm47, %v2082, 0
    %2095 = vmatprep.subr.mxu0 0.0
    %2096 = vmatpush1.msra.mxu0 0.0
    %2097 = vmatprep.subr.mxu0 0.0
    %2098 = vmatpush1.msra.mxu0 0.0
    %2099 = vmatprep.subr.mxu0 0.0
    %2100 = vmatpush1.msra.mxu0 0.0
    %2101 = vmatprep.subr.mxu0 0.0
    %2102 = vmatpush1.msra.mxu0 0.0
    %2103 = vmatprep.subr.mxu0 0.0
    %2104 = vmatpush1.msra.mxu0 0.0
    %2105 = vmatprep.subr.mxu0 0.0
    %2106 = vmatpush1.msra.mxu0 0.0
    %2107 = vmatprep.subr.mxu0 0.0
    %2108 = vmatpush1.msra.mxu0 0.0
    %2109 = vmatprep.subr.mxu0 0.0
    %2110 = vmatpush1.msra.mxu0 0.0
    %2111 = vmatprep.subr.mxu0 0.0
    %2112 = vmatpush1.msra.mxu0 0.0
    %2113 = vmatprep.subr.mxu0 0.0
    %2114 = vmatpush1.msra.mxu0 0.0
    %2115 = vmatprep.subr.mxu0 0.0
    %2116 = vmatpush1.msra.mxu0 0.0
    %2117 = vmatprep.subr.mxu0 0.0
    %2118 = vmatpush1.msra.mxu0 0.0
    %2119 = vmatprep.subr.mxu0 0.0
    %2120 = vmatpush1.msra.mxu0 %v1728
    %2121 = vmatprep.subr.mxu0 0.0
    %2122 = vmatpush1.msra.mxu0 %v1727
    %2123 = vmatprep.subr.mxu0 0.0
    %2124 = vmatpush1.msra.mxu0 %v1726
    %2125 = vmatprep.subr.mxu0 0.0
    %2126 = vmatpush1.msra.mxu0 %v1725
    %2127 = vmatprep.subr.mxu0 0.0
    %2128 = vmatpush2.msra.mxu0 0.0
    %2129 = vmatprep.subr.mxu0 0.0
    %2130 = vmatpush2.msra.mxu0 0.0
    %2131 = vmatprep.subr.mxu0 0.0
    %2132 = vmatpush2.msra.mxu0 0.0
    %2133 = vmatprep.subr.mxu0 0.0
    %2134 = vmatpush2.msra.mxu0 0.0
    %2135 = vmatprep.subr.mxu0 0.0
    %2136 = vmatpush2.msra.mxu0 0.0
    %2137 = vmatprep.subr.mxu0 0.0
    %2138 = vmatpush2.msra.mxu0 0.0
    %2139 = vmatprep.subr.mxu0 0.0
    %2140 = vmatpush2.msra.mxu0 0.0
    %2141 = vmatprep.subr.mxu0 0.0
    %2142 = vmatpush2.msra.mxu0 0.0
    %2143 = vmatprep.subr.mxu0 0.0
    %2144 = vmatpush2.msra.mxu0 0.0
    %2145 = vmatprep.subr.mxu0 0.0
    %2146 = vmatpush2.msra.mxu0 0.0
    %2147 = vmatprep.subr.mxu0 0.0
    %2148 = vmatpush2.msra.mxu0 0.0
    %2149 = vmatprep.subr.mxu0 0.0
    %2150 = vmatpush2.msra.mxu0 0.0
    %2151 = vmatprep.subr.mxu0 0.0
    %2152 = vmatpush2.msra.mxu0 0.0
    %2153 = vmatprep.subr.mxu0 0.0
    %2154 = vmatpush2.msra.mxu0 0.0
    %2155 = vmatprep.subr.mxu0 0.0
    %2156 = vmatpush2.msra.mxu0 0.0
    %2157 = vmatprep.subr.mxu0 0.0
    %2158 = vmatpush2.msra.mxu0 0.0
    %2159 = vmatprep.mubr.f32.mxu0 0.0
    %2160 = vmatmul.mubr.f32.gmra.mxu0 %v2084
    %v2161 = vpop.f32.mrf.mxu0
    %v2162 = vadd.f32 0.0, %v2161
    %v2163 = vpop.f32.mrf.mxu0
    %2164 = vmatprep.mubr.f32.mxu0 0.0
    %2165 = vmatmul.mubr.f32.gmra.mxu0 %v2087
    %v2166 = vpop.f32.mrf.mxu0
    %v2167 = vadd.f32 0.0, %v2166
    %v2168 = vpop.f32.mrf.mxu0
    %2169 = vmatprep.mubr.f32.mxu0 0.0
    %2170 = vmatmul.mubr.f32.gmra.mxu0 %v2090
    %v2171 = vpop.f32.mrf.mxu0
    %v2172 = vadd.f32 0.0, %v2171
    %v2173 = vpop.f32.mrf.mxu0
    %2174 = vmatprep.mubr.f32.mxu0 0.0
    %2175 = vmatmul.mubr.f32.gmra.mxu0 %v2093
    %v2176 = vpop.f32.mrf.mxu0
    %v2177 = vadd.f32 0.0, %v2176
    %v2178 = vpop.f32.mrf.mxu0
    %2179 = vdwg.mxu0
    %v2180 = vlaneseq
    %v2181 = vshrl.u32 %v2180, 7
    %v2182 = vsub.s32 4, %v2181
    %v2183 = vrot.slane %v45, %v2182
    %v2184 = vmul.f32 %v2162, %v2183
    %v2185 = vmul.f32 %v2167, %v2183
    %v2186 = vmul.f32 %v2172, %v2183
    %v2187 = vmul.f32 %v2177, %v2183
    %v2188 = vadd.f32 %v2074, %v2184
    %v2189 = vadd.f32 %v2075, %v2185
    %v2190 = vadd.f32 %v2076, %v2186
    %v2191 = vadd.f32 %v2077, %v2187
    %v2192 = vlaneseq
    %v2193 = vshrl.u32 %v2192, 7
    %v2194 = vsub.s32 0, %v2193
    %v2195 = vrot.slane %v44, %v2194
    %v2196 = vmul.f32 %v2188, %v2195
    %v2197 = vmul.f32 %v2189, %v2195
    %v2198 = vmul.f32 %v2190, %v2195
    %v2199 = vmul.f32 %v2191, %v2195
    %v2200 = vlaneseq
    %v2201 = vshrl.u32 %v2200, 7
    %v2202 = vsub.s32 1, %v2201
    %v2203 = vrot.slane %v44, %v2202
    %v2204 = vadd.f32 %v2196, %v2203
    %v2205 = vadd.f32 %v2197, %v2203
    %v2206 = vadd.f32 %v2198, %v2203
    %v2207 = vadd.f32 %v2199, %v2203
    %v2208 = vmul.f32 %v2204, %v226
    %v2209 = vmul.f32 %v2205, %v231
    %v2210 = vmul.f32 %v2206, %v236
    %v2211 = vmul.f32 %v2207, %v241
    %v2212 = vxor.u32 %v2208, 2147483648
    %v2213 = vxor.u32 %v2209, 2147483648
    %v2214 = vxor.u32 %v2210, 2147483648
    %v2215 = vxor.u32 %v2211, 2147483648
    %v2216 = vmul.f32 %v2212, 1.442695
    %v2217 = vpow.pop %v2216
    %v2218 = vmul.f32 %v2213, 1.442695
    %v2219 = vpow.pop %v2218
    %v2220 = vmul.f32 %v2214, 1.442695
    %v2221 = vpow.pop %v2220
    %v2222 = vmul.f32 %v2215, 1.442695
    %v2223 = vpow.pop %v2222
    %v2224 = vadd.f32 %v2217, 1.0
    %v2225 = vadd.f32 %v2219, 1.0
    %v2226 = vadd.f32 %v2221, 1.0
    %v2227 = vadd.f32 %v2223, 1.0
    %v2228 = vrcp.pop %v2224
    %v2229 = vmul.f32 1.0, %v2228
    %v2230 = vrcp.pop %v2225
    %v2231 = vmul.f32 1.0, %v2230
    %v2232 = vrcp.pop %v2226
    %v2233 = vmul.f32 1.0, %v2232
    %v2234 = vrcp.pop %v2227
    %v2235 = vmul.f32 1.0, %v2234
    %v2236 = vmul.f32 %v2208, %v2229
    %v2237 = vmul.f32 %v2209, %v2231
    %v2238 = vmul.f32 %v2210, %v2233
    %v2239 = vmul.f32 %v2211, %v2235
    %s2240 = scalar_lea.vmem %s6, 64
    %v2241 = vld [vmem:[%s2240] sm:$0xf]
    %v2242 = vld [vmem:[%s2240 + $0x4] sm:$0xf]
    %v2243 = vld [vmem:[%s2240 + $0x8] sm:$0xf]
    %v2244 = vld [vmem:[%s2240 + $0xc] sm:$0xf]
    %v2245 = vpack.c.bf16 %v2237, %v2236
    %v2246 = vpack.c.bf16 %v2239, %v2238
    %v2251 = vunpack.c.l.b16 %v2241
    %v2252 = vunpack.c.l.b16 %v2242
    %v2253 = vunpack.c.l.b16 %v2243
    %v2254 = vunpack.c.l.b16 %v2244
    %v2255 = vpack.c.b16 %v2252, %v2251
    %v2256 = vpack.c.b16 %v2254, %v2253
    %v2260 = vsel %vm47, %v2245, 0
    %v2263 = vsel %vm47, %v2246, 0
    %2265 = vmatprep.subr.bf16.mxu0 0
    %2266 = vmatpush1.bf16.msra.mxu0 0
    %2267 = vmatprep.subr.bf16.mxu0 0
    %2268 = vmatpush1.bf16.msra.mxu0 0
    %2269 = vmatprep.subr.bf16.mxu0 0
    %2270 = vmatpush1.bf16.msra.mxu0 0
    %2271 = vmatprep.subr.bf16.mxu0 0
    %2272 = vmatpush1.bf16.msra.mxu0 0
    %2273 = vmatprep.subr.bf16.mxu0 0
    %2274 = vmatpush1.bf16.msra.mxu0 0
    %2275 = vmatprep.subr.bf16.mxu0 0
    %2276 = vmatpush1.bf16.msra.mxu0 0
    %2277 = vmatprep.subr.bf16.mxu0 0
    %2278 = vmatpush1.bf16.msra.mxu0 %v2256
    %2279 = vmatprep.subr.bf16.mxu0 0
    %2280 = vmatpush1.bf16.msra.mxu0 %v2255
    %2281 = vmatprep.subr.bf16.mxu0 0
    %2282 = vmatpush2.bf16.msra.mxu0 0
    %2283 = vmatprep.subr.bf16.mxu0 0
    %2284 = vmatpush2.bf16.msra.mxu0 0
    %2285 = vmatprep.subr.bf16.mxu0 0
    %2286 = vmatpush2.bf16.msra.mxu0 0
    %2287 = vmatprep.subr.bf16.mxu0 0
    %2288 = vmatpush2.bf16.msra.mxu0 0
    %2289 = vmatprep.subr.bf16.mxu0 0
    %2290 = vmatpush2.bf16.msra.mxu0 0
    %2291 = vmatprep.subr.bf16.mxu0 0
    %2292 = vmatpush2.bf16.msra.mxu0 0
    %2293 = vmatprep.subr.bf16.mxu0 0
    %2294 = vmatpush2.bf16.msra.mxu0 0
    %2295 = vmatprep.subr.bf16.mxu0 0
    %2296 = vmatpush2.bf16.msra.mxu0 0
    %2297 = vmatprep.mubr.bf16.mxu0 0
    %2298 = vmatmul.mubr.bf16.gmra.mxu0 %v2260
    %v2299 = vpop.f32.mrf.mxu0
    %v2300 = vadd.f32 0.0, %v2299
    %v2301 = vpop.f32.mrf.mxu0
    %v2302 = vpop.f32.mrf.mxu0
    %v2303 = vadd.f32 0.0, %v2302
    %v2304 = vpop.f32.mrf.mxu0
    %2305 = vmatprep.mubr.bf16.mxu0 0
    %2306 = vmatmul.mubr.bf16.gmra.mxu0 %v2263
    %v2307 = vpop.f32.mrf.mxu0
    %v2308 = vadd.f32 0.0, %v2307
    %v2309 = vpop.f32.mrf.mxu0
    %v2310 = vpop.f32.mrf.mxu0
    %v2311 = vadd.f32 0.0, %v2310
    %v2312 = vpop.f32.mrf.mxu0
    %2313 = vdwg.mxu0
    %v2314 = vadd.f32 %v1531, %v2300
    %v2315 = vadd.f32 %v1532, %v2303
    %v2316 = vadd.f32 %v1533, %v2308
    %v2317 = vadd.f32 %v1534, %v2311
    %v2318 = vlaneseq
    %v2319 = vshrl.u32 %v2318, 7
    %v2320 = vsub.s32 2, %v2319
    %v2321 = vrot.slane %v44, %v2320
    %v2322 = vadd.f32 %v2314, %v2321
    %v2323 = vadd.f32 %v2315, %v2321
    %v2324 = vadd.f32 %v2316, %v2321
    %v2325 = vadd.f32 %v2317, %v2321
    %v2326 = vsel %vm47, %v2322, 0.0
    %2327 = vadd.xlane.f32.xlu0 %v2326
    %v2328 = vpop.xlane.xlu0 %2327
    %v2329 = vsel %vm47, %v2323, 0.0
    %2330 = vadd.xlane.f32.xlu0 %v2329
    %v2331 = vpop.xlane.xlu0 %2330
    %v2332 = vsel %vm47, %v2324, 0.0
    %2333 = vadd.xlane.f32.xlu0 %v2332
    %v2334 = vpop.xlane.xlu0 %2333
    %v2335 = vsel %vm47, %v2325, 0.0
    %2336 = vadd.xlane.f32.xlu0 %v2335
    %v2337 = vpop.xlane.xlu0 %2336
    %v2338 = vmul.f32 %v2328, %v60
    %v2339 = vmul.f32 %v2331, %v60
    %v2340 = vmul.f32 %v2334, %v60
    %v2341 = vmul.f32 %v2337, %v60
    %v2342 = vsub.f32 %v2322, %v2338
    %v2343 = vsub.f32 %v2323, %v2339
    %v2344 = vsub.f32 %v2324, %v2340
    %v2345 = vsub.f32 %v2325, %v2341
    %v2346 = vmul.f32 %v2342, %v2342
    %v2347 = vmul.f32 %v2343, %v2343
    %v2348 = vmul.f32 %v2344, %v2344
    %v2349 = vmul.f32 %v2345, %v2345
    %v2350 = vsel %vm47, %v2346, 0.0
    %2351 = vadd.xlane.f32.xlu0 %v2350
    %v2352 = vpop.xlane.xlu0 %2351
    %v2353 = vsel %vm47, %v2347, 0.0
    %2354 = vadd.xlane.f32.xlu0 %v2353
    %v2355 = vpop.xlane.xlu0 %2354
    %v2356 = vsel %vm47, %v2348, 0.0
    %2357 = vadd.xlane.f32.xlu0 %v2356
    %v2358 = vpop.xlane.xlu0 %2357
    %v2359 = vsel %vm47, %v2349, 0.0
    %2360 = vadd.xlane.f32.xlu0 %v2359
    %v2361 = vpop.xlane.xlu0 %2360
    %v2362 = vmul.f32 %v2352, %v60
    %v2363 = vmul.f32 %v2355, %v60
    %v2364 = vmul.f32 %v2358, %v60
    %v2365 = vmul.f32 %v2361, %v60
    %v2366 = vadd.f32 %v2362, 1e-06
    %v2367 = vadd.f32 %v2363, 1e-06
    %v2368 = vadd.f32 %v2364, 1e-06
    %v2369 = vadd.f32 %v2365, 1e-06
    %v2370 = vrsqrt.pop %v2366
    %v2371 = vrsqrt.pop %v2367
    %v2372 = vrsqrt.pop %v2368
    %v2373 = vrsqrt.pop %v2369
    %v2374 = vmul.f32 %v2342, %v2370
    %v2375 = vmul.f32 %v2343, %v2371
    %v2376 = vmul.f32 %v2344, %v2372
    %v2377 = vmul.f32 %v2345, %v2373
    %v2378 = vadd.f32 %v44, 1.0
    %v2379 = vlaneseq
    %v2380 = vshrl.u32 %v2379, 7
    %v2381 = vsub.s32 3, %v2380
    %v2382 = vrot.slane %v2378, %v2381
    %v2383 = vmul.f32 %v2374, %v2382
    %v2384 = vmul.f32 %v2375, %v2382
    %v2385 = vmul.f32 %v2376, %v2382
    %v2386 = vmul.f32 %v2377, %v2382
    %v2387 = vlaneseq
    %v2388 = vshrl.u32 %v2387, 7
    %v2389 = vsub.s32 4, %v2388
    %v2390 = vrot.slane %v44, %v2389
    %v2391 = vadd.f32 %v2383, %v2390
    %v2392 = vadd.f32 %v2384, %v2390
    %v2393 = vadd.f32 %v2385, %v2390
    %v2394 = vadd.f32 %v2386, %v2390
    %s2395 = scalar_lea.vmem %s6, 80
    %v2396 = vld [vmem:[%s2395] sm:$0xf]
    %v2397 = vld [vmem:[%s2395 + $0x4] sm:$0xf]
    %v2398 = vld [vmem:[%s2395 + $0x8] sm:$0xf]
    %v2399 = vld [vmem:[%s2395 + $0xc] sm:$0xf]
    %v2400 = vpack.c.bf16 %v2392, %v2391
    %v2401 = vpack.c.bf16 %v2394, %v2393
    %v2402 = vlaneseq
    %v2403 = vshrl.u32 %v2402, 7
    %v2404 = vsub.s32 1, %v2403
    %v2405 = vrot.slane %v46, %v2404
    %v2410 = vunpack.c.l.b16 %v2396
    %v2411 = vunpack.c.l.b16 %v2397
    %v2412 = vunpack.c.l.b16 %v2398
    %v2413 = vunpack.c.l.b16 %v2399
    %v2414 = vpack.c.b16 %v2411, %v2410
    %v2415 = vpack.c.b16 %v2413, %v2412
    %v2419 = vsel %vm47, %v2400, 0
    %v2422 = vsel %vm47, %v2401, 0
    %2424 = vmatprep.subr.bf16.mxu0 0
    %2425 = vmatpush1.bf16.msra.mxu0 0
    %2426 = vmatprep.subr.bf16.mxu0 0
    %2427 = vmatpush1.bf16.msra.mxu0 0
    %2428 = vmatprep.subr.bf16.mxu0 0
    %2429 = vmatpush1.bf16.msra.mxu0 0
    %2430 = vmatprep.subr.bf16.mxu0 0
    %2431 = vmatpush1.bf16.msra.mxu0 0
    %2432 = vmatprep.subr.bf16.mxu0 0
    %2433 = vmatpush1.bf16.msra.mxu0 0
    %2434 = vmatprep.subr.bf16.mxu0 0
    %2435 = vmatpush1.bf16.msra.mxu0 0
    %2436 = vmatprep.subr.bf16.mxu0 0
    %2437 = vmatpush1.bf16.msra.mxu0 %v2415
    %2438 = vmatprep.subr.bf16.mxu0 0
    %2439 = vmatpush1.bf16.msra.mxu0 %v2414
    %2440 = vmatprep.subr.bf16.mxu0 0
    %2441 = vmatpush2.bf16.msra.mxu0 0
    %2442 = vmatprep.subr.bf16.mxu0 0
    %2443 = vmatpush2.bf16.msra.mxu0 0
    %2444 = vmatprep.subr.bf16.mxu0 0
    %2445 = vmatpush2.bf16.msra.mxu0 0
    %2446 = vmatprep.subr.bf16.mxu0 0
    %2447 = vmatpush2.bf16.msra.mxu0 0
    %2448 = vmatprep.subr.bf16.mxu0 0
    %2449 = vmatpush2.bf16.msra.mxu0 0
    %2450 = vmatprep.subr.bf16.mxu0 0
    %2451 = vmatpush2.bf16.msra.mxu0 0
    %2452 = vmatprep.subr.bf16.mxu0 0
    %2453 = vmatpush2.bf16.msra.mxu0 0
    %2454 = vmatprep.subr.bf16.mxu0 0
    %2455 = vmatpush2.bf16.msra.mxu0 0
    %2456 = vmatprep.mubr.bf16.mxu0 0
    %2457 = vmatmul.mubr.bf16.gmra.mxu0 %v2419
    %v2458 = vpop.f32.mrf.mxu0
    %v2459 = vadd.f32 %v2405, %v2458
    %v2460 = vpop.f32.mrf.mxu0
    %v2461 = vpop.f32.mrf.mxu0
    %v2462 = vadd.f32 %v2405, %v2461
    %v2463 = vpop.f32.mrf.mxu0
    %2464 = vmatprep.mubr.bf16.mxu0 0
    %2465 = vmatmul.mubr.bf16.gmra.mxu0 %v2422
    %v2466 = vpop.f32.mrf.mxu0
    %v2467 = vadd.f32 %v2405, %v2466
    %v2468 = vpop.f32.mrf.mxu0
    %v2469 = vpop.f32.mrf.mxu0
    %v2470 = vadd.f32 %v2405, %v2469
    %v2471 = vpop.f32.mrf.mxu0
    %2472 = vdwg.mxu0
    %v2473 = vxor.u32 %v2459, 2147483648
    %v2474 = vxor.u32 %v2462, 2147483648
    %v2475 = vxor.u32 %v2467, 2147483648
    %v2476 = vxor.u32 %v2470, 2147483648
    %v2477 = vmul.f32 %v2473, 1.442695
    %v2478 = vpow.pop %v2477
    %v2479 = vmul.f32 %v2474, 1.442695
    %v2480 = vpow.pop %v2479
    %v2481 = vmul.f32 %v2475, 1.442695
    %v2482 = vpow.pop %v2481
    %v2483 = vmul.f32 %v2476, 1.442695
    %v2484 = vpow.pop %v2483
    %v2485 = vadd.f32 %v2478, 1.0
    %v2486 = vadd.f32 %v2480, 1.0
    %v2487 = vadd.f32 %v2482, 1.0
    %v2488 = vadd.f32 %v2484, 1.0
    %v2489 = vrcp.pop %v2485
    %v2490 = vmul.f32 1.0, %v2489
    %v2491 = vrcp.pop %v2486
    %v2492 = vmul.f32 1.0, %v2491
    %v2493 = vrcp.pop %v2487
    %v2494 = vmul.f32 1.0, %v2493
    %v2495 = vrcp.pop %v2488
    %v2496 = vmul.f32 1.0, %v2495
    %v2497 = vmul.f32 %v2459, %v2490
    %v2498 = vmul.f32 %v2462, %v2492
    %v2499 = vmul.f32 %v2467, %v2494
    %v2500 = vmul.f32 %v2470, %v2496
    %v2501 = vmul.f32 %v2497, %v226
    %v2502 = vmul.f32 %v2498, %v231
    %v2503 = vmul.f32 %v2499, %v236
    %v2504 = vmul.f32 %v2500, %v241
    %s2505 = scalar_lea.vmem %s7, 64
    %v2506 = vld [vmem:[%s2505] sm:$0xf]
    %v2507 = vld [vmem:[%s2505 + $0x4] sm:$0xf]
    %v2508 = vld [vmem:[%s2505 + $0x8] sm:$0xf]
    %v2509 = vld [vmem:[%s2505 + $0xc] sm:$0xf]
    %v2510 = vld [vmem:[%s2505 + $0x10] sm:$0xf]
    %v2511 = vld [vmem:[%s2505 + $0x14] sm:$0xf]
    %v2512 = vld [vmem:[%s2505 + $0x18] sm:$0xf]
    %v2513 = vld [vmem:[%s2505 + $0x1c] sm:$0xf]
    %v2514 = vld [vmem:[%s2505 + $0x20] sm:$0xf]
    %v2515 = vld [vmem:[%s2505 + $0x24] sm:$0xf]
    %v2516 = vld [vmem:[%s2505 + $0x28] sm:$0xf]
    %v2517 = vld [vmem:[%s2505 + $0x2c] sm:$0xf]
    %v2518 = vld [vmem:[%s2505 + $0x30] sm:$0xf]
    %v2519 = vld [vmem:[%s2505 + $0x34] sm:$0xf]
    %v2520 = vld [vmem:[%s2505 + $0x38] sm:$0xf]
    %v2521 = vld [vmem:[%s2505 + $0x3c] sm:$0xf]
    %v2522 = vpack.c.bf16 %v2502, %v2501
    %v2523 = vpack.c.bf16 %v2504, %v2503
    %v2524 = vlaneseq
    %v2525 = vshrl.u32 %v2524, 7
    %v2526 = vsub.s32 5, %v2525
    %v2527 = vrot.slane %v44, %v2526
    %v2544 = vunpack.c.l.b16 %v2506
    %v2545 = vunpack.c.l.b16 %v2507
    %v2546 = vunpack.c.l.b16 %v2508
    %v2547 = vunpack.c.l.b16 %v2509
    %v2548 = vunpack.c.l.b16 %v2510
    %v2549 = vunpack.c.l.b16 %v2511
    %v2550 = vunpack.c.l.b16 %v2512
    %v2551 = vunpack.c.l.b16 %v2513
    %v2552 = vunpack.c.l.b16 %v2514
    %v2553 = vunpack.c.l.b16 %v2515
    %v2554 = vunpack.c.l.b16 %v2516
    %v2555 = vunpack.c.l.b16 %v2517
    %v2556 = vunpack.c.l.b16 %v2518
    %v2557 = vunpack.c.l.b16 %v2519
    %v2558 = vunpack.c.l.b16 %v2520
    %v2559 = vunpack.c.l.b16 %v2521
    %v2560 = vpack.c.b16 %v2545, %v2544
    %v2561 = vpack.c.b16 %v2547, %v2546
    %v2562 = vpack.c.b16 %v2549, %v2548
    %v2563 = vpack.c.b16 %v2551, %v2550
    %v2564 = vpack.c.b16 %v2553, %v2552
    %v2565 = vpack.c.b16 %v2555, %v2554
    %v2566 = vpack.c.b16 %v2557, %v2556
    %v2567 = vpack.c.b16 %v2559, %v2558
    %2576 = vmatprep.subr.bf16.mxu0 0
    %2577 = vmatpush1.bf16.msra.mxu0 %v2567
    %2578 = vmatprep.subr.bf16.mxu0 0
    %2579 = vmatpush1.bf16.msra.mxu0 %v2566
    %2580 = vmatprep.subr.bf16.mxu0 0
    %2581 = vmatpush1.bf16.msra.mxu0 %v2565
    %2582 = vmatprep.subr.bf16.mxu0 0
    %2583 = vmatpush1.bf16.msra.mxu0 %v2564
    %2584 = vmatprep.subr.bf16.mxu0 0
    %2585 = vmatpush1.bf16.msra.mxu0 %v2563
    %2586 = vmatprep.subr.bf16.mxu0 0
    %2587 = vmatpush1.bf16.msra.mxu0 %v2562
    %2588 = vmatprep.subr.bf16.mxu0 0
    %2589 = vmatpush1.bf16.msra.mxu0 %v2561
    %2590 = vmatprep.subr.bf16.mxu0 0
    %2591 = vmatpush1.bf16.msra.mxu0 %v2560
    %2592 = vmatprep.subr.bf16.mxu0 0
    %2593 = vmatpush2.bf16.msra.mxu0 0
    %2594 = vmatprep.subr.bf16.mxu0 0
    %2595 = vmatpush2.bf16.msra.mxu0 0
    %2596 = vmatprep.subr.bf16.mxu0 0
    %2597 = vmatpush2.bf16.msra.mxu0 0
    %2598 = vmatprep.subr.bf16.mxu0 0
    %2599 = vmatpush2.bf16.msra.mxu0 0
    %2600 = vmatprep.subr.bf16.mxu0 0
    %2601 = vmatpush2.bf16.msra.mxu0 0
    %2602 = vmatprep.subr.bf16.mxu0 0
    %2603 = vmatpush2.bf16.msra.mxu0 0
    %2604 = vmatprep.subr.bf16.mxu0 0
    %2605 = vmatpush2.bf16.msra.mxu0 0
    %2606 = vmatprep.subr.bf16.mxu0 0
    %2607 = vmatpush2.bf16.msra.mxu0 0
    %2608 = vmatprep.mubr.bf16.mxu0 0
    %2609 = vmatmul.mubr.bf16.gmra.mxu0 %v2522
    %v2610 = vpop.f32.mrf.mxu0
    %v2611 = vadd.f32 %v2527, %v2610
    %v2612 = vpop.f32.mrf.mxu0
    %v2613 = vpop.f32.mrf.mxu0
    %v2614 = vadd.f32 %v2527, %v2613
    %v2615 = vpop.f32.mrf.mxu0
    %2616 = vmatprep.mubr.bf16.mxu0 0
    %2617 = vmatmul.mubr.bf16.gmra.mxu0 %v2523
    %v2618 = vpop.f32.mrf.mxu0
    %v2619 = vadd.f32 %v2527, %v2618
    %v2620 = vpop.f32.mrf.mxu0
    %v2621 = vpop.f32.mrf.mxu0
    %v2622 = vadd.f32 %v2527, %v2621
    %v2623 = vpop.f32.mrf.mxu0
    %2624 = vdwg.mxu0
    %v2625 = vmul.f32 %v2611, %v226
    %v2626 = vmul.f32 %v2614, %v231
    %v2627 = vmul.f32 %v2619, %v236
    %v2628 = vmul.f32 %v2622, %v241
    %v2629 = vmul.f32 %v2625, 0.5
    %v2630 = vmul.f32 %v2626, 0.5
    %v2631 = vmul.f32 %v2627, 0.5
    %v2632 = vmul.f32 %v2628, 0.5
    %v2633 = vadd.f32 %v2322, %v2629
    %v2634 = vadd.f32 %v2323, %v2630
    %v2635 = vadd.f32 %v2324, %v2631
    %v2636 = vadd.f32 %v2325, %v2632
    %v2637 = vsel %vm47, %v2633, 0.0
    %2638 = vadd.xlane.f32.xlu0 %v2637
    %v2639 = vpop.xlane.xlu0 %2638
    %v2640 = vsel %vm47, %v2634, 0.0
    %2641 = vadd.xlane.f32.xlu0 %v2640
    %v2642 = vpop.xlane.xlu0 %2641
    %v2643 = vsel %vm47, %v2635, 0.0
    %2644 = vadd.xlane.f32.xlu0 %v2643
    %v2645 = vpop.xlane.xlu0 %2644
    %v2646 = vsel %vm47, %v2636, 0.0
    %2647 = vadd.xlane.f32.xlu0 %v2646
    %v2648 = vpop.xlane.xlu0 %2647
    %v2649 = vmul.f32 %v2639, %v60
    %v2650 = vmul.f32 %v2642, %v60
    %v2651 = vmul.f32 %v2645, %v60
    %v2652 = vmul.f32 %v2648, %v60
    %v2653 = vsub.f32 %v2633, %v2649
    %v2654 = vsub.f32 %v2634, %v2650
    %v2655 = vsub.f32 %v2635, %v2651
    %v2656 = vsub.f32 %v2636, %v2652
    %v2657 = vmul.f32 %v2653, %v2653
    %v2658 = vmul.f32 %v2654, %v2654
    %v2659 = vmul.f32 %v2655, %v2655
    %v2660 = vmul.f32 %v2656, %v2656
    %v2661 = vsel %vm47, %v2657, 0.0
    %2662 = vadd.xlane.f32.xlu0 %v2661
    %v2663 = vpop.xlane.xlu0 %2662
    %v2664 = vsel %vm47, %v2658, 0.0
    %2665 = vadd.xlane.f32.xlu0 %v2664
    %v2666 = vpop.xlane.xlu0 %2665
    %v2667 = vsel %vm47, %v2659, 0.0
    %2668 = vadd.xlane.f32.xlu0 %v2667
    %v2669 = vpop.xlane.xlu0 %2668
    %v2670 = vsel %vm47, %v2660, 0.0
    %2671 = vadd.xlane.f32.xlu0 %v2670
    %v2672 = vpop.xlane.xlu0 %2671
    %v2673 = vmul.f32 %v2663, %v60
    %v2674 = vmul.f32 %v2666, %v60
    %v2675 = vmul.f32 %v2669, %v60
    %v2676 = vmul.f32 %v2672, %v60
    %v2677 = vadd.f32 %v2673, 1e-06
    %v2678 = vadd.f32 %v2674, 1e-06
    %v2679 = vadd.f32 %v2675, 1e-06
    %v2680 = vadd.f32 %v2676, 1e-06
    %v2681 = vrsqrt.pop %v2677
    %v2682 = vrsqrt.pop %v2678
    %v2683 = vrsqrt.pop %v2679
    %v2684 = vrsqrt.pop %v2680
    %v2685 = vmul.f32 %v2653, %v2681
    %v2686 = vmul.f32 %v2654, %v2682
    %v2687 = vmul.f32 %v2655, %v2683
    %v2688 = vmul.f32 %v2656, %v2684
    %v2689 = vlaneseq
    %v2690 = vshrl.u32 %v2689, 7
    %v2691 = vsub.s32 6, %v2690
    %v2692 = vrot.slane %v2378, %v2691
    %v2693 = vmul.f32 %v2685, %v2692
    %v2694 = vmul.f32 %v2686, %v2692
    %v2695 = vmul.f32 %v2687, %v2692
    %v2696 = vmul.f32 %v2688, %v2692
    %v2697 = vlaneseq
    %v2698 = vshrl.u32 %v2697, 7
    %v2699 = vsub.s32 7, %v2698
    %v2700 = vrot.slane %v44, %v2699
    %v2701 = vadd.f32 %v2693, %v2700
    %v2702 = vadd.f32 %v2694, %v2700
    %v2703 = vadd.f32 %v2695, %v2700
    %v2704 = vadd.f32 %v2696, %v2700
    %2705 = vst.msk [vmem:[#allocation2] sm:$0xff] %vm47, %v2701
    %2706 = vst.msk [vmem:[#allocation2 + $0x8] sm:$0xff] %vm47, %v2702
    %2707 = vst.msk [vmem:[#allocation2 + $0x10] sm:$0xff] %vm47, %v2703
    %2708 = vst.msk [vmem:[#allocation2 + $0x18] sm:$0xff] %vm47, %v2704
    // Predicated region
    $region34: #{conformer_block_pallas.1} parent=1 // pred_check
      _
    $region35: #{conformer_block_pallas.1} parent=1 // pred_check_branch
      %2710 = sbr.rel (0) target = $region37
    $region36: #{conformer_block_pallas.1} parent=1 // pred_region
      %s2712 = ssub.s32 512, 512
      %2713 = vsyncadd [#allocation3], %s2712
      %s2714 = sshll.u32 [#allocation2], 4
      %s2715 = int_to_ptr.vmem [resolvable:$true] %s2714
      %2720 = dma.vmem_to_hbm [thread:$0]  %s2715, 512, %s8, [#allocation3], 128, 128, 8
    $region37: #{conformer_block_pallas.1} parent=1 // pred_fallthru
      _
    // Predicated region
    $region38: #{conformer_block_pallas.1} parent=1 // pred_check
      _
    $region39: #{conformer_block_pallas.1} parent=1 // pred_check_branch
      %2722 = sbr.rel (0) target = $region41
    $region40: #{conformer_block_pallas.1} parent=1 // pred_region
      %2723 = dma.done [#allocation3], 512
    $region41: #{conformer_block_pallas.1} parent=1 // pred_fallthru
      _
    %2724 = vsyncpa [#allocation3], 1

</llo_original>
